<compile_context>
chip_gen: v7x
topology: tpu7x:2x2x1
jax: 0.10.0
libtpu: 0.0.40
codegen_flags: <defaults>
</compile_context>

<pallas_src>
import jax
import jax.numpy as jnp
import numpy as np
from jax.experimental import pallas as pl
from jax.experimental.pallas import tpu as pltpu

NUM_LAYERS = 2  # nn.GRU(..., num_layers=2, bidirectional=True)


# --------------------------------------------------------------------------- #
# Fused kernel: 2-layer bi-GRU + max-over-batch + tanh + fc, one pallas_call. #
# --------------------------------------------------------------------------- #
def _bigru_kernel(x_ref, wih0_ref, wih1_ref, whh_ref, bgi_ref, bhn_ref,
                  mask_ref, fcw_ref, fcb_ref, out_ref,
                  gi_f_ref, gi_b_ref, act_f_ref, act_b_ref,
                  pool_f_ref, pool_b_ref):
    """All buffers f32.  Row t*B + b of any (T*B, *) array is (time t, batch b).

    x_ref    : (T*B, F)     time-major flattened input
    wih0_ref : (F, 6H)      [W_ih^T fwd | W_ih^T bwd], layer 0, gate order (r,z,n)
    wih1_ref : (2, H, 6H)   layer-1 W_ih^T split by input half:
                            [0] multiplies layer-0 fwd output, [1] the bwd output;
                            lanes = [fwd-dir gates | bwd-dir gates]
    whh_ref  : (2, 2H, 3H)  per layer: rows 0:H = W_hh^T fwd, rows H:2H = bwd
    bgi_ref  : (2, 1, 6H)   b_ih + [b_hh_r, b_hh_z, 0] per direction, [fwd | bwd]
    bhn_ref  : (2, 2B, H)   b_hh_n; rows 0:B fwd, rows B:2B bwd
    mask_ref : (2B, 2H)     block-diagonal 0/1 mask for the stacked state
    fcw_ref  : (2, H, C)    fc weight halves ([0]: fwd half, [1]: bwd half)
    fcb_ref  : (1, C)
    out_ref  : (T, C)
    scratch  : gi_f/gi_b (T*B, 3H), act_f/act_b (T*B, H), pool_f/pool_b (T, H)
    """
    H = whh_ref.shape[2] // 3
    B = bhn_ref.shape[1] // 2
    T = out_ref.shape[0]

    mask = mask_ref[...]                                    # (2B, 2H), hoisted

    def recurrence(layer, is_last_layer):
        """Fwd + bwd chains of one layer in a single unrolled step loop, one
        stacked (2B,2H)x(2H,3H) matmul per step (block-diagonal LHS)."""
        whh_l = whh_ref[layer]                              # (2H, 3H)
        bhn_l = bhn_ref[layer]                              # (2B, H)
        h = None                                            # compact state (2B, H)
        hblk = None                                         # block-diag state (2B, 2H)
        for s in range(T):
            tf, tb = s, T - 1 - s                           # fwd / bwd time index
            # gi reads do not depend on h -> off the serial critical path.
            g_f = gi_f_ref[pl.ds(tf * B, B), :]             # (B, 3H)
            g_b = gi_b_ref[pl.ds(tb * B, B), :]             # (B, 3H)
            gi = jnp.concatenate([g_f, g_b], axis=0)        # (2B, 3H)
            if s == 0:
                gh = jnp.zeros((2 * B, 3 * H), jnp.float32)     # h0 == 0
            else:
                gh = jnp.dot(hblk, whh_l, preferred_element_type=jnp.float32)
            r = jax.nn.sigmoid(gi[:, 0:H] + gh[:, 0:H])
            z = jax.nn.sigmoid(gi[:, H:2 * H] + gh[:, H:2 * H])
            n = jnp.tanh(gi[:, 2 * H:] + r * (gh[:, 2 * H:] + bhn_l))
            h = (1.0 - z) * n if s == 0 else (1.0 - z) * n + z * h
            if s + 1 < T:
                # Rebuild the block-diagonal stacked state for the next step.
                hblk = jnp.concatenate([h, h], axis=1) * mask
            h_f, h_b = h[0:B, :], h[B:2 * B, :]
            if not is_last_layer:
                # Per-direction trajectories (natural time order, lane offset 0)
                # feed layer 1's hoisted input projection.
                act_f_ref[pl.ds(tf * B, B), :] = h_f
                act_b_ref[pl.ds(tb * B, B), :] = h_b
            else:
                # The head only needs the per-time max over the batch.
                pool_f_ref[pl.ds(tf, 1), :] = jnp.max(h_f, axis=0, keepdims=True)
                pool_b_ref[pl.ds(tb, 1), :] = jnp.max(h_b, axis=0, keepdims=True)

    # ---- layer 0: hoisted input projection, both directions in one matmul ----
    gi_cat = jnp.dot(x_ref[...], wih0_ref[...],
                     preferred_element_type=jnp.float32) + bgi_ref[0]   # (T*B, 6H)
    gi_f_ref[...] = gi_cat[:, 0:3 * H]
    gi_b_ref[...] = gi_cat[:, 3 * H:]
    recurrence(0, is_last_layer=False)

    # ---- layer 1: projection from per-direction halves (no 2H concat) --------
    gi_cat = (jnp.dot(act_f_ref[...], wih1_ref[0], preferred_element_type=jnp.float32)
              + jnp.dot(act_b_ref[...], wih1_ref[1], preferred_element_type=jnp.float32)
              + bgi_ref[1])                                             # (T*B, 6H)
    gi_f_ref[...] = gi_cat[:, 0:3 * H]
    gi_b_ref[...] = gi_cat[:, 3 * H:]
    recurrence(1, is_last_layer=True)

    # ---- head: tanh(max over batch) @ fc, split into fwd/bwd halves ----------
    out_ref[...] = (
        jnp.dot(jnp.tanh(pool_f_ref[...]), fcw_ref[0],
                preferred_element_type=jnp.float32)
        + jnp.dot(jnp.tanh(pool_b_ref[...]), fcw_ref[1],
                  preferred_element_type=jnp.float32)
        + fcb_ref[...])


# ------------------------------ pallas_call glue --------------------------- #

def _vmem_spec():
    return pl.BlockSpec(memory_space=pltpu.MemorySpace.VMEM)


@jax.jit
def bidirectional_gru_forward(x, kp):
    """x: (B, T, F) float32 -> (T, n_classes), matching the PyTorch forward."""
    B, T, f_dim = x.shape
    H = kp['whh'].shape[-1] // 3
    C = kp['fcw'].shape[-1]
    x_flat = jnp.transpose(x, (1, 0, 2)).reshape(T * B, f_dim).astype(jnp.float32)
    return pl.pallas_call(
        _bigru_kernel,
        out_shape=jax.ShapeDtypeStruct((T, C), jnp.float32),
        in_specs=[_vmem_spec()] * 9,
        out_specs=_vmem_spec(),
        scratch_shapes=[
            pltpu.VMEM((T * B, 3 * H), jnp.float32),    # gi_f
            pltpu.VMEM((T * B, 3 * H), jnp.float32),    # gi_b
            pltpu.VMEM((T * B, H), jnp.float32),        # act_f  (layer-0 fwd out)
            pltpu.VMEM((T * B, H), jnp.float32),        # act_b  (layer-0 bwd out)
            pltpu.VMEM((T, H), jnp.float32),            # pool_f (max over batch)
            pltpu.VMEM((T, H), jnp.float32),            # pool_b
        ],
    )(x_flat, kp['wih0'], kp['wih1'], kp['whh'], kp['bgi'], kp['bhn'],
      kp['mask'], kp['fcw'], kp['fcb'])


# ------------------------- parameters (PyTorch layout) ---------------------- #

def init_params(key, f_dim, hidden, n_classes):
    """PyTorch-layout params: W_ih (3H, Din), W_hh (3H, H), b_* (3H,),
    fc_w (C, 2H), fc_b (C,).  Gate order (r, z, n)."""
    k = 1.0 / np.sqrt(hidden)

    def unif(kk, shape):
        return jax.random.uniform(kk, shape, jnp.float32, -k, k)

    params = {}
    keys = jax.random.split(key, NUM_LAYERS * 2 * 4 + 2)
    ki = 0
    for layer in range(NUM_LAYERS):
        d_in = f_dim if layer == 0 else 2 * hidden
        for direction in ('fwd', 'bwd'):
            params[f'l{layer}_{direction}'] = dict(
                w_ih=unif(keys[ki + 0], (3 * hidden, d_in)),
                w_hh=unif(keys[ki + 1], (3 * hidden, hidden)),
                b_ih=unif(keys[ki + 2], (3 * hidden,)),
                b_hh=unif(keys[ki + 3], (3 * hidden,)),
            )
            ki += 4
    params['fc_w'] = unif(keys[ki], (n_classes, 2 * hidden))
    params['fc_b'] = unif(keys[ki + 1], (n_classes,))
    return params


def prepare_kernel_params(params, hidden, batch):
    """One-time repack of PyTorch-layout params into the fused-kernel layout."""
    H, B = hidden, batch
    l0f, l0b = params['l0_fwd'], params['l0_bwd']
    l1f, l1b = params['l1_fwd'], params['l1_bwd']

    def gi_bias(p):
        # b_ih + the r/z parts of b_hh fold into the hoisted input projection;
        # b_hh_n must stay inside the r * (.) term (PyTorch GRU equations).
        return p['b_ih'] + jnp.concatenate(
            [p['b_hh'][:2 * H], jnp.zeros((H,), jnp.float32)])

    wih0 = jnp.concatenate([l0f['w_ih'].T, l0b['w_ih'].T], axis=1)        # (F, 6H)
    w1f, w1b = l1f['w_ih'].T, l1b['w_ih'].T                               # (2H, 3H)
    wih1 = jnp.stack([jnp.concatenate([w1f[:H], w1b[:H]], axis=1),        # (2, H, 6H)
                      jnp.concatenate([w1f[H:], w1b[H:]], axis=1)])
    whh = jnp.stack([jnp.concatenate([l0f['w_hh'].T, l0b['w_hh'].T], axis=0),
                     jnp.concatenate([l1f['w_hh'].T, l1b['w_hh'].T], axis=0)])  # (2, 2H, 3H)
    bgi = jnp.stack([jnp.concatenate([gi_bias(l0f), gi_bias(l0b)]).reshape(1, 6 * H),
                     jnp.concatenate([gi_bias(l1f), gi_bias(l1b)]).reshape(1, 6 * H)])

    def bhn_layer(pf, pb):
        return jnp.concatenate(
            [jnp.broadcast_to(pf['b_hh'][2 * H:], (B, H)),
             jnp.broadcast_to(pb['b_hh'][2 * H:], (B, H))], axis=0)       # (2B, H)

    bhn = jnp.stack([bhn_layer(l0f, l0b), bhn_layer(l1f, l1b)])           # (2, 2B, H)
    mask = jnp.concatenate(
        [jnp.concatenate([jnp.ones((B, H), jnp.float32), jnp.zeros((B, H), jnp.float32)], axis=1),
         jnp.concatenate([jnp.zeros((B, H), jnp.float32), jnp.ones((B, H), jnp.float32)], axis=1)],
        axis=0)                                                           # (2B, 2H)
    fcw_t = params['fc_w'].T                                              # (2H, C)
    fcw = jnp.stack([fcw_t[:H], fcw_t[H:]])                               # (2, H, C)
    fcb = params['fc_b'].reshape(1, -1)                                   # (1, C)
    return dict(wih0=wih0, wih1=wih1, whh=whh, bgi=bgi, bhn=bhn,
                mask=mask, fcw=fcw, fcb=fcb)


# ------------------------------ pure-JAX reference ------------------------- #

def _gru_dir_ref(x_tbf, p, hidden):
    H = hidden
    w_ih_t, w_hh_t = p['w_ih'].T, p['w_hh'].T
    b_ih, b_hh = p['b_ih'], p['b_hh']
    B = x_tbf.shape[1]

    def step(h, x_t):
        gi = x_t @ w_ih_t + b_ih
        gh = h @ w_hh_t + b_hh
        r = jax.nn.sigmoid(gi[:, :H] + gh[:, :H])
        z = jax.nn.sigmoid(gi[:, H:2 * H] + gh[:, H:2 * H])
        n = jnp.tanh(gi[:, 2 * H:] + r * gh[:, 2 * H:])
        h_new = (1.0 - z) * n + z * h
        return h_new, h_new

    _, hs = jax.lax.scan(step, jnp.zeros((B, H), jnp.float32), x_tbf)
    return hs


def forward_ref(x, params, hidden):
    inp = jnp.transpose(x, (1, 0, 2)).astype(jnp.float32)
    for layer in range(NUM_LAYERS):
        h_f = _gru_dir_ref(inp, params[f'l{layer}_fwd'], hidden)
        h_b = _gru_dir_ref(inp[::-1], params[f'l{layer}_bwd'], hidden)[::-1]
        inp = jnp.concatenate([h_f, h_b], axis=-1)
    pooled = jnp.max(inp, axis=1)
    return jnp.tanh(pooled) @ params['fc_w'].T + params['fc_b']


# ----------------------------------- main ----------------------------------- #

if __name__ == "__main__":
    B, T, F_DIM, HIDDEN, N_CLASSES = 4, 8, 16, 32, 3   # args.f_dim=16, args.dim=32

    key = jax.random.PRNGKey(0)
    kx, kparam = jax.random.split(key)
    x = jax.random.normal(kx, (B, T, F_DIM), jnp.float32)
    params = init_params(kparam, F_DIM, HIDDEN, N_CLASSES)
    kparams = prepare_kernel_params(params, HIDDEN, B)

    out = bidirectional_gru_forward(x, kparams)
    out = jax.block_until_ready(out)

    assert out.shape == (T, N_CLASSES), out.shape
    ref = forward_ref(x, params, HIDDEN)
    np.testing.assert_allclose(np.asarray(out), np.asarray(ref), rtol=1e-4, atol=1e-4)

    print("KERNEL_OK")
</pallas_src>

<mosaic_0001>
module attributes {stable_mosaic.version = 11 : i64} {
  func.func @_bigru_kernel(%arg0: memref<32x16xf32, #tpu.memory_space<vmem>>, %arg1: memref<16x192xf32, #tpu.memory_space<vmem>>, %arg2: memref<2x32x192xf32, #tpu.memory_space<vmem>>, %arg3: memref<2x64x96xf32, #tpu.memory_space<vmem>>, %arg4: memref<2x1x192xf32, #tpu.memory_space<vmem>>, %arg5: memref<2x8x32xf32, #tpu.memory_space<vmem>>, %arg6: memref<8x64xf32, #tpu.memory_space<vmem>>, %arg7: memref<2x32x3xf32, #tpu.memory_space<vmem>>, %arg8: memref<1x3xf32, #tpu.memory_space<vmem>>, %arg9: memref<8x3xf32, #tpu.memory_space<vmem>>, %arg10: memref<32x96xf32, #tpu.memory_space<vmem>>, %arg11: memref<32x96xf32, #tpu.memory_space<vmem>>, %arg12: memref<32x32xf32, #tpu.memory_space<vmem>>, %arg13: memref<32x32xf32, #tpu.memory_space<vmem>>, %arg14: memref<8x32xf32, #tpu.memory_space<vmem>>, %arg15: memref<8x32xf32, #tpu.memory_space<vmem>>) attributes {dimension_semantics = [], scalar_prefetch = 0 : i64, scratch_operands = 6 : i64, tpu.core_type = #tpu.core_type<tc>} {
    %c0 = arith.constant 0 : index
    %c0_0 = arith.constant 0 : index
    %0 = vector.load %arg6[%c0, %c0_0] : memref<8x64xf32, #tpu.memory_space<vmem>>, vector<8x64xf32>
    %c0_1 = arith.constant 0 : index
    %c0_2 = arith.constant 0 : index
    %1 = vector.load %arg0[%c0_1, %c0_2] : memref<32x16xf32, #tpu.memory_space<vmem>>, vector<32x16xf32>
    %c0_3 = arith.constant 0 : index
    %c0_4 = arith.constant 0 : index
    %2 = vector.load %arg1[%c0_3, %c0_4] : memref<16x192xf32, #tpu.memory_space<vmem>>, vector<16x192xf32>
    %cst = arith.constant dense<0.000000e+00> : vector<32x192xf32>
    %3 = tpu.matmul %1, %2, %cst {dimension_numbers = #tpu.dot_dimension_numbers<[1], [0], [0], [1], [0, 0, 1, 1], [], []>} : vector<32x16xf32>, vector<16x192xf32>, vector<32x192xf32> -> vector<32x192xf32>
    %c0_5 = arith.constant 0 : index
    %c0_6 = arith.constant 0 : index
    %c0_7 = arith.constant 0 : index
    %4 = vector.load %arg4[%c0_5, %c0_6, %c0_7] : memref<2x1x192xf32, #tpu.memory_space<vmem>>, vector<1x1x192xf32>
    %5 = vector.shape_cast %4 : vector<1x1x192xf32> to vector<1x192xf32>
    %6 = vector.broadcast %5 : vector<1x192xf32> to vector<32x192xf32>
    %7 = arith.addf %3, %6 : vector<32x192xf32>
    %8 = vector.extract_strided_slice %7 {offsets = [0, 0], sizes = [32, 96], strides = [1, 1]} : vector<32x192xf32> to vector<32x96xf32>
    %c0_8 = arith.constant 0 : index
    %c0_9 = arith.constant 0 : index
    %9 = vector.load %arg10[%c0_8, %c0_9] : memref<32x96xf32, #tpu.memory_space<vmem>>, vector<32x96xf32>
    tpu.vector_store %arg10[%c0_8, %c0_9], %8 {strides = array<i32>} : memref<32x96xf32, #tpu.memory_space<vmem>>, vector<32x96xf32>,
    %10 = vector.extract_strided_slice %7 {offsets = [0, 96], sizes = [32, 96], strides = [1, 1]} : vector<32x192xf32> to vector<32x96xf32>
    %c0_10 = arith.constant 0 : index
    %c0_11 = arith.constant 0 : index
    %11 = vector.load %arg11[%c0_10, %c0_11] : memref<32x96xf32, #tpu.memory_space<vmem>>, vector<32x96xf32>
    tpu.vector_store %arg11[%c0_10, %c0_11], %10 {strides = array<i32>} : memref<32x96xf32, #tpu.memory_space<vmem>>, vector<32x96xf32>,
    %c0_12 = arith.constant 0 : index
    %c0_13 = arith.constant 0 : index
    %c0_14 = arith.constant 0 : index
    %12 = vector.load %arg3[%c0_12, %c0_13, %c0_14] : memref<2x64x96xf32, #tpu.memory_space<vmem>>, vector<1x64x96xf32>
    %13 = vector.shape_cast %12 : vector<1x64x96xf32> to vector<64x96xf32>
    %c0_15 = arith.constant 0 : index
    %c0_16 = arith.constant 0 : index
    %c0_17 = arith.constant 0 : index
    %14 = vector.load %arg5[%c0_15, %c0_16, %c0_17] : memref<2x8x32xf32, #tpu.memory_space<vmem>>, vector<1x8x32xf32>
    %15 = vector.shape_cast %14 : vector<1x8x32xf32> to vector<8x32xf32>
    %c0_18 = arith.constant 0 : index
    %c0_19 = arith.constant 0 : index
    %16 = vector.load %arg10[%c0_18, %c0_19] : memref<32x96xf32, #tpu.memory_space<vmem>>, vector<4x96xf32>
    %c28 = arith.constant 28 : index
    %c0_20 = arith.constant 0 : index
    %17 = vector.load %arg11[%c28, %c0_20] : memref<32x96xf32, #tpu.memory_space<vmem>>, vector<4x96xf32>
    %18 = tpu.concatenate %16, %17 in 0 : vector<4x96xf32>, vector<4x96xf32> -> vector<8x96xf32>
    %cst_21 = arith.constant 0.000000e+00 : f32
    %19 = vector.broadcast %cst_21 : f32 to vector<8x96xf32>
    %20 = vector.extract_strided_slice %18 {offsets = [0, 0], sizes = [8, 32], strides = [1, 1]} : vector<8x96xf32> to vector<8x32xf32>
    %21 = vector.extract_strided_slice %19 {offsets = [0, 0], sizes = [8, 32], strides = [1, 1]} : vector<8x96xf32> to vector<8x32xf32>
    %22 = arith.addf %20, %21 : vector<8x32xf32>
    %23 = arith.negf %22 : vector<8x32xf32>
    %24 = math.exp %23 : vector<8x32xf32>
    %cst_22 = arith.constant 1.000000e+00 : f32
    %25 = vector.broadcast %cst_22 : f32 to vector<8x32xf32>
    %26 = arith.addf %25, %24 : vector<8x32xf32>
    %27 = arith.divf %25, %26 : vector<8x32xf32>
    %28 = vector.extract_strided_slice %18 {offsets = [0, 32], sizes = [8, 32], strides = [1, 1]} : vector<8x96xf32> to vector<8x32xf32>
    %29 = vector.extract_strided_slice %19 {offsets = [0, 32], sizes = [8, 32], strides = [1, 1]} : vector<8x96xf32> to vector<8x32xf32>
    %30 = arith.addf %28, %29 : vector<8x32xf32>
    %31 = arith.negf %30 : vector<8x32xf32>
    %32 = math.exp %31 : vector<8x32xf32>
    %cst_23 = arith.constant 1.000000e+00 : f32
    %33 = vector.broadcast %cst_23 : f32 to vector<8x32xf32>
    %34 = arith.addf %33, %32 : vector<8x32xf32>
    %35 = arith.divf %33, %34 : vector<8x32xf32>
    %36 = vector.extract_strided_slice %18 {offsets = [0, 64], sizes = [8, 32], strides = [1, 1]} : vector<8x96xf32> to vector<8x32xf32>
    %37 = vector.extract_strided_slice %19 {offsets = [0, 64], sizes = [8, 32], strides = [1, 1]} : vector<8x96xf32> to vector<8x32xf32>
    %38 = arith.addf %37, %15 : vector<8x32xf32>
    %39 = arith.mulf %27, %38 : vector<8x32xf32>
    %40 = arith.addf %36, %39 : vector<8x32xf32>
    %41 = math.tanh %40 : vector<8x32xf32>
    %cst_24 = arith.constant 1.000000e+00 : f32
    %42 = vector.broadcast %cst_24 : f32 to vector<8x32xf32>
    %43 = arith.subf %42, %35 : vector<8x32xf32>
    %44 = arith.mulf %43, %41 : vector<8x32xf32>
    %45 = tpu.concatenate %44, %44 in 1 : vector<8x32xf32>, vector<8x32xf32> -> vector<8x64xf32>
    %46 = arith.mulf %45, %0 : vector<8x64xf32>
    %47 = vector.extract_strided_slice %44 {offsets = [0, 0], sizes = [4, 32], strides = [1, 1]} : vector<8x32xf32> to vector<4x32xf32>
    %48 = vector.extract_strided_slice %44 {offsets = [4, 0], sizes = [4, 32], strides = [1, 1]} : vector<8x32xf32> to vector<4x32xf32>
    %c0_25 = arith.constant 0 : index
    %c0_26 = arith.constant 0 : index
    %49 = vector.load %arg12[%c0_25, %c0_26] : memref<32x32xf32, #tpu.memory_space<vmem>>, vector<4x32xf32>
    tpu.vector_store %arg12[%c0_25, %c0_26], %47 {strides = array<i32>} : memref<32x32xf32, #tpu.memory_space<vmem>>, vector<4x32xf32>,
    %c28_27 = arith.constant 28 : index
    %c0_28 = arith.constant 0 : index
    %50 = vector.load %arg13[%c28_27, %c0_28] : memref<32x32xf32, #tpu.memory_space<vmem>>, vector<4x32xf32>
    tpu.vector_store %arg13[%c28_27, %c0_28], %48 {strides = array<i32>} : memref<32x32xf32, #tpu.memory_space<vmem>>, vector<4x32xf32>,
    %c4 = arith.constant 4 : index
    %c0_29 = arith.constant 0 : index
    %51 = vector.load %arg10[%c4, %c0_29] : memref<32x96xf32, #tpu.memory_space<vmem>>, vector<4x96xf32>
    %c24 = arith.constant 24 : index
    %c0_30 = arith.constant 0 : index
    %52 = vector.load %arg11[%c24, %c0_30] : memref<32x96xf32, #tpu.memory_space<vmem>>, vector<4x96xf32>
    %53 = tpu.concatenate %51, %52 in 0 : vector<4x96xf32>, vector<4x96xf32> -> vector<8x96xf32>
    %cst_31 = arith.constant dense<0.000000e+00> : vector<8x96xf32>
    %54 = tpu.matmul %46, %13, %cst_31 {dimension_numbers = #tpu.dot_dimension_numbers<[1], [0], [0], [1], [0, 0, 1, 1], [], []>} : vector<8x64xf32>, vector<64x96xf32>, vector<8x96xf32> -> vector<8x96xf32>
    %55 = vector.extract_strided_slice %53 {offsets = [0, 0], sizes = [8, 32], strides = [1, 1]} : vector<8x96xf32> to vector<8x32xf32>
    %56 = vector.extract_strided_slice %54 {offsets = [0, 0], sizes = [8, 32], strides = [1, 1]} : vector<8x96xf32> to vector<8x32xf32>
    %57 = arith.addf %55, %56 : vector<8x32xf32>
    %58 = arith.negf %57 : vector<8x32xf32>
    %59 = math.exp %58 : vector<8x32xf32>
    %cst_32 = arith.constant 1.000000e+00 : f32
    %60 = vector.broadcast %cst_32 : f32 to vector<8x32xf32>
    %61 = arith.addf %60, %59 : vector<8x32xf32>
    %62 = arith.divf %60, %61 : vector<8x32xf32>
    %63 = vector.extract_strided_slice %53 {offsets = [0, 32], sizes = [8, 32], strides = [1, 1]} : vector<8x96xf32> to vector<8x32xf32>
    %64 = vector.extract_strided_slice %54 {offsets = [0, 32], sizes = [8, 32], strides = [1, 1]} : vector<8x96xf32> to vector<8x32xf32>
    %65 = arith.addf %63, %64 : vector<8x32xf32>
    %66 = arith.negf %65 : vector<8x32xf32>
    %67 = math.exp %66 : vector<8x32xf32>
    %cst_33 = arith.constant 1.000000e+00 : f32
    %68 = vector.broadcast %cst_33 : f32 to vector<8x32xf32>
    %69 = arith.addf %68, %67 : vector<8x32xf32>
    %70 = arith.divf %68, %69 : vector<8x32xf32>
    %71 = vector.extract_strided_slice %53 {offsets = [0, 64], sizes = [8, 32], strides = [1, 1]} : vector<8x96xf32> to vector<8x32xf32>
    %72 = vector.extract_strided_slice %54 {offsets = [0, 64], sizes = [8, 32], strides = [1, 1]} : vector<8x96xf32> to vector<8x32xf32>
    %73 = arith.addf %72, %15 : vector<8x32xf32>
    %74 = arith.mulf %62, %73 : vector<8x32xf32>
    %75 = arith.addf %71, %74 : vector<8x32xf32>
    %76 = math.tanh %75 : vector<8x32xf32>
    %cst_34 = arith.constant 1.000000e+00 : f32
    %77 = vector.broadcast %cst_34 : f32 to vector<8x32xf32>
    %78 = arith.subf %77, %70 : vector<8x32xf32>
    %79 = arith.mulf %78, %76 : vector<8x32xf32>
    %80 = arith.mulf %70, %44 : vector<8x32xf32>
    %81 = arith.addf %79, %80 : vector<8x32xf32>
    %82 = tpu.concatenate %81, %81 in 1 : vector<8x32xf32>, vector<8x32xf32> -> vector<8x64xf32>
    %83 = arith.mulf %82, %0 : vector<8x64xf32>
    %84 = vector.extract_strided_slice %81 {offsets = [0, 0], sizes = [4, 32], strides = [1, 1]} : vector<8x32xf32> to vector<4x32xf32>
    %85 = vector.extract_strided_slice %81 {offsets = [4, 0], sizes = [4, 32], strides = [1, 1]} : vector<8x32xf32> to vector<4x32xf32>
    %c4_35 = arith.constant 4 : index
    %c0_36 = arith.constant 0 : index
    %86 = vector.load %arg12[%c4_35, %c0_36] : memref<32x32xf32, #tpu.memory_space<vmem>>, vector<4x32xf32>
    tpu.vector_store %arg12[%c4_35, %c0_36], %84 {strides = array<i32>} : memref<32x32xf32, #tpu.memory_space<vmem>>, vector<4x32xf32>,
    %c24_37 = arith.constant 24 : index
    %c0_38 = arith.constant 0 : index
    %87 = vector.load %arg13[%c24_37, %c0_38] : memref<32x32xf32, #tpu.memory_space<vmem>>, vector<4x32xf32>
    tpu.vector_store %arg13[%c24_37, %c0_38], %85 {strides = array<i32>} : memref<32x32xf32, #tpu.memory_space<vmem>>, vector<4x32xf32>,
    %c8 = arith.constant 8 : index
    %c0_39 = arith.constant 0 : index
    %88 = vector.load %arg10[%c8, %c0_39] : memref<32x96xf32, #tpu.memory_space<vmem>>, vector<4x96xf32>
    %c20 = arith.constant 20 : index
    %c0_40 = arith.constant 0 : index
    %89 = vector.load %arg11[%c20, %c0_40] : memref<32x96xf32, #tpu.memory_space<vmem>>, vector<4x96xf32>
    %90 = tpu.concatenate %88, %89 in 0 : vector<4x96xf32>, vector<4x96xf32> -> vector<8x96xf32>
    %cst_41 = arith.constant dense<0.000000e+00> : vector<8x96xf32>
    %91 = tpu.matmul %83, %13, %cst_41 {dimension_numbers = #tpu.dot_dimension_numbers<[1], [0], [0], [1], [0, 0, 1, 1], [], []>} : vector<8x64xf32>, vector<64x96xf32>, vector<8x96xf32> -> vector<8x96xf32>
    %92 = vector.extract_strided_slice %90 {offsets = [0, 0], sizes = [8, 32], strides = [1, 1]} : vector<8x96xf32> to vector<8x32xf32>
    %93 = vector.extract_strided_slice %91 {offsets = [0, 0], sizes = [8, 32], strides = [1, 1]} : vector<8x96xf32> to vector<8x32xf32>
    %94 = arith.addf %92, %93 : vector<8x32xf32>
    %95 = arith.negf %94 : vector<8x32xf32>
    %96 = math.exp %95 : vector<8x32xf32>
    %cst_42 = arith.constant 1.000000e+00 : f32
    %97 = vector.broadcast %cst_42 : f32 to vector<8x32xf32>
    %98 = arith.addf %97, %96 : vector<8x32xf32>
    %99 = arith.divf %97, %98 : vector<8x32xf32>
    %100 = vector.extract_strided_slice %90 {offsets = [0, 32], sizes = [8, 32], strides = [1, 1]} : vector<8x96xf32> to vector<8x32xf32>
    %101 = vector.extract_strided_slice %91 {offsets = [0, 32], sizes = [8, 32], strides = [1, 1]} : vector<8x96xf32> to vector<8x32xf32>
    %102 = arith.addf %100, %101 : vector<8x32xf32>
    %103 = arith.negf %102 : vector<8x32xf32>
    %104 = math.exp %103 : vector<8x32xf32>
    %cst_43 = arith.constant 1.000000e+00 : f32
    %105 = vector.broadcast %cst_43 : f32 to vector<8x32xf32>
    %106 = arith.addf %105, %104 : vector<8x32xf32>
    %107 = arith.divf %105, %106 : vector<8x32xf32>
    %108 = vector.extract_strided_slice %90 {offsets = [0, 64], sizes = [8, 32], strides = [1, 1]} : vector<8x96xf32> to vector<8x32xf32>
    %109 = vector.extract_strided_slice %91 {offsets = [0, 64], sizes = [8, 32], strides = [1, 1]} : vector<8x96xf32> to vector<8x32xf32>
    %110 = arith.addf %109, %15 : vector<8x32xf32>
    %111 = arith.mulf %99, %110 : vector<8x32xf32>
    %112 = arith.addf %108, %111 : vector<8x32xf32>
    %113 = math.tanh %112 : vector<8x32xf32>
    %cst_44 = arith.constant 1.000000e+00 : f32
    %114 = vector.broadcast %cst_44 : f32 to vector<8x32xf32>
    %115 = arith.subf %114, %107 : vector<8x32xf32>
    %116 = arith.mulf %115, %113 : vector<8x32xf32>
    %117 = arith.mulf %107, %81 : vector<8x32xf32>
    %118 = arith.addf %116, %117 : vector<8x32xf32>
    %119 = tpu.concatenate %118, %118 in 1 : vector<8x32xf32>, vector<8x32xf32> -> vector<8x64xf32>
    %120 = arith.mulf %119, %0 : vector<8x64xf32>
    %121 = vector.extract_strided_slice %118 {offsets = [0, 0], sizes = [4, 32], strides = [1, 1]} : vector<8x32xf32> to vector<4x32xf32>
    %122 = vector.extract_strided_slice %118 {offsets = [4, 0], sizes = [4, 32], strides = [1, 1]} : vector<8x32xf32> to vector<4x32xf32>
    %c8_45 = arith.constant 8 : index
    %c0_46 = arith.constant 0 : index
    %123 = vector.load %arg12[%c8_45, %c0_46] : memref<32x32xf32, #tpu.memory_space<vmem>>, vector<4x32xf32>
    tpu.vector_store %arg12[%c8_45, %c0_46], %121 {strides = array<i32>} : memref<32x32xf32, #tpu.memory_space<vmem>>, vector<4x32xf32>,
    %c20_47 = arith.constant 20 : index
    %c0_48 = arith.constant 0 : index
    %124 = vector.load %arg13[%c20_47, %c0_48] : memref<32x32xf32, #tpu.memory_space<vmem>>, vector<4x32xf32>
    tpu.vector_store %arg13[%c20_47, %c0_48], %122 {strides = array<i32>} : memref<32x32xf32, #tpu.memory_space<vmem>>, vector<4x32xf32>,
    %c12 = arith.constant 12 : index
    %c0_49 = arith.constant 0 : index
    %125 = vector.load %arg10[%c12, %c0_49] : memref<32x96xf32, #tpu.memory_space<vmem>>, vector<4x96xf32>
    %c16 = arith.constant 16 : index
    %c0_50 = arith.constant 0 : index
    %126 = vector.load %arg11[%c16, %c0_50] : memref<32x96xf32, #tpu.memory_space<vmem>>, vector<4x96xf32>
    %127 = tpu.concatenate %125, %126 in 0 : vector<4x96xf32>, vector<4x96xf32> -> vector<8x96xf32>
    %cst_51 = arith.constant dense<0.000000e+00> : vector<8x96xf32>
    %128 = tpu.matmul %120, %13, %cst_51 {dimension_numbers = #tpu.dot_dimension_numbers<[1], [0], [0], [1], [0, 0, 1, 1], [], []>} : vector<8x64xf32>, vector<64x96xf32>, vector<8x96xf32> -> vector<8x96xf32>
    %129 = vector.extract_strided_slice %127 {offsets = [0, 0], sizes = [8, 32], strides = [1, 1]} : vector<8x96xf32> to vector<8x32xf32>
    %130 = vector.extract_strided_slice %128 {offsets = [0, 0], sizes = [8, 32], strides = [1, 1]} : vector<8x96xf32> to vector<8x32xf32>
    %131 = arith.addf %129, %130 : vector<8x32xf32>
    %132 = arith.negf %131 : vector<8x32xf32>
    %133 = math.exp %132 : vector<8x32xf32>
    %cst_52 = arith.constant 1.000000e+00 : f32
    %134 = vector.broadcast %cst_52 : f32 to vector<8x32xf32>
    %135 = arith.addf %134, %133 : vector<8x32xf32>
    %136 = arith.divf %134, %135 : vector<8x32xf32>
    %137 = vector.extract_strided_slice %127 {offsets = [0, 32], sizes = [8, 32], strides = [1, 1]} : vector<8x96xf32> to vector<8x32xf32>
    %138 = vector.extract_strided_slice %128 {offsets = [0, 32], sizes = [8, 32], strides = [1, 1]} : vector<8x96xf32> to vector<8x32xf32>
    %139 = arith.addf %137, %138 : vector<8x32xf32>
    %140 = arith.negf %139 : vector<8x32xf32>
    %141 = math.exp %140 : vector<8x32xf32>
    %cst_53 = arith.constant 1.000000e+00 : f32
    %142 = vector.broadcast %cst_53 : f32 to vector<8x32xf32>
    %143 = arith.addf %142, %141 : vector<8x32xf32>
    %144 = arith.divf %142, %143 : vector<8x32xf32>
    %145 = vector.extract_strided_slice %127 {offsets = [0, 64], sizes = [8, 32], strides = [1, 1]} : vector<8x96xf32> to vector<8x32xf32>
    %146 = vector.extract_strided_slice %128 {offsets = [0, 64], sizes = [8, 32], strides = [1, 1]} : vector<8x96xf32> to vector<8x32xf32>
    %147 = arith.addf %146, %15 : vector<8x32xf32>
    %148 = arith.mulf %136, %147 : vector<8x32xf32>
    %149 = arith.addf %145, %148 : vector<8x32xf32>
    %150 = math.tanh %149 : vector<8x32xf32>
    %cst_54 = arith.constant 1.000000e+00 : f32
    %151 = vector.broadcast %cst_54 : f32 to vector<8x32xf32>
    %152 = arith.subf %151, %144 : vector<8x32xf32>
    %153 = arith.mulf %152, %150 : vector<8x32xf32>
    %154 = arith.mulf %144, %118 : vector<8x32xf32>
    %155 = arith.addf %153, %154 : vector<8x32xf32>
    %156 = tpu.concatenate %155, %155 in 1 : vector<8x32xf32>, vector<8x32xf32> -> vector<8x64xf32>
    %157 = arith.mulf %156, %0 : vector<8x64xf32>
    %158 = vector.extract_strided_slice %155 {offsets = [0, 0], sizes = [4, 32], strides = [1, 1]} : vector<8x32xf32> to vector<4x32xf32>
    %159 = vector.extract_strided_slice %155 {offsets = [4, 0], sizes = [4, 32], strides = [1, 1]} : vector<8x32xf32> to vector<4x32xf32>
    %c12_55 = arith.constant 12 : index
    %c0_56 = arith.constant 0 : index
    %160 = vector.load %arg12[%c12_55, %c0_56] : memref<32x32xf32, #tpu.memory_space<vmem>>, vector<4x32xf32>
    tpu.vector_store %arg12[%c12_55, %c0_56], %158 {strides = array<i32>} : memref<32x32xf32, #tpu.memory_space<vmem>>, vector<4x32xf32>,
    %c16_57 = arith.constant 16 : index
    %c0_58 = arith.constant 0 : index
    %161 = vector.load %arg13[%c16_57, %c0_58] : memref<32x32xf32, #tpu.memory_space<vmem>>, vector<4x32xf32>
    tpu.vector_store %arg13[%c16_57, %c0_58], %159 {strides = array<i32>} : memref<32x32xf32, #tpu.memory_space<vmem>>, vector<4x32xf32>,
    %c16_59 = arith.constant 16 : index
    %c0_60 = arith.constant 0 : index
    %162 = vector.load %arg10[%c16_59, %c0_60] : memref<32x96xf32, #tpu.memory_space<vmem>>, vector<4x96xf32>
    %c12_61 = arith.constant 12 : index
    %c0_62 = arith.constant 0 : index
    %163 = vector.load %arg11[%c12_61, %c0_62] : memref<32x96xf32, #tpu.memory_space<vmem>>, vector<4x96xf32>
    %164 = tpu.concatenate %162, %163 in 0 : vector<4x96xf32>, vector<4x96xf32> -> vector<8x96xf32>
    %cst_63 = arith.constant dense<0.000000e+00> : vector<8x96xf32>
    %165 = tpu.matmul %157, %13, %cst_63 {dimension_numbers = #tpu.dot_dimension_numbers<[1], [0], [0], [1], [0, 0, 1, 1], [], []>} : vector<8x64xf32>, vector<64x96xf32>, vector<8x96xf32> -> vector<8x96xf32>
    %166 = vector.extract_strided_slice %164 {offsets = [0, 0], sizes = [8, 32], strides = [1, 1]} : vector<8x96xf32> to vector<8x32xf32>
    %167 = vector.extract_strided_slice %165 {offsets = [0, 0], sizes = [8, 32], strides = [1, 1]} : vector<8x96xf32> to vector<8x32xf32>
    %168 = arith.addf %166, %167 : vector<8x32xf32>
    %169 = arith.negf %168 : vector<8x32xf32>
    %170 = math.exp %169 : vector<8x32xf32>
    %cst_64 = arith.constant 1.000000e+00 : f32
    %171 = vector.broadcast %cst_64 : f32 to vector<8x32xf32>
    %172 = arith.addf %171, %170 : vector<8x32xf32>
    %173 = arith.divf %171, %172 : vector<8x32xf32>
    %174 = vector.extract_strided_slice %164 {offsets = [0, 32], sizes = [8, 32], strides = [1, 1]} : vector<8x96xf32> to vector<8x32xf32>
    %175 = vector.extract_strided_slice %165 {offsets = [0, 32], sizes = [8, 32], strides = [1, 1]} : vector<8x96xf32> to vector<8x32xf32>
    %176 = arith.addf %174, %175 : vector<8x32xf32>
    %177 = arith.negf %176 : vector<8x32xf32>
    %178 = math.exp %177 : vector<8x32xf32>
    %cst_65 = arith.constant 1.000000e+00 : f32
    %179 = vector.broadcast %cst_65 : f32 to vector<8x32xf32>
    %180 = arith.addf %179, %178 : vector<8x32xf32>
    %181 = arith.divf %179, %180 : vector<8x32xf32>
    %182 = vector.extract_strided_slice %164 {offsets = [0, 64], sizes = [8, 32], strides = [1, 1]} : vector<8x96xf32> to vector<8x32xf32>
    %183 = vector.extract_strided_slice %165 {offsets = [0, 64], sizes = [8, 32], strides = [1, 1]} : vector<8x96xf32> to vector<8x32xf32>
    %184 = arith.addf %183, %15 : vector<8x32xf32>
    %185 = arith.mulf %173, %184 : vector<8x32xf32>
    %186 = arith.addf %182, %185 : vector<8x32xf32>
    %187 = math.tanh %186 : vector<8x32xf32>
    %cst_66 = arith.constant 1.000000e+00 : f32
    %188 = vector.broadcast %cst_66 : f32 to vector<8x32xf32>
    %189 = arith.subf %188, %181 : vector<8x32xf32>
    %190 = arith.mulf %189, %187 : vector<8x32xf32>
    %191 = arith.mulf %181, %155 : vector<8x32xf32>
    %192 = arith.addf %190, %191 : vector<8x32xf32>
    %193 = tpu.concatenate %192, %192 in 1 : vector<8x32xf32>, vector<8x32xf32> -> vector<8x64xf32>
    %194 = arith.mulf %193, %0 : vector<8x64xf32>
    %195 = vector.extract_strided_slice %192 {offsets = [0, 0], sizes = [4, 32], strides = [1, 1]} : vector<8x32xf32> to vector<4x32xf32>
    %196 = vector.extract_strided_slice %192 {offsets = [4, 0], sizes = [4, 32], strides = [1, 1]} : vector<8x32xf32> to vector<4x32xf32>
    %c16_67 = arith.constant 16 : index
    %c0_68 = arith.constant 0 : index
    %197 = vector.load %arg12[%c16_67, %c0_68] : memref<32x32xf32, #tpu.memory_space<vmem>>, vector<4x32xf32>
    tpu.vector_store %arg12[%c16_67, %c0_68], %195 {strides = array<i32>} : memref<32x32xf32, #tpu.memory_space<vmem>>, vector<4x32xf32>,
    %c12_69 = arith.constant 12 : index
    %c0_70 = arith.constant 0 : index
    %198 = vector.load %arg13[%c12_69, %c0_70] : memref<32x32xf32, #tpu.memory_space<vmem>>, vector<4x32xf32>
    tpu.vector_store %arg13[%c12_69, %c0_70], %196 {strides = array<i32>} : memref<32x32xf32, #tpu.memory_space<vmem>>, vector<4x32xf32>,
    %c20_71 = arith.constant 20 : index
    %c0_72 = arith.constant 0 : index
    %199 = vector.load %arg10[%c20_71, %c0_72] : memref<32x96xf32, #tpu.memory_space<vmem>>, vector<4x96xf32>
    %c8_73 = arith.constant 8 : index
    %c0_74 = arith.constant 0 : index
    %200 = vector.load %arg11[%c8_73, %c0_74] : memref<32x96xf32, #tpu.memory_space<vmem>>, vector<4x96xf32>
    %201 = tpu.concatenate %199, %200 in 0 : vector<4x96xf32>, vector<4x96xf32> -> vector<8x96xf32>
    %cst_75 = arith.constant dense<0.000000e+00> : vector<8x96xf32>
    %202 = tpu.matmul %194, %13, %cst_75 {dimension_numbers = #tpu.dot_dimension_numbers<[1], [0], [0], [1], [0, 0, 1, 1], [], []>} : vector<8x64xf32>, vector<64x96xf32>, vector<8x96xf32> -> vector<8x96xf32>
    %203 = vector.extract_strided_slice %201 {offsets = [0, 0], sizes = [8, 32], strides = [1, 1]} : vector<8x96xf32> to vector<8x32xf32>
    %204 = vector.extract_strided_slice %202 {offsets = [0, 0], sizes = [8, 32], strides = [1, 1]} : vector<8x96xf32> to vector<8x32xf32>
    %205 = arith.addf %203, %204 : vector<8x32xf32>
    %206 = arith.negf %205 : vector<8x32xf32>
    %207 = math.exp %206 : vector<8x32xf32>
    %cst_76 = arith.constant 1.000000e+00 : f32
    %208 = vector.broadcast %cst_76 : f32 to vector<8x32xf32>
    %209 = arith.addf %208, %207 : vector<8x32xf32>
    %210 = arith.divf %208, %209 : vector<8x32xf32>
    %211 = vector.extract_strided_slice %201 {offsets = [0, 32], sizes = [8, 32], strides = [1, 1]} : vector<8x96xf32> to vector<8x32xf32>
    %212 = vector.extract_strided_slice %202 {offsets = [0, 32], sizes = [8, 32], strides = [1, 1]} : vector<8x96xf32> to vector<8x32xf32>
    %213 = arith.addf %211, %212 : vector<8x32xf32>
    %214 = arith.negf %213 : vector<8x32xf32>
    %215 = math.exp %214 : vector<8x32xf32>
    %cst_77 = arith.constant 1.000000e+00 : f32
    %216 = vector.broadcast %cst_77 : f32 to vector<8x32xf32>
    %217 = arith.addf %216, %215 : vector<8x32xf32>
    %218 = arith.divf %216, %217 : vector<8x32xf32>
    %219 = vector.extract_strided_slice %201 {offsets = [0, 64], sizes = [8, 32], strides = [1, 1]} : vector<8x96xf32> to vector<8x32xf32>
    %220 = vector.extract_strided_slice %202 {offsets = [0, 64], sizes = [8, 32], strides = [1, 1]} : vector<8x96xf32> to vector<8x32xf32>
    %221 = arith.addf %220, %15 : vector<8x32xf32>
    %222 = arith.mulf %210, %221 : vector<8x32xf32>
    %223 = arith.addf %219, %222 : vector<8x32xf32>
    %224 = math.tanh %223 : vector<8x32xf32>
    %cst_78 = arith.constant 1.000000e+00 : f32
    %225 = vector.broadcast %cst_78 : f32 to vector<8x32xf32>
    %226 = arith.subf %225, %218 : vector<8x32xf32>
    %227 = arith.mulf %226, %224 : vector<8x32xf32>
    %228 = arith.mulf %218, %192 : vector<8x32xf32>
    %229 = arith.addf %227, %228 : vector<8x32xf32>
    %230 = tpu.concatenate %229, %229 in 1 : vector<8x32xf32>, vector<8x32xf32> -> vector<8x64xf32>
    %231 = arith.mulf %230, %0 : vector<8x64xf32>
    %232 = vector.extract_strided_slice %229 {offsets = [0, 0], sizes = [4, 32], strides = [1, 1]} : vector<8x32xf32> to vector<4x32xf32>
    %233 = vector.extract_strided_slice %229 {offsets = [4, 0], sizes = [4, 32], strides = [1, 1]} : vector<8x32xf32> to vector<4x32xf32>
    %c20_79 = arith.constant 20 : index
    %c0_80 = arith.constant 0 : index
    %234 = vector.load %arg12[%c20_79, %c0_80] : memref<32x32xf32, #tpu.memory_space<vmem>>, vector<4x32xf32>
    tpu.vector_store %arg12[%c20_79, %c0_80], %232 {strides = array<i32>} : memref<32x32xf32, #tpu.memory_space<vmem>>, vector<4x32xf32>,
    %c8_81 = arith.constant 8 : index
    %c0_82 = arith.constant 0 : index
    %235 = vector.load %arg13[%c8_81, %c0_82] : memref<32x32xf32, #tpu.memory_space<vmem>>, vector<4x32xf32>
    tpu.vector_store %arg13[%c8_81, %c0_82], %233 {strides = array<i32>} : memref<32x32xf32, #tpu.memory_space<vmem>>, vector<4x32xf32>,
    %c24_83 = arith.constant 24 : index
    %c0_84 = arith.constant 0 : index
    %236 = vector.load %arg10[%c24_83, %c0_84] : memref<32x96xf32, #tpu.memory_space<vmem>>, vector<4x96xf32>
    %c4_85 = arith.constant 4 : index
    %c0_86 = arith.constant 0 : index
    %237 = vector.load %arg11[%c4_85, %c0_86] : memref<32x96xf32, #tpu.memory_space<vmem>>, vector<4x96xf32>
    %238 = tpu.concatenate %236, %237 in 0 : vector<4x96xf32>, vector<4x96xf32> -> vector<8x96xf32>
    %cst_87 = arith.constant dense<0.000000e+00> : vector<8x96xf32>
    %239 = tpu.matmul %231, %13, %cst_87 {dimension_numbers = #tpu.dot_dimension_numbers<[1], [0], [0], [1], [0, 0, 1, 1], [], []>} : vector<8x64xf32>, vector<64x96xf32>, vector<8x96xf32> -> vector<8x96xf32>
    %240 = vector.extract_strided_slice %238 {offsets = [0, 0], sizes = [8, 32], strides = [1, 1]} : vector<8x96xf32> to vector<8x32xf32>
    %241 = vector.extract_strided_slice %239 {offsets = [0, 0], sizes = [8, 32], strides = [1, 1]} : vector<8x96xf32> to vector<8x32xf32>
    %242 = arith.addf %240, %241 : vector<8x32xf32>
    %243 = arith.negf %242 : vector<8x32xf32>
    %244 = math.exp %243 : vector<8x32xf32>
    %cst_88 = arith.constant 1.000000e+00 : f32
    %245 = vector.broadcast %cst_88 : f32 to vector<8x32xf32>
    %246 = arith.addf %245, %244 : vector<8x32xf32>
    %247 = arith.divf %245, %246 : vector<8x32xf32>
    %248 = vector.extract_strided_slice %238 {offsets = [0, 32], sizes = [8, 32], strides = [1, 1]} : vector<8x96xf32> to vector<8x32xf32>
    %249 = vector.extract_strided_slice %239 {offsets = [0, 32], sizes = [8, 32], strides = [1, 1]} : vector<8x96xf32> to vector<8x32xf32>
    %250 = arith.addf %248, %249 : vector<8x32xf32>
    %251 = arith.negf %250 : vector<8x32xf32>
    %252 = math.exp %251 : vector<8x32xf32>
    %cst_89 = arith.constant 1.000000e+00 : f32
    %253 = vector.broadcast %cst_89 : f32 to vector<8x32xf32>
    %254 = arith.addf %253, %252 : vector<8x32xf32>
    %255 = arith.divf %253, %254 : vector<8x32xf32>
    %256 = vector.extract_strided_slice %238 {offsets = [0, 64], sizes = [8, 32], strides = [1, 1]} : vector<8x96xf32> to vector<8x32xf32>
    %257 = vector.extract_strided_slice %239 {offsets = [0, 64], sizes = [8, 32], strides = [1, 1]} : vector<8x96xf32> to vector<8x32xf32>
    %258 = arith.addf %257, %15 : vector<8x32xf32>
    %259 = arith.mulf %247, %258 : vector<8x32xf32>
    %260 = arith.addf %256, %259 : vector<8x32xf32>
    %261 = math.tanh %260 : vector<8x32xf32>
    %cst_90 = arith.constant 1.000000e+00 : f32
    %262 = vector.broadcast %cst_90 : f32 to vector<8x32xf32>
    %263 = arith.subf %262, %255 : vector<8x32xf32>
    %264 = arith.mulf %263, %261 : vector<8x32xf32>
    %265 = arith.mulf %255, %229 : vector<8x32xf32>
    %266 = arith.addf %264, %265 : vector<8x32xf32>
    %267 = tpu.concatenate %266, %266 in 1 : vector<8x32xf32>, vector<8x32xf32> -> vector<8x64xf32>
    %268 = arith.mulf %267, %0 : vector<8x64xf32>
    %269 = vector.extract_strided_slice %266 {offsets = [0, 0], sizes = [4, 32], strides = [1, 1]} : vector<8x32xf32> to vector<4x32xf32>
    %270 = vector.extract_strided_slice %266 {offsets = [4, 0], sizes = [4, 32], strides = [1, 1]} : vector<8x32xf32> to vector<4x32xf32>
    %c24_91 = arith.constant 24 : index
    %c0_92 = arith.constant 0 : index
    %271 = vector.load %arg12[%c24_91, %c0_92] : memref<32x32xf32, #tpu.memory_space<vmem>>, vector<4x32xf32>
    tpu.vector_store %arg12[%c24_91, %c0_92], %269 {strides = array<i32>} : memref<32x32xf32, #tpu.memory_space<vmem>>, vector<4x32xf32>,
    %c4_93 = arith.constant 4 : index
    %c0_94 = arith.constant 0 : index
    %272 = vector.load %arg13[%c4_93, %c0_94] : memref<32x32xf32, #tpu.memory_space<vmem>>, vector<4x32xf32>
    tpu.vector_store %arg13[%c4_93, %c0_94], %270 {strides = array<i32>} : memref<32x32xf32, #tpu.memory_space<vmem>>, vector<4x32xf32>,
    %c28_95 = arith.constant 28 : index
    %c0_96 = arith.constant 0 : index
    %273 = vector.load %arg10[%c28_95, %c0_96] : memref<32x96xf32, #tpu.memory_space<vmem>>, vector<4x96xf32>
    %c0_97 = arith.constant 0 : index
    %c0_98 = arith.constant 0 : index
    %274 = vector.load %arg11[%c0_97, %c0_98] : memref<32x96xf32, #tpu.memory_space<vmem>>, vector<4x96xf32>
    %275 = tpu.concatenate %273, %274 in 0 : vector<4x96xf32>, vector<4x96xf32> -> vector<8x96xf32>
    %cst_99 = arith.constant dense<0.000000e+00> : vector<8x96xf32>
    %276 = tpu.matmul %268, %13, %cst_99 {dimension_numbers = #tpu.dot_dimension_numbers<[1], [0], [0], [1], [0, 0, 1, 1], [], []>} : vector<8x64xf32>, vector<64x96xf32>, vector<8x96xf32> -> vector<8x96xf32>
    %277 = vector.extract_strided_slice %275 {offsets = [0, 0], sizes = [8, 32], strides = [1, 1]} : vector<8x96xf32> to vector<8x32xf32>
    %278 = vector.extract_strided_slice %276 {offsets = [0, 0], sizes = [8, 32], strides = [1, 1]} : vector<8x96xf32> to vector<8x32xf32>
    %279 = arith.addf %277, %278 : vector<8x32xf32>
    %280 = arith.negf %279 : vector<8x32xf32>
    %281 = math.exp %280 : vector<8x32xf32>
    %cst_100 = arith.constant 1.000000e+00 : f32
    %282 = vector.broadcast %cst_100 : f32 to vector<8x32xf32>
    %283 = arith.addf %282, %281 : vector<8x32xf32>
    %284 = arith.divf %282, %283 : vector<8x32xf32>
    %285 = vector.extract_strided_slice %275 {offsets = [0, 32], sizes = [8, 32], strides = [1, 1]} : vector<8x96xf32> to vector<8x32xf32>
    %286 = vector.extract_strided_slice %276 {offsets = [0, 32], sizes = [8, 32], strides = [1, 1]} : vector<8x96xf32> to vector<8x32xf32>
    %287 = arith.addf %285, %286 : vector<8x32xf32>
    %288 = arith.negf %287 : vector<8x32xf32>
    %289 = math.exp %288 : vector<8x32xf32>
    %cst_101 = arith.constant 1.000000e+00 : f32
    %290 = vector.broadcast %cst_101 : f32 to vector<8x32xf32>
    %291 = arith.addf %290, %289 : vector<8x32xf32>
    %292 = arith.divf %290, %291 : vector<8x32xf32>
    %293 = vector.extract_strided_slice %275 {offsets = [0, 64], sizes = [8, 32], strides = [1, 1]} : vector<8x96xf32> to vector<8x32xf32>
    %294 = vector.extract_strided_slice %276 {offsets = [0, 64], sizes = [8, 32], strides = [1, 1]} : vector<8x96xf32> to vector<8x32xf32>
    %295 = arith.addf %294, %15 : vector<8x32xf32>
    %296 = arith.mulf %284, %295 : vector<8x32xf32>
    %297 = arith.addf %293, %296 : vector<8x32xf32>
    %298 = math.tanh %297 : vector<8x32xf32>
    %cst_102 = arith.constant 1.000000e+00 : f32
    %299 = vector.broadcast %cst_102 : f32 to vector<8x32xf32>
    %300 = arith.subf %299, %292 : vector<8x32xf32>
    %301 = arith.mulf %300, %298 : vector<8x32xf32>
    %302 = arith.mulf %292, %266 : vector<8x32xf32>
    %303 = arith.addf %301, %302 : vector<8x32xf32>
    %304 = vector.extract_strided_slice %303 {offsets = [0, 0], sizes = [4, 32], strides = [1, 1]} : vector<8x32xf32> to vector<4x32xf32>
    %305 = vector.extract_strided_slice %303 {offsets = [4, 0], sizes = [4, 32], strides = [1, 1]} : vector<8x32xf32> to vector<4x32xf32>
    %c28_103 = arith.constant 28 : index
    %c0_104 = arith.constant 0 : index
    %306 = vector.load %arg12[%c28_103, %c0_104] : memref<32x32xf32, #tpu.memory_space<vmem>>, vector<4x32xf32>
    tpu.vector_store %arg12[%c28_103, %c0_104], %304 {strides = array<i32>} : memref<32x32xf32, #tpu.memory_space<vmem>>, vector<4x32xf32>,
    %c0_105 = arith.constant 0 : index
    %c0_106 = arith.constant 0 : index
    %307 = vector.load %arg13[%c0_105, %c0_106] : memref<32x32xf32, #tpu.memory_space<vmem>>, vector<4x32xf32>
    tpu.vector_store %arg13[%c0_105, %c0_106], %305 {strides = array<i32>} : memref<32x32xf32, #tpu.memory_space<vmem>>, vector<4x32xf32>,
    %c0_107 = arith.constant 0 : index
    %c0_108 = arith.constant 0 : index
    %308 = vector.load %arg12[%c0_107, %c0_108] : memref<32x32xf32, #tpu.memory_space<vmem>>, vector<32x32xf32>
    %c0_109 = arith.constant 0 : index
    %c0_110 = arith.constant 0 : index
    %c0_111 = arith.constant 0 : index
    %309 = vector.load %arg2[%c0_109, %c0_110, %c0_111] : memref<2x32x192xf32, #tpu.memory_space<vmem>>, vector<1x32x192xf32>
    %310 = vector.shape_cast %309 : vector<1x32x192xf32> to vector<32x192xf32>
    %cst_112 = arith.constant dense<0.000000e+00> : vector<32x192xf32>
    %311 = tpu.matmul %308, %310, %cst_112 {dimension_numbers = #tpu.dot_dimension_numbers<[1], [0], [0], [1], [0, 0, 1, 1], [], []>} : vector<32x32xf32>, vector<32x192xf32>, vector<32x192xf32> -> vector<32x192xf32>
    %c0_113 = arith.constant 0 : index
    %c0_114 = arith.constant 0 : index
    %312 = vector.load %arg13[%c0_113, %c0_114] : memref<32x32xf32, #tpu.memory_space<vmem>>, vector<32x32xf32>
    %c1 = arith.constant 1 : index
    %c0_115 = arith.constant 0 : index
    %c0_116 = arith.constant 0 : index
    %313 = vector.load %arg2[%c1, %c0_115, %c0_116] : memref<2x32x192xf32, #tpu.memory_space<vmem>>, vector<1x32x192xf32>
    %314 = vector.shape_cast %313 : vector<1x32x192xf32> to vector<32x192xf32>
    %cst_117 = arith.constant dense<0.000000e+00> : vector<32x192xf32>
    %315 = tpu.matmul %312, %314, %cst_117 {dimension_numbers = #tpu.dot_dimension_numbers<[1], [0], [0], [1], [0, 0, 1, 1], [], []>} : vector<32x32xf32>, vector<32x192xf32>, vector<32x192xf32> -> vector<32x192xf32>
    %316 = arith.addf %311, %315 : vector<32x192xf32>
    %c1_118 = arith.constant 1 : index
    %c0_119 = arith.constant 0 : index
    %c0_120 = arith.constant 0 : index
    %317 = vector.load %arg4[%c1_118, %c0_119, %c0_120] : memref<2x1x192xf32, #tpu.memory_space<vmem>>, vector<1x1x192xf32>
    %318 = vector.shape_cast %317 : vector<1x1x192xf32> to vector<1x192xf32>
    %319 = vector.broadcast %318 : vector<1x192xf32> to vector<32x192xf32>
    %320 = arith.addf %316, %319 : vector<32x192xf32>
    %321 = vector.extract_strided_slice %320 {offsets = [0, 0], sizes = [32, 96], strides = [1, 1]} : vector<32x192xf32> to vector<32x96xf32>
    %c0_121 = arith.constant 0 : index
    %c0_122 = arith.constant 0 : index
    %322 = vector.load %arg10[%c0_121, %c0_122] : memref<32x96xf32, #tpu.memory_space<vmem>>, vector<32x96xf32>
    tpu.vector_store %arg10[%c0_121, %c0_122], %321 {strides = array<i32>} : memref<32x96xf32, #tpu.memory_space<vmem>>, vector<32x96xf32>,
    %323 = vector.extract_strided_slice %320 {offsets = [0, 96], sizes = [32, 96], strides = [1, 1]} : vector<32x192xf32> to vector<32x96xf32>
    %c0_123 = arith.constant 0 : index
    %c0_124 = arith.constant 0 : index
    %324 = vector.load %arg11[%c0_123, %c0_124] : memref<32x96xf32, #tpu.memory_space<vmem>>, vector<32x96xf32>
    tpu.vector_store %arg11[%c0_123, %c0_124], %323 {strides = array<i32>} : memref<32x96xf32, #tpu.memory_space<vmem>>, vector<32x96xf32>,
    %c1_125 = arith.constant 1 : index
    %c0_126 = arith.constant 0 : index
    %c0_127 = arith.constant 0 : index
    %325 = vector.load %arg3[%c1_125, %c0_126, %c0_127] : memref<2x64x96xf32, #tpu.memory_space<vmem>>, vector<1x64x96xf32>
    %326 = vector.shape_cast %325 : vector<1x64x96xf32> to vector<64x96xf32>
    %c1_128 = arith.constant 1 : index
    %c0_129 = arith.constant 0 : index
    %c0_130 = arith.constant 0 : index
    %327 = vector.load %arg5[%c1_128, %c0_129, %c0_130] : memref<2x8x32xf32, #tpu.memory_space<vmem>>, vector<1x8x32xf32>
    %328 = vector.shape_cast %327 : vector<1x8x32xf32> to vector<8x32xf32>
    %c0_131 = arith.constant 0 : index
    %c0_132 = arith.constant 0 : index
    %329 = vector.load %arg10[%c0_131, %c0_132] : memref<32x96xf32, #tpu.memory_space<vmem>>, vector<4x96xf32>
    %c28_133 = arith.constant 28 : index
    %c0_134 = arith.constant 0 : index
    %330 = vector.load %arg11[%c28_133, %c0_134] : memref<32x96xf32, #tpu.memory_space<vmem>>, vector<4x96xf32>
    %331 = tpu.concatenate %329, %330 in 0 : vector<4x96xf32>, vector<4x96xf32> -> vector<8x96xf32>
    %cst_135 = arith.constant 0.000000e+00 : f32
    %332 = vector.broadcast %cst_135 : f32 to vector<8x96xf32>
    %333 = vector.extract_strided_slice %331 {offsets = [0, 0], sizes = [8, 32], strides = [1, 1]} : vector<8x96xf32> to vector<8x32xf32>
    %334 = vector.extract_strided_slice %332 {offsets = [0, 0], sizes = [8, 32], strides = [1, 1]} : vector<8x96xf32> to vector<8x32xf32>
    %335 = arith.addf %333, %334 : vector<8x32xf32>
    %336 = arith.negf %335 : vector<8x32xf32>
    %337 = math.exp %336 : vector<8x32xf32>
    %cst_136 = arith.constant 1.000000e+00 : f32
    %338 = vector.broadcast %cst_136 : f32 to vector<8x32xf32>
    %339 = arith.addf %338, %337 : vector<8x32xf32>
    %340 = arith.divf %338, %339 : vector<8x32xf32>
    %341 = vector.extract_strided_slice %331 {offsets = [0, 32], sizes = [8, 32], strides = [1, 1]} : vector<8x96xf32> to vector<8x32xf32>
    %342 = vector.extract_strided_slice %332 {offsets = [0, 32], sizes = [8, 32], strides = [1, 1]} : vector<8x96xf32> to vector<8x32xf32>
    %343 = arith.addf %341, %342 : vector<8x32xf32>
    %344 = arith.negf %343 : vector<8x32xf32>
    %345 = math.exp %344 : vector<8x32xf32>
    %cst_137 = arith.constant 1.000000e+00 : f32
    %346 = vector.broadcast %cst_137 : f32 to vector<8x32xf32>
    %347 = arith.addf %346, %345 : vector<8x32xf32>
    %348 = arith.divf %346, %347 : vector<8x32xf32>
    %349 = vector.extract_strided_slice %331 {offsets = [0, 64], sizes = [8, 32], strides = [1, 1]} : vector<8x96xf32> to vector<8x32xf32>
    %350 = vector.extract_strided_slice %332 {offsets = [0, 64], sizes = [8, 32], strides = [1, 1]} : vector<8x96xf32> to vector<8x32xf32>
    %351 = arith.addf %350, %328 : vector<8x32xf32>
    %352 = arith.mulf %340, %351 : vector<8x32xf32>
    %353 = arith.addf %349, %352 : vector<8x32xf32>
    %354 = math.tanh %353 : vector<8x32xf32>
    %cst_138 = arith.constant 1.000000e+00 : f32
    %355 = vector.broadcast %cst_138 : f32 to vector<8x32xf32>
    %356 = arith.subf %355, %348 : vector<8x32xf32>
    %357 = arith.mulf %356, %354 : vector<8x32xf32>
    %358 = tpu.concatenate %357, %357 in 1 : vector<8x32xf32>, vector<8x32xf32> -> vector<8x64xf32>
    %359 = arith.mulf %358, %0 : vector<8x64xf32>
    %360 = vector.extract_strided_slice %357 {offsets = [0, 0], sizes = [4, 32], strides = [1, 1]} : vector<8x32xf32> to vector<4x32xf32>
    %361 = vector.extract_strided_slice %357 {offsets = [4, 0], sizes = [4, 32], strides = [1, 1]} : vector<8x32xf32> to vector<4x32xf32>
    %cst_139 = arith.constant dense<0xFF800000> : vector<32xf32>
    %362 = vector.multi_reduction <maximumf>, %360, %cst_139 [0] : vector<4x32xf32> to vector<32xf32>
    %363 = vector.shape_cast %362 : vector<32xf32> to vector<1x32xf32>
    %c0_140 = arith.constant 0 : index
    %c0_141 = arith.constant 0 : index
    %364 = vector.load %arg14[%c0_140, %c0_141] : memref<8x32xf32, #tpu.memory_space<vmem>>, vector<1x32xf32>
    tpu.vector_store %arg14[%c0_140, %c0_141], %363 {strides = array<i32>} : memref<8x32xf32, #tpu.memory_space<vmem>>, vector<1x32xf32>,
    %cst_142 = arith.constant dense<0xFF800000> : vector<32xf32>
    %365 = vector.multi_reduction <maximumf>, %361, %cst_142 [0] : vector<4x32xf32> to vector<32xf32>
    %366 = vector.shape_cast %365 : vector<32xf32> to vector<1x32xf32>
    %c7 = arith.constant 7 : index
    %c0_143 = arith.constant 0 : index
    %367 = vector.load %arg15[%c7, %c0_143] : memref<8x32xf32, #tpu.memory_space<vmem>>, vector<1x32xf32>
    tpu.vector_store %arg15[%c7, %c0_143], %366 {strides = array<i32>} : memref<8x32xf32, #tpu.memory_space<vmem>>, vector<1x32xf32>,
    %c4_144 = arith.constant 4 : index
    %c0_145 = arith.constant 0 : index
    %368 = vector.load %arg10[%c4_144, %c0_145] : memref<32x96xf32, #tpu.memory_space<vmem>>, vector<4x96xf32>
    %c24_146 = arith.constant 24 : index
    %c0_147 = arith.constant 0 : index
    %369 = vector.load %arg11[%c24_146, %c0_147] : memref<32x96xf32, #tpu.memory_space<vmem>>, vector<4x96xf32>
    %370 = tpu.concatenate %368, %369 in 0 : vector<4x96xf32>, vector<4x96xf32> -> vector<8x96xf32>
    %cst_148 = arith.constant dense<0.000000e+00> : vector<8x96xf32>
    %371 = tpu.matmul %359, %326, %cst_148 {dimension_numbers = #tpu.dot_dimension_numbers<[1], [0], [0], [1], [0, 0, 1, 1], [], []>} : vector<8x64xf32>, vector<64x96xf32>, vector<8x96xf32> -> vector<8x96xf32>
    %372 = vector.extract_strided_slice %370 {offsets = [0, 0], sizes = [8, 32], strides = [1, 1]} : vector<8x96xf32> to vector<8x32xf32>
    %373 = vector.extract_strided_slice %371 {offsets = [0, 0], sizes = [8, 32], strides = [1, 1]} : vector<8x96xf32> to vector<8x32xf32>
    %374 = arith.addf %372, %373 : vector<8x32xf32>
    %375 = arith.negf %374 : vector<8x32xf32>
    %376 = math.exp %375 : vector<8x32xf32>
    %cst_149 = arith.constant 1.000000e+00 : f32
    %377 = vector.broadcast %cst_149 : f32 to vector<8x32xf32>
    %378 = arith.addf %377, %376 : vector<8x32xf32>
    %379 = arith.divf %377, %378 : vector<8x32xf32>
    %380 = vector.extract_strided_slice %370 {offsets = [0, 32], sizes = [8, 32], strides = [1, 1]} : vector<8x96xf32> to vector<8x32xf32>
    %381 = vector.extract_strided_slice %371 {offsets = [0, 32], sizes = [8, 32], strides = [1, 1]} : vector<8x96xf32> to vector<8x32xf32>
    %382 = arith.addf %380, %381 : vector<8x32xf32>
    %383 = arith.negf %382 : vector<8x32xf32>
    %384 = math.exp %383 : vector<8x32xf32>
    %cst_150 = arith.constant 1.000000e+00 : f32
    %385 = vector.broadcast %cst_150 : f32 to vector<8x32xf32>
    %386 = arith.addf %385, %384 : vector<8x32xf32>
    %387 = arith.divf %385, %386 : vector<8x32xf32>
    %388 = vector.extract_strided_slice %370 {offsets = [0, 64], sizes = [8, 32], strides = [1, 1]} : vector<8x96xf32> to vector<8x32xf32>
    %389 = vector.extract_strided_slice %371 {offsets = [0, 64], sizes = [8, 32], strides = [1, 1]} : vector<8x96xf32> to vector<8x32xf32>
    %390 = arith.addf %389, %328 : vector<8x32xf32>
    %391 = arith.mulf %379, %390 : vector<8x32xf32>
    %392 = arith.addf %388, %391 : vector<8x32xf32>
    %393 = math.tanh %392 : vector<8x32xf32>
    %cst_151 = arith.constant 1.000000e+00 : f32
    %394 = vector.broadcast %cst_151 : f32 to vector<8x32xf32>
    %395 = arith.subf %394, %387 : vector<8x32xf32>
    %396 = arith.mulf %395, %393 : vector<8x32xf32>
    %397 = arith.mulf %387, %357 : vector<8x32xf32>
    %398 = arith.addf %396, %397 : vector<8x32xf32>
    %399 = tpu.concatenate %398, %398 in 1 : vector<8x32xf32>, vector<8x32xf32> -> vector<8x64xf32>
    %400 = arith.mulf %399, %0 : vector<8x64xf32>
    %401 = vector.extract_strided_slice %398 {offsets = [0, 0], sizes = [4, 32], strides = [1, 1]} : vector<8x32xf32> to vector<4x32xf32>
    %402 = vector.extract_strided_slice %398 {offsets = [4, 0], sizes = [4, 32], strides = [1, 1]} : vector<8x32xf32> to vector<4x32xf32>
    %cst_152 = arith.constant dense<0xFF800000> : vector<32xf32>
    %403 = vector.multi_reduction <maximumf>, %401, %cst_152 [0] : vector<4x32xf32> to vector<32xf32>
    %404 = vector.shape_cast %403 : vector<32xf32> to vector<1x32xf32>
    %c1_153 = arith.constant 1 : index
    %c0_154 = arith.constant 0 : index
    %405 = vector.load %arg14[%c1_153, %c0_154] : memref<8x32xf32, #tpu.memory_space<vmem>>, vector<1x32xf32>
    tpu.vector_store %arg14[%c1_153, %c0_154], %404 {strides = array<i32>} : memref<8x32xf32, #tpu.memory_space<vmem>>, vector<1x32xf32>,
    %cst_155 = arith.constant dense<0xFF800000> : vector<32xf32>
    %406 = vector.multi_reduction <maximumf>, %402, %cst_155 [0] : vector<4x32xf32> to vector<32xf32>
    %407 = vector.shape_cast %406 : vector<32xf32> to vector<1x32xf32>
    %c6 = arith.constant 6 : index
    %c0_156 = arith.constant 0 : index
    %408 = vector.load %arg15[%c6, %c0_156] : memref<8x32xf32, #tpu.memory_space<vmem>>, vector<1x32xf32>
    tpu.vector_store %arg15[%c6, %c0_156], %407 {strides = array<i32>} : memref<8x32xf32, #tpu.memory_space<vmem>>, vector<1x32xf32>,
    %c8_157 = arith.constant 8 : index
    %c0_158 = arith.constant 0 : index
    %409 = vector.load %arg10[%c8_157, %c0_158] : memref<32x96xf32, #tpu.memory_space<vmem>>, vector<4x96xf32>
    %c20_159 = arith.constant 20 : index
    %c0_160 = arith.constant 0 : index
    %410 = vector.load %arg11[%c20_159, %c0_160] : memref<32x96xf32, #tpu.memory_space<vmem>>, vector<4x96xf32>
    %411 = tpu.concatenate %409, %410 in 0 : vector<4x96xf32>, vector<4x96xf32> -> vector<8x96xf32>
    %cst_161 = arith.constant dense<0.000000e+00> : vector<8x96xf32>
    %412 = tpu.matmul %400, %326, %cst_161 {dimension_numbers = #tpu.dot_dimension_numbers<[1], [0], [0], [1], [0, 0, 1, 1], [], []>} : vector<8x64xf32>, vector<64x96xf32>, vector<8x96xf32> -> vector<8x96xf32>
    %413 = vector.extract_strided_slice %411 {offsets = [0, 0], sizes = [8, 32], strides = [1, 1]} : vector<8x96xf32> to vector<8x32xf32>
    %414 = vector.extract_strided_slice %412 {offsets = [0, 0], sizes = [8, 32], strides = [1, 1]} : vector<8x96xf32> to vector<8x32xf32>
    %415 = arith.addf %413, %414 : vector<8x32xf32>
    %416 = arith.negf %415 : vector<8x32xf32>
    %417 = math.exp %416 : vector<8x32xf32>
    %cst_162 = arith.constant 1.000000e+00 : f32
    %418 = vector.broadcast %cst_162 : f32 to vector<8x32xf32>
    %419 = arith.addf %418, %417 : vector<8x32xf32>
    %420 = arith.divf %418, %419 : vector<8x32xf32>
    %421 = vector.extract_strided_slice %411 {offsets = [0, 32], sizes = [8, 32], strides = [1, 1]} : vector<8x96xf32> to vector<8x32xf32>
    %422 = vector.extract_strided_slice %412 {offsets = [0, 32], sizes = [8, 32], strides = [1, 1]} : vector<8x96xf32> to vector<8x32xf32>
    %423 = arith.addf %421, %422 : vector<8x32xf32>
    %424 = arith.negf %423 : vector<8x32xf32>
    %425 = math.exp %424 : vector<8x32xf32>
    %cst_163 = arith.constant 1.000000e+00 : f32
    %426 = vector.broadcast %cst_163 : f32 to vector<8x32xf32>
    %427 = arith.addf %426, %425 : vector<8x32xf32>
    %428 = arith.divf %426, %427 : vector<8x32xf32>
    %429 = vector.extract_strided_slice %411 {offsets = [0, 64], sizes = [8, 32], strides = [1, 1]} : vector<8x96xf32> to vector<8x32xf32>
    %430 = vector.extract_strided_slice %412 {offsets = [0, 64], sizes = [8, 32], strides = [1, 1]} : vector<8x96xf32> to vector<8x32xf32>
    %431 = arith.addf %430, %328 : vector<8x32xf32>
    %432 = arith.mulf %420, %431 : vector<8x32xf32>
    %433 = arith.addf %429, %432 : vector<8x32xf32>
    %434 = math.tanh %433 : vector<8x32xf32>
    %cst_164 = arith.constant 1.000000e+00 : f32
    %435 = vector.broadcast %cst_164 : f32 to vector<8x32xf32>
    %436 = arith.subf %435, %428 : vector<8x32xf32>
    %437 = arith.mulf %436, %434 : vector<8x32xf32>
    %438 = arith.mulf %428, %398 : vector<8x32xf32>
    %439 = arith.addf %437, %438 : vector<8x32xf32>
    %440 = tpu.concatenate %439, %439 in 1 : vector<8x32xf32>, vector<8x32xf32> -> vector<8x64xf32>
    %441 = arith.mulf %440, %0 : vector<8x64xf32>
    %442 = vector.extract_strided_slice %439 {offsets = [0, 0], sizes = [4, 32], strides = [1, 1]} : vector<8x32xf32> to vector<4x32xf32>
    %443 = vector.extract_strided_slice %439 {offsets = [4, 0], sizes = [4, 32], strides = [1, 1]} : vector<8x32xf32> to vector<4x32xf32>
    %cst_165 = arith.constant dense<0xFF800000> : vector<32xf32>
    %444 = vector.multi_reduction <maximumf>, %442, %cst_165 [0] : vector<4x32xf32> to vector<32xf32>
    %445 = vector.shape_cast %444 : vector<32xf32> to vector<1x32xf32>
    %c2 = arith.constant 2 : index
    %c0_166 = arith.constant 0 : index
    %446 = vector.load %arg14[%c2, %c0_166] : memref<8x32xf32, #tpu.memory_space<vmem>>, vector<1x32xf32>
    tpu.vector_store %arg14[%c2, %c0_166], %445 {strides = array<i32>} : memref<8x32xf32, #tpu.memory_space<vmem>>, vector<1x32xf32>,
    %cst_167 = arith.constant dense<0xFF800000> : vector<32xf32>
    %447 = vector.multi_reduction <maximumf>, %443, %cst_167 [0] : vector<4x32xf32> to vector<32xf32>
    %448 = vector.shape_cast %447 : vector<32xf32> to vector<1x32xf32>
    %c5 = arith.constant 5 : index
    %c0_168 = arith.constant 0 : index
    %449 = vector.load %arg15[%c5, %c0_168] : memref<8x32xf32, #tpu.memory_space<vmem>>, vector<1x32xf32>
    tpu.vector_store %arg15[%c5, %c0_168], %448 {strides = array<i32>} : memref<8x32xf32, #tpu.memory_space<vmem>>, vector<1x32xf32>,
    %c12_169 = arith.constant 12 : index
    %c0_170 = arith.constant 0 : index
    %450 = vector.load %arg10[%c12_169, %c0_170] : memref<32x96xf32, #tpu.memory_space<vmem>>, vector<4x96xf32>
    %c16_171 = arith.constant 16 : index
    %c0_172 = arith.constant 0 : index
    %451 = vector.load %arg11[%c16_171, %c0_172] : memref<32x96xf32, #tpu.memory_space<vmem>>, vector<4x96xf32>
    %452 = tpu.concatenate %450, %451 in 0 : vector<4x96xf32>, vector<4x96xf32> -> vector<8x96xf32>
    %cst_173 = arith.constant dense<0.000000e+00> : vector<8x96xf32>
    %453 = tpu.matmul %441, %326, %cst_173 {dimension_numbers = #tpu.dot_dimension_numbers<[1], [0], [0], [1], [0, 0, 1, 1], [], []>} : vector<8x64xf32>, vector<64x96xf32>, vector<8x96xf32> -> vector<8x96xf32>
    %454 = vector.extract_strided_slice %452 {offsets = [0, 0], sizes = [8, 32], strides = [1, 1]} : vector<8x96xf32> to vector<8x32xf32>
    %455 = vector.extract_strided_slice %453 {offsets = [0, 0], sizes = [8, 32], strides = [1, 1]} : vector<8x96xf32> to vector<8x32xf32>
    %456 = arith.addf %454, %455 : vector<8x32xf32>
    %457 = arith.negf %456 : vector<8x32xf32>
    %458 = math.exp %457 : vector<8x32xf32>
    %cst_174 = arith.constant 1.000000e+00 : f32
    %459 = vector.broadcast %cst_174 : f32 to vector<8x32xf32>
    %460 = arith.addf %459, %458 : vector<8x32xf32>
    %461 = arith.divf %459, %460 : vector<8x32xf32>
    %462 = vector.extract_strided_slice %452 {offsets = [0, 32], sizes = [8, 32], strides = [1, 1]} : vector<8x96xf32> to vector<8x32xf32>
    %463 = vector.extract_strided_slice %453 {offsets = [0, 32], sizes = [8, 32], strides = [1, 1]} : vector<8x96xf32> to vector<8x32xf32>
    %464 = arith.addf %462, %463 : vector<8x32xf32>
    %465 = arith.negf %464 : vector<8x32xf32>
    %466 = math.exp %465 : vector<8x32xf32>
    %cst_175 = arith.constant 1.000000e+00 : f32
    %467 = vector.broadcast %cst_175 : f32 to vector<8x32xf32>
    %468 = arith.addf %467, %466 : vector<8x32xf32>
    %469 = arith.divf %467, %468 : vector<8x32xf32>
    %470 = vector.extract_strided_slice %452 {offsets = [0, 64], sizes = [8, 32], strides = [1, 1]} : vector<8x96xf32> to vector<8x32xf32>
    %471 = vector.extract_strided_slice %453 {offsets = [0, 64], sizes = [8, 32], strides = [1, 1]} : vector<8x96xf32> to vector<8x32xf32>
    %472 = arith.addf %471, %328 : vector<8x32xf32>
    %473 = arith.mulf %461, %472 : vector<8x32xf32>
    %474 = arith.addf %470, %473 : vector<8x32xf32>
    %475 = math.tanh %474 : vector<8x32xf32>
    %cst_176 = arith.constant 1.000000e+00 : f32
    %476 = vector.broadcast %cst_176 : f32 to vector<8x32xf32>
    %477 = arith.subf %476, %469 : vector<8x32xf32>
    %478 = arith.mulf %477, %475 : vector<8x32xf32>
    %479 = arith.mulf %469, %439 : vector<8x32xf32>
    %480 = arith.addf %478, %479 : vector<8x32xf32>
    %481 = tpu.concatenate %480, %480 in 1 : vector<8x32xf32>, vector<8x32xf32> -> vector<8x64xf32>
    %482 = arith.mulf %481, %0 : vector<8x64xf32>
    %483 = vector.extract_strided_slice %480 {offsets = [0, 0], sizes = [4, 32], strides = [1, 1]} : vector<8x32xf32> to vector<4x32xf32>
    %484 = vector.extract_strided_slice %480 {offsets = [4, 0], sizes = [4, 32], strides = [1, 1]} : vector<8x32xf32> to vector<4x32xf32>
    %cst_177 = arith.constant dense<0xFF800000> : vector<32xf32>
    %485 = vector.multi_reduction <maximumf>, %483, %cst_177 [0] : vector<4x32xf32> to vector<32xf32>
    %486 = vector.shape_cast %485 : vector<32xf32> to vector<1x32xf32>
    %c3 = arith.constant 3 : index
    %c0_178 = arith.constant 0 : index
    %487 = vector.load %arg14[%c3, %c0_178] : memref<8x32xf32, #tpu.memory_space<vmem>>, vector<1x32xf32>
    tpu.vector_store %arg14[%c3, %c0_178], %486 {strides = array<i32>} : memref<8x32xf32, #tpu.memory_space<vmem>>, vector<1x32xf32>,
    %cst_179 = arith.constant dense<0xFF800000> : vector<32xf32>
    %488 = vector.multi_reduction <maximumf>, %484, %cst_179 [0] : vector<4x32xf32> to vector<32xf32>
    %489 = vector.shape_cast %488 : vector<32xf32> to vector<1x32xf32>
    %c4_180 = arith.constant 4 : index
    %c0_181 = arith.constant 0 : index
    %490 = vector.load %arg15[%c4_180, %c0_181] : memref<8x32xf32, #tpu.memory_space<vmem>>, vector<1x32xf32>
    tpu.vector_store %arg15[%c4_180, %c0_181], %489 {strides = array<i32>} : memref<8x32xf32, #tpu.memory_space<vmem>>, vector<1x32xf32>,
    %c16_182 = arith.constant 16 : index
    %c0_183 = arith.constant 0 : index
    %491 = vector.load %arg10[%c16_182, %c0_183] : memref<32x96xf32, #tpu.memory_space<vmem>>, vector<4x96xf32>
    %c12_184 = arith.constant 12 : index
    %c0_185 = arith.constant 0 : index
    %492 = vector.load %arg11[%c12_184, %c0_185] : memref<32x96xf32, #tpu.memory_space<vmem>>, vector<4x96xf32>
    %493 = tpu.concatenate %491, %492 in 0 : vector<4x96xf32>, vector<4x96xf32> -> vector<8x96xf32>
    %cst_186 = arith.constant dense<0.000000e+00> : vector<8x96xf32>
    %494 = tpu.matmul %482, %326, %cst_186 {dimension_numbers = #tpu.dot_dimension_numbers<[1], [0], [0], [1], [0, 0, 1, 1], [], []>} : vector<8x64xf32>, vector<64x96xf32>, vector<8x96xf32> -> vector<8x96xf32>
    %495 = vector.extract_strided_slice %493 {offsets = [0, 0], sizes = [8, 32], strides = [1, 1]} : vector<8x96xf32> to vector<8x32xf32>
    %496 = vector.extract_strided_slice %494 {offsets = [0, 0], sizes = [8, 32], strides = [1, 1]} : vector<8x96xf32> to vector<8x32xf32>
    %497 = arith.addf %495, %496 : vector<8x32xf32>
    %498 = arith.negf %497 : vector<8x32xf32>
    %499 = math.exp %498 : vector<8x32xf32>
    %cst_187 = arith.constant 1.000000e+00 : f32
    %500 = vector.broadcast %cst_187 : f32 to vector<8x32xf32>
    %501 = arith.addf %500, %499 : vector<8x32xf32>
    %502 = arith.divf %500, %501 : vector<8x32xf32>
    %503 = vector.extract_strided_slice %493 {offsets = [0, 32], sizes = [8, 32], strides = [1, 1]} : vector<8x96xf32> to vector<8x32xf32>
    %504 = vector.extract_strided_slice %494 {offsets = [0, 32], sizes = [8, 32], strides = [1, 1]} : vector<8x96xf32> to vector<8x32xf32>
    %505 = arith.addf %503, %504 : vector<8x32xf32>
    %506 = arith.negf %505 : vector<8x32xf32>
    %507 = math.exp %506 : vector<8x32xf32>
    %cst_188 = arith.constant 1.000000e+00 : f32
    %508 = vector.broadcast %cst_188 : f32 to vector<8x32xf32>
    %509 = arith.addf %508, %507 : vector<8x32xf32>
    %510 = arith.divf %508, %509 : vector<8x32xf32>
    %511 = vector.extract_strided_slice %493 {offsets = [0, 64], sizes = [8, 32], strides = [1, 1]} : vector<8x96xf32> to vector<8x32xf32>
    %512 = vector.extract_strided_slice %494 {offsets = [0, 64], sizes = [8, 32], strides = [1, 1]} : vector<8x96xf32> to vector<8x32xf32>
    %513 = arith.addf %512, %328 : vector<8x32xf32>
    %514 = arith.mulf %502, %513 : vector<8x32xf32>
    %515 = arith.addf %511, %514 : vector<8x32xf32>
    %516 = math.tanh %515 : vector<8x32xf32>
    %cst_189 = arith.constant 1.000000e+00 : f32
    %517 = vector.broadcast %cst_189 : f32 to vector<8x32xf32>
    %518 = arith.subf %517, %510 : vector<8x32xf32>
    %519 = arith.mulf %518, %516 : vector<8x32xf32>
    %520 = arith.mulf %510, %480 : vector<8x32xf32>
    %521 = arith.addf %519, %520 : vector<8x32xf32>
    %522 = tpu.concatenate %521, %521 in 1 : vector<8x32xf32>, vector<8x32xf32> -> vector<8x64xf32>
    %523 = arith.mulf %522, %0 : vector<8x64xf32>
    %524 = vector.extract_strided_slice %521 {offsets = [0, 0], sizes = [4, 32], strides = [1, 1]} : vector<8x32xf32> to vector<4x32xf32>
    %525 = vector.extract_strided_slice %521 {offsets = [4, 0], sizes = [4, 32], strides = [1, 1]} : vector<8x32xf32> to vector<4x32xf32>
    %cst_190 = arith.constant dense<0xFF800000> : vector<32xf32>
    %526 = vector.multi_reduction <maximumf>, %524, %cst_190 [0] : vector<4x32xf32> to vector<32xf32>
    %527 = vector.shape_cast %526 : vector<32xf32> to vector<1x32xf32>
    %c4_191 = arith.constant 4 : index
    %c0_192 = arith.constant 0 : index
    %528 = vector.load %arg14[%c4_191, %c0_192] : memref<8x32xf32, #tpu.memory_space<vmem>>, vector<1x32xf32>
    tpu.vector_store %arg14[%c4_191, %c0_192], %527 {strides = array<i32>} : memref<8x32xf32, #tpu.memory_space<vmem>>, vector<1x32xf32>,
    %cst_193 = arith.constant dense<0xFF800000> : vector<32xf32>
    %529 = vector.multi_reduction <maximumf>, %525, %cst_193 [0] : vector<4x32xf32> to vector<32xf32>
    %530 = vector.shape_cast %529 : vector<32xf32> to vector<1x32xf32>
    %c3_194 = arith.constant 3 : index
    %c0_195 = arith.constant 0 : index
    %531 = vector.load %arg15[%c3_194, %c0_195] : memref<8x32xf32, #tpu.memory_space<vmem>>, vector<1x32xf32>
    tpu.vector_store %arg15[%c3_194, %c0_195], %530 {strides = array<i32>} : memref<8x32xf32, #tpu.memory_space<vmem>>, vector<1x32xf32>,
    %c20_196 = arith.constant 20 : index
    %c0_197 = arith.constant 0 : index
    %532 = vector.load %arg10[%c20_196, %c0_197] : memref<32x96xf32, #tpu.memory_space<vmem>>, vector<4x96xf32>
    %c8_198 = arith.constant 8 : index
    %c0_199 = arith.constant 0 : index
    %533 = vector.load %arg11[%c8_198, %c0_199] : memref<32x96xf32, #tpu.memory_space<vmem>>, vector<4x96xf32>
    %534 = tpu.concatenate %532, %533 in 0 : vector<4x96xf32>, vector<4x96xf32> -> vector<8x96xf32>
    %cst_200 = arith.constant dense<0.000000e+00> : vector<8x96xf32>
    %535 = tpu.matmul %523, %326, %cst_200 {dimension_numbers = #tpu.dot_dimension_numbers<[1], [0], [0], [1], [0, 0, 1, 1], [], []>} : vector<8x64xf32>, vector<64x96xf32>, vector<8x96xf32> -> vector<8x96xf32>
    %536 = vector.extract_strided_slice %534 {offsets = [0, 0], sizes = [8, 32], strides = [1, 1]} : vector<8x96xf32> to vector<8x32xf32>
    %537 = vector.extract_strided_slice %535 {offsets = [0, 0], sizes = [8, 32], strides = [1, 1]} : vector<8x96xf32> to vector<8x32xf32>
    %538 = arith.addf %536, %537 : vector<8x32xf32>
    %539 = arith.negf %538 : vector<8x32xf32>
    %540 = math.exp %539 : vector<8x32xf32>
    %cst_201 = arith.constant 1.000000e+00 : f32
    %541 = vector.broadcast %cst_201 : f32 to vector<8x32xf32>
    %542 = arith.addf %541, %540 : vector<8x32xf32>
    %543 = arith.divf %541, %542 : vector<8x32xf32>
    %544 = vector.extract_strided_slice %534 {offsets = [0, 32], sizes = [8, 32], strides = [1, 1]} : vector<8x96xf32> to vector<8x32xf32>
    %545 = vector.extract_strided_slice %535 {offsets = [0, 32], sizes = [8, 32], strides = [1, 1]} : vector<8x96xf32> to vector<8x32xf32>
    %546 = arith.addf %544, %545 : vector<8x32xf32>
    %547 = arith.negf %546 : vector<8x32xf32>
    %548 = math.exp %547 : vector<8x32xf32>
    %cst_202 = arith.constant 1.000000e+00 : f32
    %549 = vector.broadcast %cst_202 : f32 to vector<8x32xf32>
    %550 = arith.addf %549, %548 : vector<8x32xf32>
    %551 = arith.divf %549, %550 : vector<8x32xf32>
    %552 = vector.extract_strided_slice %534 {offsets = [0, 64], sizes = [8, 32], strides = [1, 1]} : vector<8x96xf32> to vector<8x32xf32>
    %553 = vector.extract_strided_slice %535 {offsets = [0, 64], sizes = [8, 32], strides = [1, 1]} : vector<8x96xf32> to vector<8x32xf32>
    %554 = arith.addf %553, %328 : vector<8x32xf32>
    %555 = arith.mulf %543, %554 : vector<8x32xf32>
    %556 = arith.addf %552, %555 : vector<8x32xf32>
    %557 = math.tanh %556 : vector<8x32xf32>
    %cst_203 = arith.constant 1.000000e+00 : f32
    %558 = vector.broadcast %cst_203 : f32 to vector<8x32xf32>
    %559 = arith.subf %558, %551 : vector<8x32xf32>
    %560 = arith.mulf %559, %557 : vector<8x32xf32>
    %561 = arith.mulf %551, %521 : vector<8x32xf32>
    %562 = arith.addf %560, %561 : vector<8x32xf32>
    %563 = tpu.concatenate %562, %562 in 1 : vector<8x32xf32>, vector<8x32xf32> -> vector<8x64xf32>
    %564 = arith.mulf %563, %0 : vector<8x64xf32>
    %565 = vector.extract_strided_slice %562 {offsets = [0, 0], sizes = [4, 32], strides = [1, 1]} : vector<8x32xf32> to vector<4x32xf32>
    %566 = vector.extract_strided_slice %562 {offsets = [4, 0], sizes = [4, 32], strides = [1, 1]} : vector<8x32xf32> to vector<4x32xf32>
    %cst_204 = arith.constant dense<0xFF800000> : vector<32xf32>
    %567 = vector.multi_reduction <maximumf>, %565, %cst_204 [0] : vector<4x32xf32> to vector<32xf32>
    %568 = vector.shape_cast %567 : vector<32xf32> to vector<1x32xf32>
    %c5_205 = arith.constant 5 : index
    %c0_206 = arith.constant 0 : index
    %569 = vector.load %arg14[%c5_205, %c0_206] : memref<8x32xf32, #tpu.memory_space<vmem>>, vector<1x32xf32>
    tpu.vector_store %arg14[%c5_205, %c0_206], %568 {strides = array<i32>} : memref<8x32xf32, #tpu.memory_space<vmem>>, vector<1x32xf32>,
    %cst_207 = arith.constant dense<0xFF800000> : vector<32xf32>
    %570 = vector.multi_reduction <maximumf>, %566, %cst_207 [0] : vector<4x32xf32> to vector<32xf32>
    %571 = vector.shape_cast %570 : vector<32xf32> to vector<1x32xf32>
    %c2_208 = arith.constant 2 : index
    %c0_209 = arith.constant 0 : index
    %572 = vector.load %arg15[%c2_208, %c0_209] : memref<8x32xf32, #tpu.memory_space<vmem>>, vector<1x32xf32>
    tpu.vector_store %arg15[%c2_208, %c0_209], %571 {strides = array<i32>} : memref<8x32xf32, #tpu.memory_space<vmem>>, vector<1x32xf32>,
    %c24_210 = arith.constant 24 : index
    %c0_211 = arith.constant 0 : index
    %573 = vector.load %arg10[%c24_210, %c0_211] : memref<32x96xf32, #tpu.memory_space<vmem>>, vector<4x96xf32>
    %c4_212 = arith.constant 4 : index
    %c0_213 = arith.constant 0 : index
    %574 = vector.load %arg11[%c4_212, %c0_213] : memref<32x96xf32, #tpu.memory_space<vmem>>, vector<4x96xf32>
    %575 = tpu.concatenate %573, %574 in 0 : vector<4x96xf32>, vector<4x96xf32> -> vector<8x96xf32>
    %cst_214 = arith.constant dense<0.000000e+00> : vector<8x96xf32>
    %576 = tpu.matmul %564, %326, %cst_214 {dimension_numbers = #tpu.dot_dimension_numbers<[1], [0], [0], [1], [0, 0, 1, 1], [], []>} : vector<8x64xf32>, vector<64x96xf32>, vector<8x96xf32> -> vector<8x96xf32>
    %577 = vector.extract_strided_slice %575 {offsets = [0, 0], sizes = [8, 32], strides = [1, 1]} : vector<8x96xf32> to vector<8x32xf32>
    %578 = vector.extract_strided_slice %576 {offsets = [0, 0], sizes = [8, 32], strides = [1, 1]} : vector<8x96xf32> to vector<8x32xf32>
    %579 = arith.addf %577, %578 : vector<8x32xf32>
    %580 = arith.negf %579 : vector<8x32xf32>
    %581 = math.exp %580 : vector<8x32xf32>
    %cst_215 = arith.constant 1.000000e+00 : f32
    %582 = vector.broadcast %cst_215 : f32 to vector<8x32xf32>
    %583 = arith.addf %582, %581 : vector<8x32xf32>
    %584 = arith.divf %582, %583 : vector<8x32xf32>
    %585 = vector.extract_strided_slice %575 {offsets = [0, 32], sizes = [8, 32], strides = [1, 1]} : vector<8x96xf32> to vector<8x32xf32>
    %586 = vector.extract_strided_slice %576 {offsets = [0, 32], sizes = [8, 32], strides = [1, 1]} : vector<8x96xf32> to vector<8x32xf32>
    %587 = arith.addf %585, %586 : vector<8x32xf32>
    %588 = arith.negf %587 : vector<8x32xf32>
    %589 = math.exp %588 : vector<8x32xf32>
    %cst_216 = arith.constant 1.000000e+00 : f32
    %590 = vector.broadcast %cst_216 : f32 to vector<8x32xf32>
    %591 = arith.addf %590, %589 : vector<8x32xf32>
    %592 = arith.divf %590, %591 : vector<8x32xf32>
    %593 = vector.extract_strided_slice %575 {offsets = [0, 64], sizes = [8, 32], strides = [1, 1]} : vector<8x96xf32> to vector<8x32xf32>
    %594 = vector.extract_strided_slice %576 {offsets = [0, 64], sizes = [8, 32], strides = [1, 1]} : vector<8x96xf32> to vector<8x32xf32>
    %595 = arith.addf %594, %328 : vector<8x32xf32>
    %596 = arith.mulf %584, %595 : vector<8x32xf32>
    %597 = arith.addf %593, %596 : vector<8x32xf32>
    %598 = math.tanh %597 : vector<8x32xf32>
    %cst_217 = arith.constant 1.000000e+00 : f32
    %599 = vector.broadcast %cst_217 : f32 to vector<8x32xf32>
    %600 = arith.subf %599, %592 : vector<8x32xf32>
    %601 = arith.mulf %600, %598 : vector<8x32xf32>
    %602 = arith.mulf %592, %562 : vector<8x32xf32>
    %603 = arith.addf %601, %602 : vector<8x32xf32>
    %604 = tpu.concatenate %603, %603 in 1 : vector<8x32xf32>, vector<8x32xf32> -> vector<8x64xf32>
    %605 = arith.mulf %604, %0 : vector<8x64xf32>
    %606 = vector.extract_strided_slice %603 {offsets = [0, 0], sizes = [4, 32], strides = [1, 1]} : vector<8x32xf32> to vector<4x32xf32>
    %607 = vector.extract_strided_slice %603 {offsets = [4, 0], sizes = [4, 32], strides = [1, 1]} : vector<8x32xf32> to vector<4x32xf32>
    %cst_218 = arith.constant dense<0xFF800000> : vector<32xf32>
    %608 = vector.multi_reduction <maximumf>, %606, %cst_218 [0] : vector<4x32xf32> to vector<32xf32>
    %609 = vector.shape_cast %608 : vector<32xf32> to vector<1x32xf32>
    %c6_219 = arith.constant 6 : index
    %c0_220 = arith.constant 0 : index
    %610 = vector.load %arg14[%c6_219, %c0_220] : memref<8x32xf32, #tpu.memory_space<vmem>>, vector<1x32xf32>
    tpu.vector_store %arg14[%c6_219, %c0_220], %609 {strides = array<i32>} : memref<8x32xf32, #tpu.memory_space<vmem>>, vector<1x32xf32>,
    %cst_221 = arith.constant dense<0xFF800000> : vector<32xf32>
    %611 = vector.multi_reduction <maximumf>, %607, %cst_221 [0] : vector<4x32xf32> to vector<32xf32>
    %612 = vector.shape_cast %611 : vector<32xf32> to vector<1x32xf32>
    %c1_222 = arith.constant 1 : index
    %c0_223 = arith.constant 0 : index
    %613 = vector.load %arg15[%c1_222, %c0_223] : memref<8x32xf32, #tpu.memory_space<vmem>>, vector<1x32xf32>
    tpu.vector_store %arg15[%c1_222, %c0_223], %612 {strides = array<i32>} : memref<8x32xf32, #tpu.memory_space<vmem>>, vector<1x32xf32>,
    %c28_224 = arith.constant 28 : index
    %c0_225 = arith.constant 0 : index
    %614 = vector.load %arg10[%c28_224, %c0_225] : memref<32x96xf32, #tpu.memory_space<vmem>>, vector<4x96xf32>
    %c0_226 = arith.constant 0 : index
    %c0_227 = arith.constant 0 : index
    %615 = vector.load %arg11[%c0_226, %c0_227] : memref<32x96xf32, #tpu.memory_space<vmem>>, vector<4x96xf32>
    %616 = tpu.concatenate %614, %615 in 0 : vector<4x96xf32>, vector<4x96xf32> -> vector<8x96xf32>
    %cst_228 = arith.constant dense<0.000000e+00> : vector<8x96xf32>
    %617 = tpu.matmul %605, %326, %cst_228 {dimension_numbers = #tpu.dot_dimension_numbers<[1], [0], [0], [1], [0, 0, 1, 1], [], []>} : vector<8x64xf32>, vector<64x96xf32>, vector<8x96xf32> -> vector<8x96xf32>
    %618 = vector.extract_strided_slice %616 {offsets = [0, 0], sizes = [8, 32], strides = [1, 1]} : vector<8x96xf32> to vector<8x32xf32>
    %619 = vector.extract_strided_slice %617 {offsets = [0, 0], sizes = [8, 32], strides = [1, 1]} : vector<8x96xf32> to vector<8x32xf32>
    %620 = arith.addf %618, %619 : vector<8x32xf32>
    %621 = arith.negf %620 : vector<8x32xf32>
    %622 = math.exp %621 : vector<8x32xf32>
    %cst_229 = arith.constant 1.000000e+00 : f32
    %623 = vector.broadcast %cst_229 : f32 to vector<8x32xf32>
    %624 = arith.addf %623, %622 : vector<8x32xf32>
    %625 = arith.divf %623, %624 : vector<8x32xf32>
    %626 = vector.extract_strided_slice %616 {offsets = [0, 32], sizes = [8, 32], strides = [1, 1]} : vector<8x96xf32> to vector<8x32xf32>
    %627 = vector.extract_strided_slice %617 {offsets = [0, 32], sizes = [8, 32], strides = [1, 1]} : vector<8x96xf32> to vector<8x32xf32>
    %628 = arith.addf %626, %627 : vector<8x32xf32>
    %629 = arith.negf %628 : vector<8x32xf32>
    %630 = math.exp %629 : vector<8x32xf32>
    %cst_230 = arith.constant 1.000000e+00 : f32
    %631 = vector.broadcast %cst_230 : f32 to vector<8x32xf32>
    %632 = arith.addf %631, %630 : vector<8x32xf32>
    %633 = arith.divf %631, %632 : vector<8x32xf32>
    %634 = vector.extract_strided_slice %616 {offsets = [0, 64], sizes = [8, 32], strides = [1, 1]} : vector<8x96xf32> to vector<8x32xf32>
    %635 = vector.extract_strided_slice %617 {offsets = [0, 64], sizes = [8, 32], strides = [1, 1]} : vector<8x96xf32> to vector<8x32xf32>
    %636 = arith.addf %635, %328 : vector<8x32xf32>
    %637 = arith.mulf %625, %636 : vector<8x32xf32>
    %638 = arith.addf %634, %637 : vector<8x32xf32>
    %639 = math.tanh %638 : vector<8x32xf32>
    %cst_231 = arith.constant 1.000000e+00 : f32
    %640 = vector.broadcast %cst_231 : f32 to vector<8x32xf32>
    %641 = arith.subf %640, %633 : vector<8x32xf32>
    %642 = arith.mulf %641, %639 : vector<8x32xf32>
    %643 = arith.mulf %633, %603 : vector<8x32xf32>
    %644 = arith.addf %642, %643 : vector<8x32xf32>
    %645 = vector.extract_strided_slice %644 {offsets = [0, 0], sizes = [4, 32], strides = [1, 1]} : vector<8x32xf32> to vector<4x32xf32>
    %646 = vector.extract_strided_slice %644 {offsets = [4, 0], sizes = [4, 32], strides = [1, 1]} : vector<8x32xf32> to vector<4x32xf32>
    %cst_232 = arith.constant dense<0xFF800000> : vector<32xf32>
    %647 = vector.multi_reduction <maximumf>, %645, %cst_232 [0] : vector<4x32xf32> to vector<32xf32>
    %648 = vector.shape_cast %647 : vector<32xf32> to vector<1x32xf32>
    %c7_233 = arith.constant 7 : index
    %c0_234 = arith.constant 0 : index
    %649 = vector.load %arg14[%c7_233, %c0_234] : memref<8x32xf32, #tpu.memory_space<vmem>>, vector<1x32xf32>
    tpu.vector_store %arg14[%c7_233, %c0_234], %648 {strides = array<i32>} : memref<8x32xf32, #tpu.memory_space<vmem>>, vector<1x32xf32>,
    %cst_235 = arith.constant dense<0xFF800000> : vector<32xf32>
    %650 = vector.multi_reduction <maximumf>, %646, %cst_235 [0] : vector<4x32xf32> to vector<32xf32>
    %651 = vector.shape_cast %650 : vector<32xf32> to vector<1x32xf32>
    %c0_236 = arith.constant 0 : index
    %c0_237 = arith.constant 0 : index
    %652 = vector.load %arg15[%c0_236, %c0_237] : memref<8x32xf32, #tpu.memory_space<vmem>>, vector<1x32xf32>
    tpu.vector_store %arg15[%c0_236, %c0_237], %651 {strides = array<i32>} : memref<8x32xf32, #tpu.memory_space<vmem>>, vector<1x32xf32>,
    %c0_238 = arith.constant 0 : index
    %c0_239 = arith.constant 0 : index
    %653 = vector.load %arg14[%c0_238, %c0_239] : memref<8x32xf32, #tpu.memory_space<vmem>>, vector<8x32xf32>
    %654 = math.tanh %653 : vector<8x32xf32>
    %c0_240 = arith.constant 0 : index
    %c0_241 = arith.constant 0 : index
    %c0_242 = arith.constant 0 : index
    %655 = vector.load %arg7[%c0_240, %c0_241, %c0_242] : memref<2x32x3xf32, #tpu.memory_space<vmem>>, vector<1x32x3xf32>
    %656 = vector.shape_cast %655 : vector<1x32x3xf32> to vector<32x3xf32>
    %cst_243 = arith.constant dense<0.000000e+00> : vector<8x3xf32>
    %657 = tpu.matmul %654, %656, %cst_243 {dimension_numbers = #tpu.dot_dimension_numbers<[1], [0], [0], [1], [0, 0, 1, 1], [], []>} : vector<8x32xf32>, vector<32x3xf32>, vector<8x3xf32> -> vector<8x3xf32>
    %c0_244 = arith.constant 0 : index
    %c0_245 = arith.constant 0 : index
    %658 = vector.load %arg15[%c0_244, %c0_245] : memref<8x32xf32, #tpu.memory_space<vmem>>, vector<8x32xf32>
    %659 = math.tanh %658 : vector<8x32xf32>
    %c1_246 = arith.constant 1 : index
    %c0_247 = arith.constant 0 : index
    %c0_248 = arith.constant 0 : index
    %660 = vector.load %arg7[%c1_246, %c0_247, %c0_248] : memref<2x32x3xf32, #tpu.memory_space<vmem>>, vector<1x32x3xf32>
    %661 = vector.shape_cast %660 : vector<1x32x3xf32> to vector<32x3xf32>
    %cst_249 = arith.constant dense<0.000000e+00> : vector<8x3xf32>
    %662 = tpu.matmul %659, %661, %cst_249 {dimension_numbers = #tpu.dot_dimension_numbers<[1], [0], [0], [1], [0, 0, 1, 1], [], []>} : vector<8x32xf32>, vector<32x3xf32>, vector<8x3xf32> -> vector<8x3xf32>
    %663 = arith.addf %657, %662 : vector<8x3xf32>
    %c0_250 = arith.constant 0 : index
    %c0_251 = arith.constant 0 : index
    %664 = vector.load %arg8[%c0_250, %c0_251] : memref<1x3xf32, #tpu.memory_space<vmem>>, vector<1x3xf32>
    %665 = vector.broadcast %664 : vector<1x3xf32> to vector<8x3xf32>
    %666 = arith.addf %663, %665 : vector<8x3xf32>
    %c0_252 = arith.constant 0 : index
    %c0_253 = arith.constant 0 : index
    %667 = vector.load %arg9[%c0_252, %c0_253] : memref<8x3xf32, #tpu.memory_space<vmem>>, vector<8x3xf32>
    tpu.vector_store %arg9[%c0_252, %c0_253], %666 {strides = array<i32>} : memref<8x3xf32, #tpu.memory_space<vmem>>, vector<8x3xf32>,
    return
  }
}

</mosaic_0001>

<llo_original>
// kernel: bidirectional_gru_forward.1
$region0: #{bidirectional_gru_forward.1}
  #allocation0 [shape = 'u32[]', space=smem, size = 0x4, offset = 0x4, fixed_abs, tag = 'smem constant byte address 0x4 - core index']
  #allocation1 [shape = 'u32[144,128]{1,0:T(1,128)}', space=vmem, size = 0x12000, scoped, tag = 'internal scratch']
  #allocation2 [shape = 'f32[32,96]{1,0:T(8,128)}', space=vmem, size = 0x4000, scoped, tag = 'scratch operand']
  #allocation3 [shape = 'f32[32,96]{1,0:T(8,128)}', space=vmem, size = 0x4000, scoped, tag = 'scratch operand']
  #allocation4 [shape = 'f32[32,32]{1,0:T(8,128)}', space=vmem, size = 0x4000, scoped, tag = 'scratch operand']
  #allocation5 [shape = 'f32[32,32]{1,0:T(8,128)}', space=vmem, size = 0x4000, scoped, tag = 'scratch operand']
  #allocation6 [shape = 'f32[8,32]{1,0:T(8,128)}', space=vmem, size = 0x1000, scoped, tag = 'scratch operand']
  #allocation7 [shape = 'f32[8,32]{1,0:T(8,128)}', space=vmem, size = 0x1000, scoped, tag = 'scratch operand']
  %s0 = inlined_call_operand.vmem [shape: f32[32,16], index: 0, kind: input, shape index: {}]
  %s1 = inlined_call_operand.vmem [shape: f32[16,192], index: 1, kind: input, shape index: {}]
  %s2 = inlined_call_operand.vmem [shape: f32[2,32,192], index: 2, kind: input, shape index: {}]
  %s3 = inlined_call_operand.hbm [shape: f32[2,64,96], index: 3, kind: input, shape index: {}]
  %s4 = inlined_call_operand.hbm [shape: f32[2,1,192], index: 4, kind: input, shape index: {}]
  %s5 = inlined_call_operand.hbm [shape: f32[2,8,32], index: 5, kind: input, shape index: {}]
  %s6 = inlined_call_operand.vmem [shape: f32[8,64], index: 6, kind: input, shape index: {}]
  %s7 = inlined_call_operand.vmem [shape: f32[2,32,3], index: 7, kind: input, shape index: {}]
  %s8 = inlined_call_operand.vmem [shape: f32[1,3], index: 8, kind: input, shape index: {}]
  %s9 = inlined_call_operand.vmem [shape: f32[8,3], index: 9, kind: output, shape index: {}]
  %s10 = sld [smem:[#allocation0]]
  $region58: #{bidirectional_gru_forward.1} parent=0
    _
  %s12 = ssub.s32 1, %s10
  %s13 = scalar_select 0, %s12, %s10
  $region1: #{bidirectional_gru_forward.1} parent=0
    #allocation8 [shape = 'u8[65536]{0}', space=vmem, size = 0x10000, scoped, tag = 'input window, operand 3, single buffered']
    #allocation9 [shape = 's32[1]{0}', space=sflag, size = 0x4, scoped, tag = 'scoped memory for bidirectional_gru_forward.1']
    #allocation10 [shape = 'u8[2048]{0}', space=vmem, size = 0x800, scoped, tag = 'input window, operand 4, single buffered']
    #allocation11 [shape = 's32[1]{0}', space=sflag, size = 0x4, scoped, tag = 'scoped memory for bidirectional_gru_forward.1']
    #allocation12 [shape = 'u8[8192]{0}', space=vmem, size = 0x2000, scoped, tag = 'input window, operand 5, single buffered']
    %14 = vsyncpa [#allocation9], 0
    %15 = vsyncpa [#allocation11], 0
    // Predicated region
    $region2: #{bidirectional_gru_forward.1} parent=1 // pred_check
      _
    $region3: #{bidirectional_gru_forward.1} parent=1 // pred_check_branch
      %17 = sbr.rel (0) target = $region5
    $region4: #{bidirectional_gru_forward.1} parent=1 // pred_region
      _
    $region5: #{bidirectional_gru_forward.1} parent=1 // pred_fallthru
      _
    // Predicated region
    $region6: #{bidirectional_gru_forward.1} parent=1 // pred_check
      _
    $region7: #{bidirectional_gru_forward.1} parent=1 // pred_check_branch
      %19 = sbr.rel (0) target = $region9
    $region8: #{bidirectional_gru_forward.1} parent=1 // pred_region
      _
    $region9: #{bidirectional_gru_forward.1} parent=1 // pred_fallthru
      _
    // Predicated region
    $region10: #{bidirectional_gru_forward.1} parent=1 // pred_check
      _
    $region11: #{bidirectional_gru_forward.1} parent=1 // pred_check_branch
      %21 = sbr.rel (0) target = $region13
    $region12: #{bidirectional_gru_forward.1} parent=1 // pred_region
      _
    $region13: #{bidirectional_gru_forward.1} parent=1 // pred_fallthru
      _
    // Predicated region
    $region14: #{bidirectional_gru_forward.1} parent=1 // pred_check
      _
    $region15: #{bidirectional_gru_forward.1} parent=1 // pred_check_branch
      %23 = sbr.rel (0) target = $region17
    $region16: #{bidirectional_gru_forward.1} parent=1 // pred_region
      %s25 = ssub.s32 2048, 2048
      %26 = vsyncadd [#allocation9], %s25
      %s27 = sshll.u32 [#allocation8], 4
      %s28 = int_to_ptr.vmem [resolvable:$true] %s27
      %33 = dma.hbm_to_vmem [thread:$0]  %s3, 2048, %s28, [#allocation9], 128, 128, 8
    $region17: #{bidirectional_gru_forward.1} parent=1 // pred_fallthru
      _
    // Predicated region
    $region18: #{bidirectional_gru_forward.1} parent=1 // pred_check
      _
    $region19: #{bidirectional_gru_forward.1} parent=1 // pred_check_branch
      %35 = sbr.rel (0) target = $region21
    $region20: #{bidirectional_gru_forward.1} parent=1 // pred_region
      %s37 = ssub.s32 64, 64
      %38 = vsyncadd [#allocation11], %s37
      %s39 = sshll.u32 [#allocation10], 4
      %s40 = int_to_ptr.vmem [resolvable:$true] %s39
      %45 = dma.hbm_to_vmem [thread:$0]  %s4, 64, %s40, [#allocation11], 32, 32, 2
    $region21: #{bidirectional_gru_forward.1} parent=1 // pred_fallthru
      _
    // Predicated region
    $region22: #{bidirectional_gru_forward.1} parent=1 // pred_check
      _
    $region23: #{bidirectional_gru_forward.1} parent=1 // pred_check_branch
      %47 = sbr.rel (0) target = $region25
    $region24: #{bidirectional_gru_forward.1} parent=1 // pred_region
      %s49 = ssub.s32 256, 256
      %50 = vsyncadd [#allocation11], %s49
      %s51 = sshll.u32 [#allocation12], 4
      %s52 = int_to_ptr.vmem [resolvable:$true] %s51
      %57 = dma.hbm_to_vmem [thread:$0]  %s5, 256, %s52, [#allocation11], 128, 128, 8
    $region25: #{bidirectional_gru_forward.1} parent=1 // pred_fallthru
      _
    // Predicated region
    $region26: #{bidirectional_gru_forward.1} parent=1 // pred_check
      _
    $region27: #{bidirectional_gru_forward.1} parent=1 // pred_check_branch
      %59 = sbr.rel (0) target = $region29
    $region28: #{bidirectional_gru_forward.1} parent=1 // pred_region
      _
    $region29: #{bidirectional_gru_forward.1} parent=1 // pred_fallthru
      _
    // Predicated region
    $region30: #{bidirectional_gru_forward.1} parent=1 // pred_check
      _
    $region31: #{bidirectional_gru_forward.1} parent=1 // pred_check_branch
      %61 = sbr.rel (0) target = $region33
    $region32: #{bidirectional_gru_forward.1} parent=1 // pred_region
      _
    $region33: #{bidirectional_gru_forward.1} parent=1 // pred_fallthru
      _
    // Predicated region
    $region34: #{bidirectional_gru_forward.1} parent=1 // pred_check
      _
    $region35: #{bidirectional_gru_forward.1} parent=1 // pred_check_branch
      %63 = sbr.rel (0) target = $region37
    $region36: #{bidirectional_gru_forward.1} parent=1 // pred_region
      _
    $region37: #{bidirectional_gru_forward.1} parent=1 // pred_fallthru
      _
    // Predicated region
    $region38: #{bidirectional_gru_forward.1} parent=1 // pred_check
      _
    $region39: #{bidirectional_gru_forward.1} parent=1 // pred_check_branch
      %65 = sbr.rel (0) target = $region41
    $region40: #{bidirectional_gru_forward.1} parent=1 // pred_region
      %66 = dma.done [#allocation9], 2048
    $region41: #{bidirectional_gru_forward.1} parent=1 // pred_fallthru
      _
    // Predicated region
    $region42: #{bidirectional_gru_forward.1} parent=1 // pred_check
      _
    $region43: #{bidirectional_gru_forward.1} parent=1 // pred_check_branch
      %68 = sbr.rel (0) target = $region45
    $region44: #{bidirectional_gru_forward.1} parent=1 // pred_region
      %69 = dma.done [#allocation11], 64
    $region45: #{bidirectional_gru_forward.1} parent=1 // pred_fallthru
      _
    // Predicated region
    $region46: #{bidirectional_gru_forward.1} parent=1 // pred_check
      _
    $region47: #{bidirectional_gru_forward.1} parent=1 // pred_check_branch
      %71 = sbr.rel (0) target = $region49
    $region48: #{bidirectional_gru_forward.1} parent=1 // pred_region
      %72 = dma.done [#allocation11], 256
    $region49: #{bidirectional_gru_forward.1} parent=1 // pred_fallthru
      _
    %v73 = vld [vmem:[%s6] sm:$0xff]
    %v74 = vld [vmem:[%s0] sm:$0xff]
    %v75 = vld [vmem:[%s0 + $0x8] sm:$0xff]
    %v76 = vld [vmem:[%s0 + $0x10] sm:$0xff]
    %v77 = vld [vmem:[%s0 + $0x18] sm:$0xff]
    %v78 = vld [vmem:[%s1] sm:$0xff]
    %v79 = vld [vmem:[%s1 + $0x8] sm:$0xff]
    %v80 = vld [vmem:[%s1 + $0x10] sm:$0xff]
    %v81 = vld [vmem:[%s1 + $0x18] sm:$0xff]
    %v82 = vld [vmem:[#allocation10] sm:$0x3]
    %v84 = vlaneseq
    %v85 = vshrl.u32 %v84, 7
    %v86 = vsub.s32 0, %v85
    %v87 = vrot.slane %v82, %v86
    %v88 = vlaneseq
    %v89 = vshrl.u32 %v88, 7
    %v90 = vsub.s32 1, %v89
    %v91 = vrot.slane %v82, %v90
    %vm94 = vcmask 130048
    %v96 = vsel %vm94, %v74, 0
    %v99 = vsel %vm94, %v75, 0
    %v102 = vsel %vm94, %v76, 0
    %v105 = vsel %vm94, %v77, 0
    %107 = vmatprep.subr.mxu0 %v79
    %108 = vmatpush1.msra.mxu0 %v78
    %109 = vmatprep.subr.mxu0 %v81
    %110 = vmatpush1.msra.mxu0 %v80
    %111 = vmatprep.subr.mxu0 0.0
    %112 = vmatpush1.msra.mxu0 0.0
    %113 = vmatprep.subr.mxu0 0.0
    %114 = vmatpush1.msra.mxu0 0.0
    %115 = vmatprep.subr.mxu0 0.0
    %116 = vmatpush1.msra.mxu0 0.0
    %117 = vmatprep.subr.mxu0 0.0
    %118 = vmatpush1.msra.mxu0 0.0
    %119 = vmatprep.subr.mxu0 0.0
    %120 = vmatpush1.msra.mxu0 0.0
    %121 = vmatprep.subr.mxu0 0.0
    %122 = vmatpush1.msra.mxu0 0.0
    %123 = vmatprep.subr.mxu0 0.0
    %124 = vmatpush1.msra.mxu0 0.0
    %125 = vmatprep.subr.mxu0 0.0
    %126 = vmatpush1.msra.mxu0 0.0
    %127 = vmatprep.subr.mxu0 0.0
    %128 = vmatpush1.msra.mxu0 0.0
    %129 = vmatprep.subr.mxu0 0.0
    %130 = vmatpush1.msra.mxu0 0.0
    %131 = vmatprep.subr.mxu0 0.0
    %132 = vmatpush1.msra.mxu0 0.0
    %133 = vmatprep.subr.mxu0 0.0
    %134 = vmatpush1.msra.mxu0 0.0
    %135 = vmatprep.subr.mxu0 0.0
    %136 = vmatpush1.msra.mxu0 0.0
    %137 = vmatprep.subr.mxu0 0.0
    %138 = vmatpush1.msra.mxu0 0.0
    %139 = vmatprep.subr.mxu0 0.0
    %140 = vmatpush1.msra.mxu0 0.0
    %141 = vmatprep.subr.mxu0 0.0
    %142 = vmatpush1.msra.mxu0 0.0
    %143 = vmatprep.subr.mxu0 0.0
    %144 = vmatpush1.msra.mxu0 0.0
    %145 = vmatprep.subr.mxu0 0.0
    %146 = vmatpush1.msra.mxu0 0.0
    %147 = vmatprep.subr.mxu0 0.0
    %148 = vmatpush1.msra.mxu0 0.0
    %149 = vmatprep.subr.mxu0 0.0
    %150 = vmatpush1.msra.mxu0 0.0
    %151 = vmatprep.subr.mxu0 0.0
    %152 = vmatpush1.msra.mxu0 0.0
    %153 = vmatprep.subr.mxu0 0.0
    %154 = vmatpush1.msra.mxu0 0.0
    %155 = vmatprep.subr.mxu0 0.0
    %156 = vmatpush1.msra.mxu0 0.0
    %157 = vmatprep.subr.mxu0 0.0
    %158 = vmatpush1.msra.mxu0 0.0
    %159 = vmatprep.subr.mxu0 0.0
    %160 = vmatpush1.msra.mxu0 0.0
    %161 = vmatprep.subr.mxu0 0.0
    %162 = vmatpush1.msra.mxu0 0.0
    %163 = vmatprep.subr.mxu0 0.0
    %164 = vmatpush1.msra.mxu0 0.0
    %165 = vmatprep.subr.mxu0 0.0
    %166 = vmatpush1.msra.mxu0 0.0
    %167 = vmatprep.subr.mxu0 0.0
    %168 = vmatpush1.msra.mxu0 0.0
    %169 = vmatprep.subr.mxu0 0.0
    %170 = vmatpush1.msra.mxu0 0.0
    %171 = vmatprep.mubr.f32.mxu0 0.0
    %172 = vmatmul.mubr.f32.gmra.mrb[0].mxu0 %v96
    %v173 = vpop.f32.mrb[0].mxu0
    %v174 = vadd.f32 %v87, %v173
    %v175 = vpop.f32.mrb[0].mxu0
    %v176 = vadd.f32 %v91, %v175
    %177 = vmatprep.mubr.f32.mxu0 0.0
    %178 = vmatmul.mubr.f32.gmra.mrb[0].mxu0 %v99
    %v179 = vpop.f32.mrb[0].mxu0
    %v180 = vadd.f32 %v87, %v179
    %v181 = vpop.f32.mrb[0].mxu0
    %v182 = vadd.f32 %v91, %v181
    %183 = vmatprep.mubr.f32.mxu0 0.0
    %184 = vmatmul.mubr.f32.gmra.mrb[0].mxu0 %v102
    %v185 = vpop.f32.mrb[0].mxu0
    %v186 = vadd.f32 %v87, %v185
    %v187 = vpop.f32.mrb[0].mxu0
    %v188 = vadd.f32 %v91, %v187
    %189 = vmatprep.mubr.f32.mxu0 0.0
    %190 = vmatmul.mubr.f32.gmra.mrb[0].mxu0 %v105
    %v191 = vpop.f32.mrb[0].mxu0
    %v192 = vadd.f32 %v87, %v191
    %v193 = vpop.f32.mrb[0].mxu0
    %v194 = vadd.f32 %v91, %v193
    %195 = vdwg.mxu0
    %vm196 = vcmask 785408
    %197 = vst.msk [vmem:[#allocation2] sm:$0xff] %vm196, %v174
    %198 = vst.msk [vmem:[#allocation2 + $0x8] sm:$0xff] %vm196, %v180
    %199 = vst.msk [vmem:[#allocation2 + $0x10] sm:$0xff] %vm196, %v186
    %200 = vst.msk [vmem:[#allocation2 + $0x18] sm:$0xff] %vm196, %v192
    %209 = vrot.lane.b32.xlu0 %v174, 32
    %v210 = vpop.permute.xlu0 %209
    %211 = vrot.lane.b32.xlu0 %v176, 32
    %v212 = vpop.permute.xlu0 %211
    %213 = vrot.lane.b32.xlu0 %v180, 32
    %v214 = vpop.permute.xlu0 %213
    %215 = vrot.lane.b32.xlu0 %v182, 32
    %v216 = vpop.permute.xlu0 %215
    %217 = vrot.lane.b32.xlu0 %v186, 32
    %v218 = vpop.permute.xlu0 %217
    %219 = vrot.lane.b32.xlu0 %v188, 32
    %v220 = vpop.permute.xlu0 %219
    %221 = vrot.lane.b32.xlu0 %v192, 32
    %v222 = vpop.permute.xlu0 %221
    %223 = vrot.lane.b32.xlu0 %v194, 32
    %v224 = vpop.permute.xlu0 %223
    %vm225 = vcmask 261120
    %v226 = vsel %vm225, %v210, %v212
    %v227 = vsel %vm225, %v214, %v216
    %v228 = vsel %vm225, %v218, %v220
    %v229 = vsel %vm225, %v222, %v224
    %234 = vst.msk [vmem:[#allocation3] sm:$0xff] %vm196, %v226
    %235 = vst.msk [vmem:[#allocation3 + $0x8] sm:$0xff] %vm196, %v227
    %236 = vst.msk [vmem:[#allocation3 + $0x10] sm:$0xff] %vm196, %v228
    %237 = vst.msk [vmem:[#allocation3 + $0x18] sm:$0xff] %vm196, %v229
    %v238 = vld [vmem:[#allocation8] sm:$0xff]
    %v239 = vld [vmem:[#allocation8 + $0x8] sm:$0xff]
    %v240 = vld [vmem:[#allocation8 + $0x10] sm:$0xff]
    %v241 = vld [vmem:[#allocation8 + $0x18] sm:$0xff]
    %v242 = vld [vmem:[#allocation8 + $0x20] sm:$0xff]
    %v243 = vld [vmem:[#allocation8 + $0x28] sm:$0xff]
    %v244 = vld [vmem:[#allocation8 + $0x30] sm:$0xff]
    %v245 = vld [vmem:[#allocation8 + $0x38] sm:$0xff]
    %v246 = vld [vmem:[#allocation12] sm:$0xff]
    %v247 = vld [vmem:[#allocation2] sm:$0xf]
    %v248 = vld [vmem:[#allocation3 + $0x1c] sm:$0xf]
    %v250 = vrot.slane %v248, 4
    %vm252 = vcmask 1043456
    %v253 = vsel %vm252, %v247, %v250
    %v254 = vadd.f32 %v253, 0.0
    %v255 = vxor.u32 %v254, 2147483648
    %v256 = vmul.f32 %v255, 1.442695
    %v257 = vpow.pop %v256
    %v258 = vadd.f32 %v257, 1.0
    %v259 = vrcp.pop %v258
    %v260 = vmul.f32 1.0, %v259
    %v261 = vadd.f32 %v246, 0.0
    %v262 = vmul.f32 %v260, %v261
    %264 = vrot.lane.b32.xlu0 %v262, 64
    %v265 = vpop.permute.xlu0 %264
    %v267 = vadd.f32 %v253, %v265
    %v268 = vtanh.pop %v267
    %v269 = vsub.f32 1.0, %v260
    %271 = vrot.lane.b32.xlu0 %v268, 96
    %v272 = vpop.permute.xlu0 %271
    %v274 = vmul.f32 %v269, %v272
    %276 = vrot.lane.b32.xlu0 %v274, 96
    %v277 = vpop.permute.xlu0 %276
    %v279 = vsel %vm225, %v277, %v274
    %v280 = vmul.f32 %v279, %v73
    %vm281 = vcmask 257024
    %282 = vst.msk [vmem:[#allocation4] sm:$0xf] %vm281, %v277
    %vm283 = vcmask 261124
    %284 = vst.msk [vmem:[#allocation5 + $0x18] sm:$0xf0] %vm283, %v277
    %v285 = vld [vmem:[#allocation2 + $0x4] sm:$0xf]
    %v286 = vld [vmem:[#allocation3 + $0x18] sm:$0xf]
    %v288 = vrot.slane %v286, 4
    %v290 = vsel %vm252, %v285, %v288
    %vm291 = vcmask 523264
    %v293 = vsel %vm291, %v280, 0
    %295 = vmatprep.subr.mxu0 0.0
    %296 = vmatpush1.msra.mxu0 %v238
    %297 = vmatprep.subr.mxu0 0.0
    %298 = vmatpush1.msra.mxu0 %v239
    %299 = vmatprep.subr.mxu0 0.0
    %300 = vmatpush1.msra.mxu0 %v240
    %301 = vmatprep.subr.mxu0 0.0
    %302 = vmatpush1.msra.mxu0 %v241
    %303 = vmatprep.subr.mxu0 0.0
    %304 = vmatpush1.msra.mxu0 %v242
    %305 = vmatprep.subr.mxu0 0.0
    %306 = vmatpush1.msra.mxu0 %v243
    %307 = vmatprep.subr.mxu0 0.0
    %308 = vmatpush1.msra.mxu0 %v244
    %309 = vmatprep.subr.mxu0 0.0
    %310 = vmatpush1.msra.mxu0 %v245
    %311 = vmatprep.subr.mxu0 0.0
    %312 = vmatpush1.msra.mxu0 0.0
    %313 = vmatprep.subr.mxu0 0.0
    %314 = vmatpush1.msra.mxu0 0.0
    %315 = vmatprep.subr.mxu0 0.0
    %316 = vmatpush1.msra.mxu0 0.0
    %317 = vmatprep.subr.mxu0 0.0
    %318 = vmatpush1.msra.mxu0 0.0
    %319 = vmatprep.subr.mxu0 0.0
    %320 = vmatpush1.msra.mxu0 0.0
    %321 = vmatprep.subr.mxu0 0.0
    %322 = vmatpush1.msra.mxu0 0.0
    %323 = vmatprep.subr.mxu0 0.0
    %324 = vmatpush1.msra.mxu0 0.0
    %325 = vmatprep.subr.mxu0 0.0
    %326 = vmatpush1.msra.mxu0 0.0
    %327 = vmatprep.subr.mxu0 0.0
    %328 = vmatpush1.msra.mxu0 0.0
    %329 = vmatprep.subr.mxu0 0.0
    %330 = vmatpush1.msra.mxu0 0.0
    %331 = vmatprep.subr.mxu0 0.0
    %332 = vmatpush1.msra.mxu0 0.0
    %333 = vmatprep.subr.mxu0 0.0
    %334 = vmatpush1.msra.mxu0 0.0
    %335 = vmatprep.subr.mxu0 0.0
    %336 = vmatpush1.msra.mxu0 0.0
    %337 = vmatprep.subr.mxu0 0.0
    %338 = vmatpush1.msra.mxu0 0.0
    %339 = vmatprep.subr.mxu0 0.0
    %340 = vmatpush1.msra.mxu0 0.0
    %341 = vmatprep.subr.mxu0 0.0
    %342 = vmatpush1.msra.mxu0 0.0
    %343 = vmatprep.subr.mxu0 0.0
    %344 = vmatpush1.msra.mxu0 0.0
    %345 = vmatprep.subr.mxu0 0.0
    %346 = vmatpush1.msra.mxu0 0.0
    %347 = vmatprep.subr.mxu0 0.0
    %348 = vmatpush1.msra.mxu0 0.0
    %349 = vmatprep.subr.mxu0 0.0
    %350 = vmatpush1.msra.mxu0 0.0
    %351 = vmatprep.subr.mxu0 0.0
    %352 = vmatpush1.msra.mxu0 0.0
    %353 = vmatprep.subr.mxu0 0.0
    %354 = vmatpush1.msra.mxu0 0.0
    %355 = vmatprep.subr.mxu0 0.0
    %356 = vmatpush1.msra.mxu0 0.0
    %357 = vmatprep.subr.mxu0 0.0
    %358 = vmatpush1.msra.mxu0 0.0
    %359 = vmatprep.mubr.f32.mxu0 0.0
    %360 = vmatmul.mubr.f32.gmra.mrb[0].mxu0 %v293
    %v361 = vpop.f32.mrb[0].mxu0
    %v362 = vadd.f32 0.0, %v361
    %v363 = vpop.f32.mrb[0].mxu0
    %364 = vdwg.mxu0
    %v365 = vadd.f32 %v290, %v362
    %v366 = vxor.u32 %v365, 2147483648
    %v367 = vmul.f32 %v366, 1.442695
    %v368 = vpow.pop %v367
    %v369 = vadd.f32 %v368, 1.0
    %v370 = vrcp.pop %v369
    %v371 = vmul.f32 1.0, %v370
    %373 = vrot.lane.b32.xlu0 %v246, 64
    %v374 = vpop.permute.xlu0 %373
    %v376 = vadd.f32 %v362, %v374
    %378 = vrot.lane.b32.xlu0 %v376, 64
    %v379 = vpop.permute.xlu0 %378
    %v381 = vmul.f32 %v371, %v379
    %383 = vrot.lane.b32.xlu0 %v381, 64
    %v384 = vpop.permute.xlu0 %383
    %v386 = vadd.f32 %v290, %v384
    %v387 = vtanh.pop %v386
    %v388 = vsub.f32 1.0, %v371
    %390 = vrot.lane.b32.xlu0 %v387, 96
    %v391 = vpop.permute.xlu0 %390
    %v393 = vmul.f32 %v388, %v391
    %v394 = vmul.f32 %v371, %v274
    %v395 = vadd.f32 %v393, %v394
    %397 = vrot.lane.b32.xlu0 %v395, 96
    %v398 = vpop.permute.xlu0 %397
    %v400 = vsel %vm225, %v398, %v395
    %v401 = vmul.f32 %v400, %v73
    %402 = vst.msk [vmem:[#allocation4 + $0x4] sm:$0xf] %vm281, %v398
    %403 = vst.msk [vmem:[#allocation5 + $0x14] sm:$0xf0] %vm283, %v398
    %v404 = vld [vmem:[#allocation2 + $0x8] sm:$0xf]
    %v405 = vld [vmem:[#allocation3 + $0x14] sm:$0xf]
    %v407 = vrot.slane %v405, 4
    %v409 = vsel %vm252, %v404, %v407
    %v411 = vsel %vm291, %v401, 0
    %413 = vmatprep.subr.mxu0 0.0
    %414 = vmatpush1.msra.mxu0 %v238
    %415 = vmatprep.subr.mxu0 0.0
    %416 = vmatpush1.msra.mxu0 %v239
    %417 = vmatprep.subr.mxu0 0.0
    %418 = vmatpush1.msra.mxu0 %v240
    %419 = vmatprep.subr.mxu0 0.0
    %420 = vmatpush1.msra.mxu0 %v241
    %421 = vmatprep.subr.mxu0 0.0
    %422 = vmatpush1.msra.mxu0 %v242
    %423 = vmatprep.subr.mxu0 0.0
    %424 = vmatpush1.msra.mxu0 %v243
    %425 = vmatprep.subr.mxu0 0.0
    %426 = vmatpush1.msra.mxu0 %v244
    %427 = vmatprep.subr.mxu0 0.0
    %428 = vmatpush1.msra.mxu0 %v245
    %429 = vmatprep.subr.mxu0 0.0
    %430 = vmatpush1.msra.mxu0 0.0
    %431 = vmatprep.subr.mxu0 0.0
    %432 = vmatpush1.msra.mxu0 0.0
    %433 = vmatprep.subr.mxu0 0.0
    %434 = vmatpush1.msra.mxu0 0.0
    %435 = vmatprep.subr.mxu0 0.0
    %436 = vmatpush1.msra.mxu0 0.0
    %437 = vmatprep.subr.mxu0 0.0
    %438 = vmatpush1.msra.mxu0 0.0
    %439 = vmatprep.subr.mxu0 0.0
    %440 = vmatpush1.msra.mxu0 0.0
    %441 = vmatprep.subr.mxu0 0.0
    %442 = vmatpush1.msra.mxu0 0.0
    %443 = vmatprep.subr.mxu0 0.0
    %444 = vmatpush1.msra.mxu0 0.0
    %445 = vmatprep.subr.mxu0 0.0
    %446 = vmatpush1.msra.mxu0 0.0
    %447 = vmatprep.subr.mxu0 0.0
    %448 = vmatpush1.msra.mxu0 0.0
    %449 = vmatprep.subr.mxu0 0.0
    %450 = vmatpush1.msra.mxu0 0.0
    %451 = vmatprep.subr.mxu0 0.0
    %452 = vmatpush1.msra.mxu0 0.0
    %453 = vmatprep.subr.mxu0 0.0
    %454 = vmatpush1.msra.mxu0 0.0
    %455 = vmatprep.subr.mxu0 0.0
    %456 = vmatpush1.msra.mxu0 0.0
    %457 = vmatprep.subr.mxu0 0.0
    %458 = vmatpush1.msra.mxu0 0.0
    %459 = vmatprep.subr.mxu0 0.0
    %460 = vmatpush1.msra.mxu0 0.0
    %461 = vmatprep.subr.mxu0 0.0
    %462 = vmatpush1.msra.mxu0 0.0
    %463 = vmatprep.subr.mxu0 0.0
    %464 = vmatpush1.msra.mxu0 0.0
    %465 = vmatprep.subr.mxu0 0.0
    %466 = vmatpush1.msra.mxu0 0.0
    %467 = vmatprep.subr.mxu0 0.0
    %468 = vmatpush1.msra.mxu0 0.0
    %469 = vmatprep.subr.mxu0 0.0
    %470 = vmatpush1.msra.mxu0 0.0
    %471 = vmatprep.subr.mxu0 0.0
    %472 = vmatpush1.msra.mxu0 0.0
    %473 = vmatprep.subr.mxu0 0.0
    %474 = vmatpush1.msra.mxu0 0.0
    %475 = vmatprep.subr.mxu0 0.0
    %476 = vmatpush1.msra.mxu0 0.0
    %477 = vmatprep.mubr.f32.mxu0 0.0
    %478 = vmatmul.mubr.f32.gmra.mrb[0].mxu0 %v411
    %v479 = vpop.f32.mrb[0].mxu0
    %v480 = vadd.f32 0.0, %v479
    %v481 = vpop.f32.mrb[0].mxu0
    %482 = vdwg.mxu0
    %v483 = vadd.f32 %v409, %v480
    %v484 = vxor.u32 %v483, 2147483648
    %v485 = vmul.f32 %v484, 1.442695
    %v486 = vpow.pop %v485
    %v487 = vadd.f32 %v486, 1.0
    %v488 = vrcp.pop %v487
    %v489 = vmul.f32 1.0, %v488
    %v490 = vadd.f32 %v480, %v374
    %492 = vrot.lane.b32.xlu0 %v490, 64
    %v493 = vpop.permute.xlu0 %492
    %v495 = vmul.f32 %v489, %v493
    %497 = vrot.lane.b32.xlu0 %v495, 64
    %v498 = vpop.permute.xlu0 %497
    %v500 = vadd.f32 %v409, %v498
    %v501 = vtanh.pop %v500
    %v502 = vsub.f32 1.0, %v489
    %504 = vrot.lane.b32.xlu0 %v501, 96
    %v505 = vpop.permute.xlu0 %504
    %v507 = vmul.f32 %v502, %v505
    %v508 = vmul.f32 %v489, %v395
    %v509 = vadd.f32 %v507, %v508
    %511 = vrot.lane.b32.xlu0 %v509, 96
    %v512 = vpop.permute.xlu0 %511
    %v514 = vsel %vm225, %v512, %v509
    %v515 = vmul.f32 %v514, %v73
    %516 = vst.msk [vmem:[#allocation4 + $0x8] sm:$0xf] %vm281, %v512
    %517 = vst.msk [vmem:[#allocation5 + $0x10] sm:$0xf0] %vm283, %v512
    %v518 = vld [vmem:[#allocation2 + $0xc] sm:$0xf]
    %v519 = vld [vmem:[#allocation3 + $0x10] sm:$0xf]
    %v521 = vrot.slane %v519, 4
    %v523 = vsel %vm252, %v518, %v521
    %v525 = vsel %vm291, %v515, 0
    %527 = vmatprep.subr.mxu0 0.0
    %528 = vmatpush1.msra.mxu0 %v238
    %529 = vmatprep.subr.mxu0 0.0
    %530 = vmatpush1.msra.mxu0 %v239
    %531 = vmatprep.subr.mxu0 0.0
    %532 = vmatpush1.msra.mxu0 %v240
    %533 = vmatprep.subr.mxu0 0.0
    %534 = vmatpush1.msra.mxu0 %v241
    %535 = vmatprep.subr.mxu0 0.0
    %536 = vmatpush1.msra.mxu0 %v242
    %537 = vmatprep.subr.mxu0 0.0
    %538 = vmatpush1.msra.mxu0 %v243
    %539 = vmatprep.subr.mxu0 0.0
    %540 = vmatpush1.msra.mxu0 %v244
    %541 = vmatprep.subr.mxu0 0.0
    %542 = vmatpush1.msra.mxu0 %v245
    %543 = vmatprep.subr.mxu0 0.0
    %544 = vmatpush1.msra.mxu0 0.0
    %545 = vmatprep.subr.mxu0 0.0
    %546 = vmatpush1.msra.mxu0 0.0
    %547 = vmatprep.subr.mxu0 0.0
    %548 = vmatpush1.msra.mxu0 0.0
    %549 = vmatprep.subr.mxu0 0.0
    %550 = vmatpush1.msra.mxu0 0.0
    %551 = vmatprep.subr.mxu0 0.0
    %552 = vmatpush1.msra.mxu0 0.0
    %553 = vmatprep.subr.mxu0 0.0
    %554 = vmatpush1.msra.mxu0 0.0
    %555 = vmatprep.subr.mxu0 0.0
    %556 = vmatpush1.msra.mxu0 0.0
    %557 = vmatprep.subr.mxu0 0.0
    %558 = vmatpush1.msra.mxu0 0.0
    %559 = vmatprep.subr.mxu0 0.0
    %560 = vmatpush1.msra.mxu0 0.0
    %561 = vmatprep.subr.mxu0 0.0
    %562 = vmatpush1.msra.mxu0 0.0
    %563 = vmatprep.subr.mxu0 0.0
    %564 = vmatpush1.msra.mxu0 0.0
    %565 = vmatprep.subr.mxu0 0.0
    %566 = vmatpush1.msra.mxu0 0.0
    %567 = vmatprep.subr.mxu0 0.0
    %568 = vmatpush1.msra.mxu0 0.0
    %569 = vmatprep.subr.mxu0 0.0
    %570 = vmatpush1.msra.mxu0 0.0
    %571 = vmatprep.subr.mxu0 0.0
    %572 = vmatpush1.msra.mxu0 0.0
    %573 = vmatprep.subr.mxu0 0.0
    %574 = vmatpush1.msra.mxu0 0.0
    %575 = vmatprep.subr.mxu0 0.0
    %576 = vmatpush1.msra.mxu0 0.0
    %577 = vmatprep.subr.mxu0 0.0
    %578 = vmatpush1.msra.mxu0 0.0
    %579 = vmatprep.subr.mxu0 0.0
    %580 = vmatpush1.msra.mxu0 0.0
    %581 = vmatprep.subr.mxu0 0.0
    %582 = vmatpush1.msra.mxu0 0.0
    %583 = vmatprep.subr.mxu0 0.0
    %584 = vmatpush1.msra.mxu0 0.0
    %585 = vmatprep.subr.mxu0 0.0
    %586 = vmatpush1.msra.mxu0 0.0
    %587 = vmatprep.subr.mxu0 0.0
    %588 = vmatpush1.msra.mxu0 0.0
    %589 = vmatprep.subr.mxu0 0.0
    %590 = vmatpush1.msra.mxu0 0.0
    %591 = vmatprep.mubr.f32.mxu0 0.0
    %592 = vmatmul.mubr.f32.gmra.mrb[0].mxu0 %v525
    %v593 = vpop.f32.mrb[0].mxu0
    %v594 = vadd.f32 0.0, %v593
    %v595 = vpop.f32.mrb[0].mxu0
    %596 = vdwg.mxu0
    %v597 = vadd.f32 %v523, %v594
    %v598 = vxor.u32 %v597, 2147483648
    %v599 = vmul.f32 %v598, 1.442695
    %v600 = vpow.pop %v599
    %v601 = vadd.f32 %v600, 1.0
    %v602 = vrcp.pop %v601
    %v603 = vmul.f32 1.0, %v602
    %v604 = vadd.f32 %v594, %v374
    %606 = vrot.lane.b32.xlu0 %v604, 64
    %v607 = vpop.permute.xlu0 %606
    %v609 = vmul.f32 %v603, %v607
    %611 = vrot.lane.b32.xlu0 %v609, 64
    %v612 = vpop.permute.xlu0 %611
    %v614 = vadd.f32 %v523, %v612
    %v615 = vtanh.pop %v614
    %v616 = vsub.f32 1.0, %v603
    %618 = vrot.lane.b32.xlu0 %v615, 96
    %v619 = vpop.permute.xlu0 %618
    %v621 = vmul.f32 %v616, %v619
    %v622 = vmul.f32 %v603, %v509
    %v623 = vadd.f32 %v621, %v622
    %625 = vrot.lane.b32.xlu0 %v623, 96
    %v626 = vpop.permute.xlu0 %625
    %v628 = vsel %vm225, %v626, %v623
    %v629 = vmul.f32 %v628, %v73
    %630 = vst.msk [vmem:[#allocation4 + $0xc] sm:$0xf] %vm281, %v626
    %631 = vst.msk [vmem:[#allocation5 + $0xc] sm:$0xf0] %vm283, %v626
    %v632 = vld [vmem:[#allocation2 + $0x10] sm:$0xf]
    %v633 = vld [vmem:[#allocation3 + $0xc] sm:$0xf]
    %v635 = vrot.slane %v633, 4
    %v637 = vsel %vm252, %v632, %v635
    %v639 = vsel %vm291, %v629, 0
    %641 = vmatprep.subr.mxu0 0.0
    %642 = vmatpush1.msra.mxu0 %v238
    %643 = vmatprep.subr.mxu0 0.0
    %644 = vmatpush1.msra.mxu0 %v239
    %645 = vmatprep.subr.mxu0 0.0
    %646 = vmatpush1.msra.mxu0 %v240
    %647 = vmatprep.subr.mxu0 0.0
    %648 = vmatpush1.msra.mxu0 %v241
    %649 = vmatprep.subr.mxu0 0.0
    %650 = vmatpush1.msra.mxu0 %v242
    %651 = vmatprep.subr.mxu0 0.0
    %652 = vmatpush1.msra.mxu0 %v243
    %653 = vmatprep.subr.mxu0 0.0
    %654 = vmatpush1.msra.mxu0 %v244
    %655 = vmatprep.subr.mxu0 0.0
    %656 = vmatpush1.msra.mxu0 %v245
    %657 = vmatprep.subr.mxu0 0.0
    %658 = vmatpush1.msra.mxu0 0.0
    %659 = vmatprep.subr.mxu0 0.0
    %660 = vmatpush1.msra.mxu0 0.0
    %661 = vmatprep.subr.mxu0 0.0
    %662 = vmatpush1.msra.mxu0 0.0
    %663 = vmatprep.subr.mxu0 0.0
    %664 = vmatpush1.msra.mxu0 0.0
    %665 = vmatprep.subr.mxu0 0.0
    %666 = vmatpush1.msra.mxu0 0.0
    %667 = vmatprep.subr.mxu0 0.0
    %668 = vmatpush1.msra.mxu0 0.0
    %669 = vmatprep.subr.mxu0 0.0
    %670 = vmatpush1.msra.mxu0 0.0
    %671 = vmatprep.subr.mxu0 0.0
    %672 = vmatpush1.msra.mxu0 0.0
    %673 = vmatprep.subr.mxu0 0.0
    %674 = vmatpush1.msra.mxu0 0.0
    %675 = vmatprep.subr.mxu0 0.0
    %676 = vmatpush1.msra.mxu0 0.0
    %677 = vmatprep.subr.mxu0 0.0
    %678 = vmatpush1.msra.mxu0 0.0
    %679 = vmatprep.subr.mxu0 0.0
    %680 = vmatpush1.msra.mxu0 0.0
    %681 = vmatprep.subr.mxu0 0.0
    %682 = vmatpush1.msra.mxu0 0.0
    %683 = vmatprep.subr.mxu0 0.0
    %684 = vmatpush1.msra.mxu0 0.0
    %685 = vmatprep.subr.mxu0 0.0
    %686 = vmatpush1.msra.mxu0 0.0
    %687 = vmatprep.subr.mxu0 0.0
    %688 = vmatpush1.msra.mxu0 0.0
    %689 = vmatprep.subr.mxu0 0.0
    %690 = vmatpush1.msra.mxu0 0.0
    %691 = vmatprep.subr.mxu0 0.0
    %692 = vmatpush1.msra.mxu0 0.0
    %693 = vmatprep.subr.mxu0 0.0
    %694 = vmatpush1.msra.mxu0 0.0
    %695 = vmatprep.subr.mxu0 0.0
    %696 = vmatpush1.msra.mxu0 0.0
    %697 = vmatprep.subr.mxu0 0.0
    %698 = vmatpush1.msra.mxu0 0.0
    %699 = vmatprep.subr.mxu0 0.0
    %700 = vmatpush1.msra.mxu0 0.0
    %701 = vmatprep.subr.mxu0 0.0
    %702 = vmatpush1.msra.mxu0 0.0
    %703 = vmatprep.subr.mxu0 0.0
    %704 = vmatpush1.msra.mxu0 0.0
    %705 = vmatprep.mubr.f32.mxu0 0.0
    %706 = vmatmul.mubr.f32.gmra.mrb[0].mxu0 %v639
    %v707 = vpop.f32.mrb[0].mxu0
    %v708 = vadd.f32 0.0, %v707
    %v709 = vpop.f32.mrb[0].mxu0
    %710 = vdwg.mxu0
    %v711 = vadd.f32 %v637, %v708
    %v712 = vxor.u32 %v711, 2147483648
    %v713 = vmul.f32 %v712, 1.442695
    %v714 = vpow.pop %v713
    %v715 = vadd.f32 %v714, 1.0
    %v716 = vrcp.pop %v715
    %v717 = vmul.f32 1.0, %v716
    %v718 = vadd.f32 %v708, %v374
    %720 = vrot.lane.b32.xlu0 %v718, 64
    %v721 = vpop.permute.xlu0 %720
    %v723 = vmul.f32 %v717, %v721
    %725 = vrot.lane.b32.xlu0 %v723, 64
    %v726 = vpop.permute.xlu0 %725
    %v728 = vadd.f32 %v637, %v726
    %v729 = vtanh.pop %v728
    %v730 = vsub.f32 1.0, %v717
    %732 = vrot.lane.b32.xlu0 %v729, 96
    %v733 = vpop.permute.xlu0 %732
    %v735 = vmul.f32 %v730, %v733
    %v736 = vmul.f32 %v717, %v623
    %v737 = vadd.f32 %v735, %v736
    %739 = vrot.lane.b32.xlu0 %v737, 96
    %v740 = vpop.permute.xlu0 %739
    %v742 = vsel %vm225, %v740, %v737
    %v743 = vmul.f32 %v742, %v73
    %744 = vst.msk [vmem:[#allocation4 + $0x10] sm:$0xf] %vm281, %v740
    %745 = vst.msk [vmem:[#allocation5 + $0x8] sm:$0xf0] %vm283, %v740
    %v746 = vld [vmem:[#allocation2 + $0x14] sm:$0xf]
    %v747 = vld [vmem:[#allocation3 + $0x8] sm:$0xf]
    %v749 = vrot.slane %v747, 4
    %v751 = vsel %vm252, %v746, %v749
    %v753 = vsel %vm291, %v743, 0
    %755 = vmatprep.subr.mxu0 0.0
    %756 = vmatpush1.msra.mxu0 %v238
    %757 = vmatprep.subr.mxu0 0.0
    %758 = vmatpush1.msra.mxu0 %v239
    %759 = vmatprep.subr.mxu0 0.0
    %760 = vmatpush1.msra.mxu0 %v240
    %761 = vmatprep.subr.mxu0 0.0
    %762 = vmatpush1.msra.mxu0 %v241
    %763 = vmatprep.subr.mxu0 0.0
    %764 = vmatpush1.msra.mxu0 %v242
    %765 = vmatprep.subr.mxu0 0.0
    %766 = vmatpush1.msra.mxu0 %v243
    %767 = vmatprep.subr.mxu0 0.0
    %768 = vmatpush1.msra.mxu0 %v244
    %769 = vmatprep.subr.mxu0 0.0
    %770 = vmatpush1.msra.mxu0 %v245
    %771 = vmatprep.subr.mxu0 0.0
    %772 = vmatpush1.msra.mxu0 0.0
    %773 = vmatprep.subr.mxu0 0.0
    %774 = vmatpush1.msra.mxu0 0.0
    %775 = vmatprep.subr.mxu0 0.0
    %776 = vmatpush1.msra.mxu0 0.0
    %777 = vmatprep.subr.mxu0 0.0
    %778 = vmatpush1.msra.mxu0 0.0
    %779 = vmatprep.subr.mxu0 0.0
    %780 = vmatpush1.msra.mxu0 0.0
    %781 = vmatprep.subr.mxu0 0.0
    %782 = vmatpush1.msra.mxu0 0.0
    %783 = vmatprep.subr.mxu0 0.0
    %784 = vmatpush1.msra.mxu0 0.0
    %785 = vmatprep.subr.mxu0 0.0
    %786 = vmatpush1.msra.mxu0 0.0
    %787 = vmatprep.subr.mxu0 0.0
    %788 = vmatpush1.msra.mxu0 0.0
    %789 = vmatprep.subr.mxu0 0.0
    %790 = vmatpush1.msra.mxu0 0.0
    %791 = vmatprep.subr.mxu0 0.0
    %792 = vmatpush1.msra.mxu0 0.0
    %793 = vmatprep.subr.mxu0 0.0
    %794 = vmatpush1.msra.mxu0 0.0
    %795 = vmatprep.subr.mxu0 0.0
    %796 = vmatpush1.msra.mxu0 0.0
    %797 = vmatprep.subr.mxu0 0.0
    %798 = vmatpush1.msra.mxu0 0.0
    %799 = vmatprep.subr.mxu0 0.0
    %800 = vmatpush1.msra.mxu0 0.0
    %801 = vmatprep.subr.mxu0 0.0
    %802 = vmatpush1.msra.mxu0 0.0
    %803 = vmatprep.subr.mxu0 0.0
    %804 = vmatpush1.msra.mxu0 0.0
    %805 = vmatprep.subr.mxu0 0.0
    %806 = vmatpush1.msra.mxu0 0.0
    %807 = vmatprep.subr.mxu0 0.0
    %808 = vmatpush1.msra.mxu0 0.0
    %809 = vmatprep.subr.mxu0 0.0
    %810 = vmatpush1.msra.mxu0 0.0
    %811 = vmatprep.subr.mxu0 0.0
    %812 = vmatpush1.msra.mxu0 0.0
    %813 = vmatprep.subr.mxu0 0.0
    %814 = vmatpush1.msra.mxu0 0.0
    %815 = vmatprep.subr.mxu0 0.0
    %816 = vmatpush1.msra.mxu0 0.0
    %817 = vmatprep.subr.mxu0 0.0
    %818 = vmatpush1.msra.mxu0 0.0
    %819 = vmatprep.mubr.f32.mxu0 0.0
    %820 = vmatmul.mubr.f32.gmra.mrb[0].mxu0 %v753
    %v821 = vpop.f32.mrb[0].mxu0
    %v822 = vadd.f32 0.0, %v821
    %v823 = vpop.f32.mrb[0].mxu0
    %824 = vdwg.mxu0
    %v825 = vadd.f32 %v751, %v822
    %v826 = vxor.u32 %v825, 2147483648
    %v827 = vmul.f32 %v826, 1.442695
    %v828 = vpow.pop %v827
    %v829 = vadd.f32 %v828, 1.0
    %v830 = vrcp.pop %v829
    %v831 = vmul.f32 1.0, %v830
    %v832 = vadd.f32 %v822, %v374
    %834 = vrot.lane.b32.xlu0 %v832, 64
    %v835 = vpop.permute.xlu0 %834
    %v837 = vmul.f32 %v831, %v835
    %839 = vrot.lane.b32.xlu0 %v837, 64
    %v840 = vpop.permute.xlu0 %839
    %v842 = vadd.f32 %v751, %v840
    %v843 = vtanh.pop %v842
    %v844 = vsub.f32 1.0, %v831
    %846 = vrot.lane.b32.xlu0 %v843, 96
    %v847 = vpop.permute.xlu0 %846
    %v849 = vmul.f32 %v844, %v847
    %v850 = vmul.f32 %v831, %v737
    %v851 = vadd.f32 %v849, %v850
    %853 = vrot.lane.b32.xlu0 %v851, 96
    %v854 = vpop.permute.xlu0 %853
    %v856 = vsel %vm225, %v854, %v851
    %v857 = vmul.f32 %v856, %v73
    %858 = vst.msk [vmem:[#allocation4 + $0x14] sm:$0xf] %vm281, %v854
    %859 = vst.msk [vmem:[#allocation5 + $0x4] sm:$0xf0] %vm283, %v854
    %v860 = vld [vmem:[#allocation2 + $0x18] sm:$0xf]
    %v861 = vld [vmem:[#allocation3 + $0x4] sm:$0xf]
    %v863 = vrot.slane %v861, 4
    %v865 = vsel %vm252, %v860, %v863
    %v867 = vsel %vm291, %v857, 0
    %869 = vmatprep.subr.mxu0 0.0
    %870 = vmatpush1.msra.mxu0 %v238
    %871 = vmatprep.subr.mxu0 0.0
    %872 = vmatpush1.msra.mxu0 %v239
    %873 = vmatprep.subr.mxu0 0.0
    %874 = vmatpush1.msra.mxu0 %v240
    %875 = vmatprep.subr.mxu0 0.0
    %876 = vmatpush1.msra.mxu0 %v241
    %877 = vmatprep.subr.mxu0 0.0
    %878 = vmatpush1.msra.mxu0 %v242
    %879 = vmatprep.subr.mxu0 0.0
    %880 = vmatpush1.msra.mxu0 %v243
    %881 = vmatprep.subr.mxu0 0.0
    %882 = vmatpush1.msra.mxu0 %v244
    %883 = vmatprep.subr.mxu0 0.0
    %884 = vmatpush1.msra.mxu0 %v245
    %885 = vmatprep.subr.mxu0 0.0
    %886 = vmatpush1.msra.mxu0 0.0
    %887 = vmatprep.subr.mxu0 0.0
    %888 = vmatpush1.msra.mxu0 0.0
    %889 = vmatprep.subr.mxu0 0.0
    %890 = vmatpush1.msra.mxu0 0.0
    %891 = vmatprep.subr.mxu0 0.0
    %892 = vmatpush1.msra.mxu0 0.0
    %893 = vmatprep.subr.mxu0 0.0
    %894 = vmatpush1.msra.mxu0 0.0
    %895 = vmatprep.subr.mxu0 0.0
    %896 = vmatpush1.msra.mxu0 0.0
    %897 = vmatprep.subr.mxu0 0.0
    %898 = vmatpush1.msra.mxu0 0.0
    %899 = vmatprep.subr.mxu0 0.0
    %900 = vmatpush1.msra.mxu0 0.0
    %901 = vmatprep.subr.mxu0 0.0
    %902 = vmatpush1.msra.mxu0 0.0
    %903 = vmatprep.subr.mxu0 0.0
    %904 = vmatpush1.msra.mxu0 0.0
    %905 = vmatprep.subr.mxu0 0.0
    %906 = vmatpush1.msra.mxu0 0.0
    %907 = vmatprep.subr.mxu0 0.0
    %908 = vmatpush1.msra.mxu0 0.0
    %909 = vmatprep.subr.mxu0 0.0
    %910 = vmatpush1.msra.mxu0 0.0
    %911 = vmatprep.subr.mxu0 0.0
    %912 = vmatpush1.msra.mxu0 0.0
    %913 = vmatprep.subr.mxu0 0.0
    %914 = vmatpush1.msra.mxu0 0.0
    %915 = vmatprep.subr.mxu0 0.0
    %916 = vmatpush1.msra.mxu0 0.0
    %917 = vmatprep.subr.mxu0 0.0
    %918 = vmatpush1.msra.mxu0 0.0
    %919 = vmatprep.subr.mxu0 0.0
    %920 = vmatpush1.msra.mxu0 0.0
    %921 = vmatprep.subr.mxu0 0.0
    %922 = vmatpush1.msra.mxu0 0.0
    %923 = vmatprep.subr.mxu0 0.0
    %924 = vmatpush1.msra.mxu0 0.0
    %925 = vmatprep.subr.mxu0 0.0
    %926 = vmatpush1.msra.mxu0 0.0
    %927 = vmatprep.subr.mxu0 0.0
    %928 = vmatpush1.msra.mxu0 0.0
    %929 = vmatprep.subr.mxu0 0.0
    %930 = vmatpush1.msra.mxu0 0.0
    %931 = vmatprep.subr.mxu0 0.0
    %932 = vmatpush1.msra.mxu0 0.0
    %933 = vmatprep.mubr.f32.mxu0 0.0
    %934 = vmatmul.mubr.f32.gmra.mrb[0].mxu0 %v867
    %v935 = vpop.f32.mrb[0].mxu0
    %v936 = vadd.f32 0.0, %v935
    %v937 = vpop.f32.mrb[0].mxu0
    %938 = vdwg.mxu0
    %v939 = vadd.f32 %v865, %v936
    %v940 = vxor.u32 %v939, 2147483648
    %v941 = vmul.f32 %v940, 1.442695
    %v942 = vpow.pop %v941
    %v943 = vadd.f32 %v942, 1.0
    %v944 = vrcp.pop %v943
    %v945 = vmul.f32 1.0, %v944
    %v946 = vadd.f32 %v936, %v374
    %948 = vrot.lane.b32.xlu0 %v946, 64
    %v949 = vpop.permute.xlu0 %948
    %v951 = vmul.f32 %v945, %v949
    %953 = vrot.lane.b32.xlu0 %v951, 64
    %v954 = vpop.permute.xlu0 %953
    %v956 = vadd.f32 %v865, %v954
    %v957 = vtanh.pop %v956
    %v958 = vsub.f32 1.0, %v945
    %960 = vrot.lane.b32.xlu0 %v957, 96
    %v961 = vpop.permute.xlu0 %960
    %v963 = vmul.f32 %v958, %v961
    %v964 = vmul.f32 %v945, %v851
    %v965 = vadd.f32 %v963, %v964
    %967 = vrot.lane.b32.xlu0 %v965, 96
    %v968 = vpop.permute.xlu0 %967
    %v970 = vsel %vm225, %v968, %v965
    %v971 = vmul.f32 %v970, %v73
    %972 = vst.msk [vmem:[#allocation4 + $0x18] sm:$0xf] %vm281, %v968
    %973 = vst.msk [vmem:[#allocation5] sm:$0xf0] %vm283, %v968
    %v974 = vld [vmem:[#allocation2 + $0x1c] sm:$0xf]
    %v975 = vld [vmem:[#allocation3] sm:$0xf]
    %v977 = vrot.slane %v975, 4
    %v979 = vsel %vm252, %v974, %v977
    %v981 = vsel %vm291, %v971, 0
    %983 = vmatprep.subr.mxu0 0.0
    %984 = vmatpush1.msra.mxu0 %v238
    %985 = vmatprep.subr.mxu0 0.0
    %986 = vmatpush1.msra.mxu0 %v239
    %987 = vmatprep.subr.mxu0 0.0
    %988 = vmatpush1.msra.mxu0 %v240
    %989 = vmatprep.subr.mxu0 0.0
    %990 = vmatpush1.msra.mxu0 %v241
    %991 = vmatprep.subr.mxu0 0.0
    %992 = vmatpush1.msra.mxu0 %v242
    %993 = vmatprep.subr.mxu0 0.0
    %994 = vmatpush1.msra.mxu0 %v243
    %995 = vmatprep.subr.mxu0 0.0
    %996 = vmatpush1.msra.mxu0 %v244
    %997 = vmatprep.subr.mxu0 0.0
    %998 = vmatpush1.msra.mxu0 %v245
    %999 = vmatprep.subr.mxu0 0.0
    %1000 = vmatpush1.msra.mxu0 0.0
    %1001 = vmatprep.subr.mxu0 0.0
    %1002 = vmatpush1.msra.mxu0 0.0
    %1003 = vmatprep.subr.mxu0 0.0
    %1004 = vmatpush1.msra.mxu0 0.0
    %1005 = vmatprep.subr.mxu0 0.0
    %1006 = vmatpush1.msra.mxu0 0.0
    %1007 = vmatprep.subr.mxu0 0.0
    %1008 = vmatpush1.msra.mxu0 0.0
    %1009 = vmatprep.subr.mxu0 0.0
    %1010 = vmatpush1.msra.mxu0 0.0
    %1011 = vmatprep.subr.mxu0 0.0
    %1012 = vmatpush1.msra.mxu0 0.0
    %1013 = vmatprep.subr.mxu0 0.0
    %1014 = vmatpush1.msra.mxu0 0.0
    %1015 = vmatprep.subr.mxu0 0.0
    %1016 = vmatpush1.msra.mxu0 0.0
    %1017 = vmatprep.subr.mxu0 0.0
    %1018 = vmatpush1.msra.mxu0 0.0
    %1019 = vmatprep.subr.mxu0 0.0
    %1020 = vmatpush1.msra.mxu0 0.0
    %1021 = vmatprep.subr.mxu0 0.0
    %1022 = vmatpush1.msra.mxu0 0.0
    %1023 = vmatprep.subr.mxu0 0.0
    %1024 = vmatpush1.msra.mxu0 0.0
    %1025 = vmatprep.subr.mxu0 0.0
    %1026 = vmatpush1.msra.mxu0 0.0
    %1027 = vmatprep.subr.mxu0 0.0
    %1028 = vmatpush1.msra.mxu0 0.0
    %1029 = vmatprep.subr.mxu0 0.0
    %1030 = vmatpush1.msra.mxu0 0.0
    %1031 = vmatprep.subr.mxu0 0.0
    %1032 = vmatpush1.msra.mxu0 0.0
    %1033 = vmatprep.subr.mxu0 0.0
    %1034 = vmatpush1.msra.mxu0 0.0
    %1035 = vmatprep.subr.mxu0 0.0
    %1036 = vmatpush1.msra.mxu0 0.0
    %1037 = vmatprep.subr.mxu0 0.0
    %1038 = vmatpush1.msra.mxu0 0.0
    %1039 = vmatprep.subr.mxu0 0.0
    %1040 = vmatpush1.msra.mxu0 0.0
    %1041 = vmatprep.subr.mxu0 0.0
    %1042 = vmatpush1.msra.mxu0 0.0
    %1043 = vmatprep.subr.mxu0 0.0
    %1044 = vmatpush1.msra.mxu0 0.0
    %1045 = vmatprep.subr.mxu0 0.0
    %1046 = vmatpush1.msra.mxu0 0.0
    %1047 = vmatprep.mubr.f32.mxu0 0.0
    %1048 = vmatmul.mubr.f32.gmra.mrb[0].mxu0 %v981
    %v1049 = vpop.f32.mrb[0].mxu0
    %v1050 = vadd.f32 0.0, %v1049
    %v1051 = vpop.f32.mrb[0].mxu0
    %1052 = vdwg.mxu0
    %v1053 = vadd.f32 %v979, %v1050
    %v1054 = vxor.u32 %v1053, 2147483648
    %v1055 = vmul.f32 %v1054, 1.442695
    %v1056 = vpow.pop %v1055
    %v1057 = vadd.f32 %v1056, 1.0
    %v1058 = vrcp.pop %v1057
    %v1059 = vmul.f32 1.0, %v1058
    %v1060 = vadd.f32 %v1050, %v374
    %1062 = vrot.lane.b32.xlu0 %v1060, 64
    %v1063 = vpop.permute.xlu0 %1062
    %v1065 = vmul.f32 %v1059, %v1063
    %1067 = vrot.lane.b32.xlu0 %v1065, 64
    %v1068 = vpop.permute.xlu0 %1067
    %v1070 = vadd.f32 %v979, %v1068
    %v1071 = vtanh.pop %v1070
    %v1072 = vsub.f32 1.0, %v1059
    %1074 = vrot.lane.b32.xlu0 %v1071, 96
    %v1075 = vpop.permute.xlu0 %1074
    %v1077 = vmul.f32 %v1072, %v1075
    %v1078 = vmul.f32 %v1059, %v965
    %v1079 = vadd.f32 %v1077, %v1078
    %1081 = vrot.lane.b32.xlu0 %v1079, 96
    %v1082 = vpop.permute.xlu0 %1081
    %1084 = vst.msk [vmem:[#allocation4 + $0x1c] sm:$0xf] %vm281, %v1082
    %1085 = vst.msk [vmem:[#allocation5 - $0x4] sm:$0xf0] %vm283, %v1082
    %v1086 = vld [vmem:[#allocation4] sm:$0xff]
    %v1087 = vld [vmem:[#allocation4 + $0x8] sm:$0xff]
    %v1088 = vld [vmem:[#allocation4 + $0x10] sm:$0xff]
    %v1089 = vld [vmem:[#allocation4 + $0x18] sm:$0xff]
    %v1090 = vld [vmem:[%s2] sm:$0xff]
    %v1091 = vld [vmem:[%s2 + $0x8] sm:$0xff]
    %v1092 = vld [vmem:[%s2 + $0x10] sm:$0xff]
    %v1093 = vld [vmem:[%s2 + $0x18] sm:$0xff]
    %v1094 = vld [vmem:[%s2 + $0x20] sm:$0xff]
    %v1095 = vld [vmem:[%s2 + $0x28] sm:$0xff]
    %v1096 = vld [vmem:[%s2 + $0x30] sm:$0xff]
    %v1097 = vld [vmem:[%s2 + $0x38] sm:$0xff]
    %v1098 = vld [vmem:[#allocation5] sm:$0xff]
    %v1099 = vld [vmem:[#allocation5 + $0x8] sm:$0xff]
    %v1100 = vld [vmem:[#allocation5 + $0x10] sm:$0xff]
    %v1101 = vld [vmem:[#allocation5 + $0x18] sm:$0xff]
    %s1102 = scalar_lea.vmem %s2, 64
    %v1103 = vld [vmem:[%s1102] sm:$0xff]
    %v1104 = vld [vmem:[%s1102 + $0x8] sm:$0xff]
    %v1105 = vld [vmem:[%s1102 + $0x10] sm:$0xff]
    %v1106 = vld [vmem:[%s1102 + $0x18] sm:$0xff]
    %v1107 = vld [vmem:[%s1102 + $0x20] sm:$0xff]
    %v1108 = vld [vmem:[%s1102 + $0x28] sm:$0xff]
    %v1109 = vld [vmem:[%s1102 + $0x30] sm:$0xff]
    %v1110 = vld [vmem:[%s1102 + $0x38] sm:$0xff]
    %v1112 = vsel %vm225, %v1098, 0
    %v1115 = vsel %vm225, %v1099, 0
    %v1118 = vsel %vm225, %v1100, 0
    %v1121 = vsel %vm225, %v1101, 0
    %1123 = vmatprep.subr.mxu0 %v1104
    %1124 = vmatpush1.msra.mxu0 %v1103
    %1125 = vmatprep.subr.mxu0 %v1106
    %1126 = vmatpush1.msra.mxu0 %v1105
    %1127 = vmatprep.subr.mxu0 %v1108
    %1128 = vmatpush1.msra.mxu0 %v1107
    %1129 = vmatprep.subr.mxu0 %v1110
    %1130 = vmatpush1.msra.mxu0 %v1109
    %1131 = vmatprep.subr.mxu0 0.0
    %1132 = vmatpush1.msra.mxu0 0.0
    %1133 = vmatprep.subr.mxu0 0.0
    %1134 = vmatpush1.msra.mxu0 0.0
    %1135 = vmatprep.subr.mxu0 0.0
    %1136 = vmatpush1.msra.mxu0 0.0
    %1137 = vmatprep.subr.mxu0 0.0
    %1138 = vmatpush1.msra.mxu0 0.0
    %1139 = vmatprep.subr.mxu0 0.0
    %1140 = vmatpush1.msra.mxu0 0.0
    %1141 = vmatprep.subr.mxu0 0.0
    %1142 = vmatpush1.msra.mxu0 0.0
    %1143 = vmatprep.subr.mxu0 0.0
    %1144 = vmatpush1.msra.mxu0 0.0
    %1145 = vmatprep.subr.mxu0 0.0
    %1146 = vmatpush1.msra.mxu0 0.0
    %1147 = vmatprep.subr.mxu0 0.0
    %1148 = vmatpush1.msra.mxu0 0.0
    %1149 = vmatprep.subr.mxu0 0.0
    %1150 = vmatpush1.msra.mxu0 0.0
    %1151 = vmatprep.subr.mxu0 0.0
    %1152 = vmatpush1.msra.mxu0 0.0
    %1153 = vmatprep.subr.mxu0 0.0
    %1154 = vmatpush1.msra.mxu0 0.0
    %1155 = vmatprep.subr.mxu0 0.0
    %1156 = vmatpush1.msra.mxu0 0.0
    %1157 = vmatprep.subr.mxu0 0.0
    %1158 = vmatpush1.msra.mxu0 0.0
    %1159 = vmatprep.subr.mxu0 0.0
    %1160 = vmatpush1.msra.mxu0 0.0
    %1161 = vmatprep.subr.mxu0 0.0
    %1162 = vmatpush1.msra.mxu0 0.0
    %1163 = vmatprep.subr.mxu0 0.0
    %1164 = vmatpush1.msra.mxu0 0.0
    %1165 = vmatprep.subr.mxu0 0.0
    %1166 = vmatpush1.msra.mxu0 0.0
    %1167 = vmatprep.subr.mxu0 0.0
    %1168 = vmatpush1.msra.mxu0 0.0
    %1169 = vmatprep.subr.mxu0 0.0
    %1170 = vmatpush1.msra.mxu0 0.0
    %1171 = vmatprep.subr.mxu0 0.0
    %1172 = vmatpush1.msra.mxu0 0.0
    %1173 = vmatprep.subr.mxu0 0.0
    %1174 = vmatpush1.msra.mxu0 0.0
    %1175 = vmatprep.subr.mxu0 0.0
    %1176 = vmatpush1.msra.mxu0 0.0
    %1177 = vmatprep.subr.mxu0 0.0
    %1178 = vmatpush1.msra.mxu0 0.0
    %1179 = vmatprep.subr.mxu0 0.0
    %1180 = vmatpush1.msra.mxu0 0.0
    %1181 = vmatprep.subr.mxu0 0.0
    %1182 = vmatpush1.msra.mxu0 0.0
    %1183 = vmatprep.subr.mxu0 0.0
    %1184 = vmatpush1.msra.mxu0 0.0
    %1185 = vmatprep.subr.mxu0 0.0
    %1186 = vmatpush1.msra.mxu0 0.0
    %1187 = vmatprep.mubr.f32.mxu0 0.0
    %1188 = vmatmul.mubr.f32.gmra.mrb[0].mxu0 %v1112
    %v1189 = vpop.f32.mrb[0].mxu0
    %v1190 = vadd.f32 0.0, %v1189
    %v1191 = vpop.f32.mrb[0].mxu0
    %v1192 = vadd.f32 0.0, %v1191
    %1193 = vmatprep.mubr.f32.mxu0 0.0
    %1194 = vmatmul.mubr.f32.gmra.mrb[0].mxu0 %v1115
    %v1195 = vpop.f32.mrb[0].mxu0
    %v1196 = vadd.f32 0.0, %v1195
    %v1197 = vpop.f32.mrb[0].mxu0
    %v1198 = vadd.f32 0.0, %v1197
    %1199 = vmatprep.mubr.f32.mxu0 0.0
    %1200 = vmatmul.mubr.f32.gmra.mrb[0].mxu0 %v1118
    %v1201 = vpop.f32.mrb[0].mxu0
    %v1202 = vadd.f32 0.0, %v1201
    %v1203 = vpop.f32.mrb[0].mxu0
    %v1204 = vadd.f32 0.0, %v1203
    %1205 = vmatprep.mubr.f32.mxu0 0.0
    %1206 = vmatmul.mubr.f32.gmra.mrb[0].mxu0 %v1121
    %v1207 = vpop.f32.mrb[0].mxu0
    %v1208 = vadd.f32 0.0, %v1207
    %v1209 = vpop.f32.mrb[0].mxu0
    %v1210 = vadd.f32 0.0, %v1209
    %1211 = vdwg.mxu0
    %v1213 = vsel %vm225, %v1086, 0
    %v1216 = vsel %vm225, %v1087, 0
    %v1219 = vsel %vm225, %v1088, 0
    %v1222 = vsel %vm225, %v1089, 0
    %1224 = vmatprep.subr.mxu0 %v1091
    %1225 = vmatpush1.msra.mxu0 %v1090
    %1226 = vmatprep.subr.mxu0 %v1093
    %1227 = vmatpush1.msra.mxu0 %v1092
    %1228 = vmatprep.subr.mxu0 %v1095
    %1229 = vmatpush1.msra.mxu0 %v1094
    %1230 = vmatprep.subr.mxu0 %v1097
    %1231 = vmatpush1.msra.mxu0 %v1096
    %1232 = vmatprep.subr.mxu0 0.0
    %1233 = vmatpush1.msra.mxu0 0.0
    %1234 = vmatprep.subr.mxu0 0.0
    %1235 = vmatpush1.msra.mxu0 0.0
    %1236 = vmatprep.subr.mxu0 0.0
    %1237 = vmatpush1.msra.mxu0 0.0
    %1238 = vmatprep.subr.mxu0 0.0
    %1239 = vmatpush1.msra.mxu0 0.0
    %1240 = vmatprep.subr.mxu0 0.0
    %1241 = vmatpush1.msra.mxu0 0.0
    %1242 = vmatprep.subr.mxu0 0.0
    %1243 = vmatpush1.msra.mxu0 0.0
    %1244 = vmatprep.subr.mxu0 0.0
    %1245 = vmatpush1.msra.mxu0 0.0
    %1246 = vmatprep.subr.mxu0 0.0
    %1247 = vmatpush1.msra.mxu0 0.0
    %1248 = vmatprep.subr.mxu0 0.0
    %1249 = vmatpush1.msra.mxu0 0.0
    %1250 = vmatprep.subr.mxu0 0.0
    %1251 = vmatpush1.msra.mxu0 0.0
    %1252 = vmatprep.subr.mxu0 0.0
    %1253 = vmatpush1.msra.mxu0 0.0
    %1254 = vmatprep.subr.mxu0 0.0
    %1255 = vmatpush1.msra.mxu0 0.0
    %1256 = vmatprep.subr.mxu0 0.0
    %1257 = vmatpush1.msra.mxu0 0.0
    %1258 = vmatprep.subr.mxu0 0.0
    %1259 = vmatpush1.msra.mxu0 0.0
    %1260 = vmatprep.subr.mxu0 0.0
    %1261 = vmatpush1.msra.mxu0 0.0
    %1262 = vmatprep.subr.mxu0 0.0
    %1263 = vmatpush1.msra.mxu0 0.0
    %1264 = vmatprep.subr.mxu0 0.0
    %1265 = vmatpush1.msra.mxu0 0.0
    %1266 = vmatprep.subr.mxu0 0.0
    %1267 = vmatpush1.msra.mxu0 0.0
    %1268 = vmatprep.subr.mxu0 0.0
    %1269 = vmatpush1.msra.mxu0 0.0
    %1270 = vmatprep.subr.mxu0 0.0
    %1271 = vmatpush1.msra.mxu0 0.0
    %1272 = vmatprep.subr.mxu0 0.0
    %1273 = vmatpush1.msra.mxu0 0.0
    %1274 = vmatprep.subr.mxu0 0.0
    %1275 = vmatpush1.msra.mxu0 0.0
    %1276 = vmatprep.subr.mxu0 0.0
    %1277 = vmatpush1.msra.mxu0 0.0
    %1278 = vmatprep.subr.mxu0 0.0
    %1279 = vmatpush1.msra.mxu0 0.0
    %1280 = vmatprep.subr.mxu0 0.0
    %1281 = vmatpush1.msra.mxu0 0.0
    %1282 = vmatprep.subr.mxu0 0.0
    %1283 = vmatpush1.msra.mxu0 0.0
    %1284 = vmatprep.subr.mxu0 0.0
    %1285 = vmatpush1.msra.mxu0 0.0
    %1286 = vmatprep.subr.mxu0 0.0
    %1287 = vmatpush1.msra.mxu0 0.0
    %1288 = vmatprep.mubr.f32.mxu0 0.0
    %1289 = vmatmul.mubr.f32.gmra.mrb[0].mxu0 %v1213
    %v1290 = vpop.f32.mrb[0].mxu0
    %v1291 = vadd.f32 %v1190, %v1290
    %v1292 = vpop.f32.mrb[0].mxu0
    %v1293 = vadd.f32 %v1192, %v1292
    %1294 = vmatprep.mubr.f32.mxu0 0.0
    %1295 = vmatmul.mubr.f32.gmra.mrb[0].mxu0 %v1216
    %v1296 = vpop.f32.mrb[0].mxu0
    %v1297 = vadd.f32 %v1196, %v1296
    %v1298 = vpop.f32.mrb[0].mxu0
    %v1299 = vadd.f32 %v1198, %v1298
    %1300 = vmatprep.mubr.f32.mxu0 0.0
    %1301 = vmatmul.mubr.f32.gmra.mrb[0].mxu0 %v1219
    %v1302 = vpop.f32.mrb[0].mxu0
    %v1303 = vadd.f32 %v1202, %v1302
    %v1304 = vpop.f32.mrb[0].mxu0
    %v1305 = vadd.f32 %v1204, %v1304
    %1306 = vmatprep.mubr.f32.mxu0 0.0
    %1307 = vmatmul.mubr.f32.gmra.mrb[0].mxu0 %v1222
    %v1308 = vpop.f32.mrb[0].mxu0
    %v1309 = vadd.f32 %v1208, %v1308
    %v1310 = vpop.f32.mrb[0].mxu0
    %v1311 = vadd.f32 %v1210, %v1310
    %1312 = vdwg.mxu0
    %s1313 = scalar_lea.vmem [#allocation10], 2
    %v1314 = vld [vmem:[%s1313] sm:$0x3]
    %v1316 = vlaneseq
    %v1317 = vshrl.u32 %v1316, 7
    %v1318 = vsub.s32 0, %v1317
    %v1319 = vrot.slane %v1314, %v1318
    %v1320 = vlaneseq
    %v1321 = vshrl.u32 %v1320, 7
    %v1322 = vsub.s32 1, %v1321
    %v1323 = vrot.slane %v1314, %v1322
    %v1326 = vadd.f32 %v1291, %v1319
    %v1327 = vadd.f32 %v1293, %v1323
    %v1328 = vadd.f32 %v1297, %v1319
    %v1329 = vadd.f32 %v1299, %v1323
    %v1330 = vadd.f32 %v1303, %v1319
    %v1331 = vadd.f32 %v1305, %v1323
    %v1332 = vadd.f32 %v1309, %v1319
    %v1333 = vadd.f32 %v1311, %v1323
    %1334 = vst.msk [vmem:[#allocation2] sm:$0xff] %vm196, %v1326
    %1335 = vst.msk [vmem:[#allocation2 + $0x8] sm:$0xff] %vm196, %v1328
    %1336 = vst.msk [vmem:[#allocation2 + $0x10] sm:$0xff] %vm196, %v1330
    %1337 = vst.msk [vmem:[#allocation2 + $0x18] sm:$0xff] %vm196, %v1332
    %1346 = vrot.lane.b32.xlu0 %v1326, 32
    %v1347 = vpop.permute.xlu0 %1346
    %1348 = vrot.lane.b32.xlu0 %v1327, 32
    %v1349 = vpop.permute.xlu0 %1348
    %1350 = vrot.lane.b32.xlu0 %v1328, 32
    %v1351 = vpop.permute.xlu0 %1350
    %1352 = vrot.lane.b32.xlu0 %v1329, 32
    %v1353 = vpop.permute.xlu0 %1352
    %1354 = vrot.lane.b32.xlu0 %v1330, 32
    %v1355 = vpop.permute.xlu0 %1354
    %1356 = vrot.lane.b32.xlu0 %v1331, 32
    %v1357 = vpop.permute.xlu0 %1356
    %1358 = vrot.lane.b32.xlu0 %v1332, 32
    %v1359 = vpop.permute.xlu0 %1358
    %1360 = vrot.lane.b32.xlu0 %v1333, 32
    %v1361 = vpop.permute.xlu0 %1360
    %v1362 = vsel %vm225, %v1347, %v1349
    %v1363 = vsel %vm225, %v1351, %v1353
    %v1364 = vsel %vm225, %v1355, %v1357
    %v1365 = vsel %vm225, %v1359, %v1361
    %1370 = vst.msk [vmem:[#allocation3] sm:$0xff] %vm196, %v1362
    %1371 = vst.msk [vmem:[#allocation3 + $0x8] sm:$0xff] %vm196, %v1363
    %1372 = vst.msk [vmem:[#allocation3 + $0x10] sm:$0xff] %vm196, %v1364
    %1373 = vst.msk [vmem:[#allocation3 + $0x18] sm:$0xff] %vm196, %v1365
    %s1374 = scalar_lea.vmem [#allocation8], 64
    %v1375 = vld [vmem:[%s1374] sm:$0xff]
    %v1376 = vld [vmem:[%s1374 + $0x8] sm:$0xff]
    %v1377 = vld [vmem:[%s1374 + $0x10] sm:$0xff]
    %v1378 = vld [vmem:[%s1374 + $0x18] sm:$0xff]
    %v1379 = vld [vmem:[%s1374 + $0x20] sm:$0xff]
    %v1380 = vld [vmem:[%s1374 + $0x28] sm:$0xff]
    %v1381 = vld [vmem:[%s1374 + $0x30] sm:$0xff]
    %v1382 = vld [vmem:[%s1374 + $0x38] sm:$0xff]
    %s1383 = scalar_lea.vmem [#allocation12], 8
    %v1384 = vld [vmem:[%s1383] sm:$0xff]
    %v1385 = vld [vmem:[#allocation2] sm:$0xf]
    %v1386 = vld [vmem:[#allocation3 + $0x1c] sm:$0xf]
    %v1388 = vrot.slane %v1386, 4
    %v1390 = vsel %vm252, %v1385, %v1388
    %v1391 = vadd.f32 %v1390, 0.0
    %v1392 = vxor.u32 %v1391, 2147483648
    %v1393 = vmul.f32 %v1392, 1.442695
    %v1394 = vpow.pop %v1393
    %v1395 = vadd.f32 %v1394, 1.0
    %v1396 = vrcp.pop %v1395
    %v1397 = vmul.f32 1.0, %v1396
    %v1398 = vadd.f32 %v1384, 0.0
    %v1399 = vmul.f32 %v1397, %v1398
    %1401 = vrot.lane.b32.xlu0 %v1399, 64
    %v1402 = vpop.permute.xlu0 %1401
    %v1404 = vadd.f32 %v1390, %v1402
    %v1405 = vtanh.pop %v1404
    %v1406 = vsub.f32 1.0, %v1397
    %1408 = vrot.lane.b32.xlu0 %v1405, 96
    %v1409 = vpop.permute.xlu0 %1408
    %v1411 = vmul.f32 %v1406, %v1409
    %1413 = vrot.lane.b32.xlu0 %v1411, 96
    %v1414 = vpop.permute.xlu0 %1413
    %v1416 = vsel %vm225, %v1414, %v1411
    %v1417 = vmul.f32 %v1416, %v73
    %vm1418 = vcmask 519424
    %v1419 = vsel %vm1418, %v1411, -inf
    %v1420 = vrot.slane %v1419, 4
    %v1421 = vmax.f32 %v1419, %v1420
    %v1422 = vrot.slane %v1421, 2
    %v1423 = vmax.f32 %v1421, %v1422
    %v1424 = vrot.slane %v1423, 1
    %v1425 = vmax.f32 %v1423, %v1424
    %1427 = vrot.lane.b32.xlu0 %v1425, 96
    %v1428 = vpop.permute.xlu0 %1427
    %vm1430 = vcmask 253952
    %1431 = vst.msk [vmem:[#allocation6] sm:$0x1] %vm1430, %v1428
    %vm1432 = vcmask 523524
    %v1433 = vsel %vm1432, %v1411, -inf
    %v1434 = vrot.slane %v1433, 4
    %v1435 = vmax.f32 %v1433, %v1434
    %v1436 = vrot.slane %v1435, 2
    %v1437 = vmax.f32 %v1435, %v1436
    %v1438 = vrot.slane %v1437, 1
    %v1439 = vmax.f32 %v1437, %v1438
    %1441 = vrot.lane.b32.xlu0 %v1439, 96
    %v1442 = vpop.permute.xlu0 %1441
    %1444 = vst.msk [vmem:[#allocation7 + $0x7] sm:$0x1] %vm1430, %v1442
    %v1445 = vld [vmem:[#allocation2 + $0x4] sm:$0xf]
    %v1446 = vld [vmem:[#allocation3 + $0x18] sm:$0xf]
    %v1448 = vrot.slane %v1446, 4
    %v1450 = vsel %vm252, %v1445, %v1448
    %v1452 = vsel %vm291, %v1417, 0
    %1454 = vmatprep.subr.mxu0 0.0
    %1455 = vmatpush1.msra.mxu0 %v1375
    %1456 = vmatprep.subr.mxu0 0.0
    %1457 = vmatpush1.msra.mxu0 %v1376
    %1458 = vmatprep.subr.mxu0 0.0
    %1459 = vmatpush1.msra.mxu0 %v1377
    %1460 = vmatprep.subr.mxu0 0.0
    %1461 = vmatpush1.msra.mxu0 %v1378
    %1462 = vmatprep.subr.mxu0 0.0
    %1463 = vmatpush1.msra.mxu0 %v1379
    %1464 = vmatprep.subr.mxu0 0.0
    %1465 = vmatpush1.msra.mxu0 %v1380
    %1466 = vmatprep.subr.mxu0 0.0
    %1467 = vmatpush1.msra.mxu0 %v1381
    %1468 = vmatprep.subr.mxu0 0.0
    %1469 = vmatpush1.msra.mxu0 %v1382
    %1470 = vmatprep.subr.mxu0 0.0
    %1471 = vmatpush1.msra.mxu0 0.0
    %1472 = vmatprep.subr.mxu0 0.0
    %1473 = vmatpush1.msra.mxu0 0.0
    %1474 = vmatprep.subr.mxu0 0.0
    %1475 = vmatpush1.msra.mxu0 0.0
    %1476 = vmatprep.subr.mxu0 0.0
    %1477 = vmatpush1.msra.mxu0 0.0
    %1478 = vmatprep.subr.mxu0 0.0
    %1479 = vmatpush1.msra.mxu0 0.0
    %1480 = vmatprep.subr.mxu0 0.0
    %1481 = vmatpush1.msra.mxu0 0.0
    %1482 = vmatprep.subr.mxu0 0.0
    %1483 = vmatpush1.msra.mxu0 0.0
    %1484 = vmatprep.subr.mxu0 0.0
    %1485 = vmatpush1.msra.mxu0 0.0
    %1486 = vmatprep.subr.mxu0 0.0
    %1487 = vmatpush1.msra.mxu0 0.0
    %1488 = vmatprep.subr.mxu0 0.0
    %1489 = vmatpush1.msra.mxu0 0.0
    %1490 = vmatprep.subr.mxu0 0.0
    %1491 = vmatpush1.msra.mxu0 0.0
    %1492 = vmatprep.subr.mxu0 0.0
    %1493 = vmatpush1.msra.mxu0 0.0
    %1494 = vmatprep.subr.mxu0 0.0
    %1495 = vmatpush1.msra.mxu0 0.0
    %1496 = vmatprep.subr.mxu0 0.0
    %1497 = vmatpush1.msra.mxu0 0.0
    %1498 = vmatprep.subr.mxu0 0.0
    %1499 = vmatpush1.msra.mxu0 0.0
    %1500 = vmatprep.subr.mxu0 0.0
    %1501 = vmatpush1.msra.mxu0 0.0
    %1502 = vmatprep.subr.mxu0 0.0
    %1503 = vmatpush1.msra.mxu0 0.0
    %1504 = vmatprep.subr.mxu0 0.0
    %1505 = vmatpush1.msra.mxu0 0.0
    %1506 = vmatprep.subr.mxu0 0.0
    %1507 = vmatpush1.msra.mxu0 0.0
    %1508 = vmatprep.subr.mxu0 0.0
    %1509 = vmatpush1.msra.mxu0 0.0
    %1510 = vmatprep.subr.mxu0 0.0
    %1511 = vmatpush1.msra.mxu0 0.0
    %1512 = vmatprep.subr.mxu0 0.0
    %1513 = vmatpush1.msra.mxu0 0.0
    %1514 = vmatprep.subr.mxu0 0.0
    %1515 = vmatpush1.msra.mxu0 0.0
    %1516 = vmatprep.subr.mxu0 0.0
    %1517 = vmatpush1.msra.mxu0 0.0
    %1518 = vmatprep.mubr.f32.mxu0 0.0
    %1519 = vmatmul.mubr.f32.gmra.mrb[0].mxu0 %v1452
    %v1520 = vpop.f32.mrb[0].mxu0
    %v1521 = vadd.f32 0.0, %v1520
    %v1522 = vpop.f32.mrb[0].mxu0
    %1523 = vdwg.mxu0
    %v1524 = vadd.f32 %v1450, %v1521
    %v1525 = vxor.u32 %v1524, 2147483648
    %v1526 = vmul.f32 %v1525, 1.442695
    %v1527 = vpow.pop %v1526
    %v1528 = vadd.f32 %v1527, 1.0
    %v1529 = vrcp.pop %v1528
    %v1530 = vmul.f32 1.0, %v1529
    %1532 = vrot.lane.b32.xlu0 %v1384, 64
    %v1533 = vpop.permute.xlu0 %1532
    %v1535 = vadd.f32 %v1521, %v1533
    %1537 = vrot.lane.b32.xlu0 %v1535, 64
    %v1538 = vpop.permute.xlu0 %1537
    %v1540 = vmul.f32 %v1530, %v1538
    %1542 = vrot.lane.b32.xlu0 %v1540, 64
    %v1543 = vpop.permute.xlu0 %1542
    %v1545 = vadd.f32 %v1450, %v1543
    %v1546 = vtanh.pop %v1545
    %v1547 = vsub.f32 1.0, %v1530
    %1549 = vrot.lane.b32.xlu0 %v1546, 96
    %v1550 = vpop.permute.xlu0 %1549
    %v1552 = vmul.f32 %v1547, %v1550
    %v1553 = vmul.f32 %v1530, %v1411
    %v1554 = vadd.f32 %v1552, %v1553
    %1556 = vrot.lane.b32.xlu0 %v1554, 96
    %v1557 = vpop.permute.xlu0 %1556
    %v1559 = vsel %vm225, %v1557, %v1554
    %v1560 = vmul.f32 %v1559, %v73
    %v1561 = vsel %vm1418, %v1554, -inf
    %v1562 = vrot.slane %v1561, 4
    %v1563 = vmax.f32 %v1561, %v1562
    %v1564 = vrot.slane %v1563, 2
    %v1565 = vmax.f32 %v1563, %v1564
    %v1566 = vrot.slane %v1565, 1
    %v1567 = vmax.f32 %v1565, %v1566
    %1569 = vrot.lane.b32.xlu0 %v1567, 96
    %v1570 = vpop.permute.xlu0 %1569
    %1572 = vst.msk [vmem:[#allocation6 + $0x1] sm:$0x1] %vm1430, %v1570
    %v1573 = vsel %vm1432, %v1554, -inf
    %v1574 = vrot.slane %v1573, 4
    %v1575 = vmax.f32 %v1573, %v1574
    %v1576 = vrot.slane %v1575, 2
    %v1577 = vmax.f32 %v1575, %v1576
    %v1578 = vrot.slane %v1577, 1
    %v1579 = vmax.f32 %v1577, %v1578
    %1581 = vrot.lane.b32.xlu0 %v1579, 96
    %v1582 = vpop.permute.xlu0 %1581
    %1584 = vst.msk [vmem:[#allocation7 + $0x6] sm:$0x1] %vm1430, %v1582
    %v1585 = vld [vmem:[#allocation2 + $0x8] sm:$0xf]
    %v1586 = vld [vmem:[#allocation3 + $0x14] sm:$0xf]
    %v1588 = vrot.slane %v1586, 4
    %v1590 = vsel %vm252, %v1585, %v1588
    %v1592 = vsel %vm291, %v1560, 0
    %1594 = vmatprep.subr.mxu0 0.0
    %1595 = vmatpush1.msra.mxu0 %v1375
    %1596 = vmatprep.subr.mxu0 0.0
    %1597 = vmatpush1.msra.mxu0 %v1376
    %1598 = vmatprep.subr.mxu0 0.0
    %1599 = vmatpush1.msra.mxu0 %v1377
    %1600 = vmatprep.subr.mxu0 0.0
    %1601 = vmatpush1.msra.mxu0 %v1378
    %1602 = vmatprep.subr.mxu0 0.0
    %1603 = vmatpush1.msra.mxu0 %v1379
    %1604 = vmatprep.subr.mxu0 0.0
    %1605 = vmatpush1.msra.mxu0 %v1380
    %1606 = vmatprep.subr.mxu0 0.0
    %1607 = vmatpush1.msra.mxu0 %v1381
    %1608 = vmatprep.subr.mxu0 0.0
    %1609 = vmatpush1.msra.mxu0 %v1382
    %1610 = vmatprep.subr.mxu0 0.0
    %1611 = vmatpush1.msra.mxu0 0.0
    %1612 = vmatprep.subr.mxu0 0.0
    %1613 = vmatpush1.msra.mxu0 0.0
    %1614 = vmatprep.subr.mxu0 0.0
    %1615 = vmatpush1.msra.mxu0 0.0
    %1616 = vmatprep.subr.mxu0 0.0
    %1617 = vmatpush1.msra.mxu0 0.0
    %1618 = vmatprep.subr.mxu0 0.0
    %1619 = vmatpush1.msra.mxu0 0.0
    %1620 = vmatprep.subr.mxu0 0.0
    %1621 = vmatpush1.msra.mxu0 0.0
    %1622 = vmatprep.subr.mxu0 0.0
    %1623 = vmatpush1.msra.mxu0 0.0
    %1624 = vmatprep.subr.mxu0 0.0
    %1625 = vmatpush1.msra.mxu0 0.0
    %1626 = vmatprep.subr.mxu0 0.0
    %1627 = vmatpush1.msra.mxu0 0.0
    %1628 = vmatprep.subr.mxu0 0.0
    %1629 = vmatpush1.msra.mxu0 0.0
    %1630 = vmatprep.subr.mxu0 0.0
    %1631 = vmatpush1.msra.mxu0 0.0
    %1632 = vmatprep.subr.mxu0 0.0
    %1633 = vmatpush1.msra.mxu0 0.0
    %1634 = vmatprep.subr.mxu0 0.0
    %1635 = vmatpush1.msra.mxu0 0.0
    %1636 = vmatprep.subr.mxu0 0.0
    %1637 = vmatpush1.msra.mxu0 0.0
    %1638 = vmatprep.subr.mxu0 0.0
    %1639 = vmatpush1.msra.mxu0 0.0
    %1640 = vmatprep.subr.mxu0 0.0
    %1641 = vmatpush1.msra.mxu0 0.0
    %1642 = vmatprep.subr.mxu0 0.0
    %1643 = vmatpush1.msra.mxu0 0.0
    %1644 = vmatprep.subr.mxu0 0.0
    %1645 = vmatpush1.msra.mxu0 0.0
    %1646 = vmatprep.subr.mxu0 0.0
    %1647 = vmatpush1.msra.mxu0 0.0
    %1648 = vmatprep.subr.mxu0 0.0
    %1649 = vmatpush1.msra.mxu0 0.0
    %1650 = vmatprep.subr.mxu0 0.0
    %1651 = vmatpush1.msra.mxu0 0.0
    %1652 = vmatprep.subr.mxu0 0.0
    %1653 = vmatpush1.msra.mxu0 0.0
    %1654 = vmatprep.subr.mxu0 0.0
    %1655 = vmatpush1.msra.mxu0 0.0
    %1656 = vmatprep.subr.mxu0 0.0
    %1657 = vmatpush1.msra.mxu0 0.0
    %1658 = vmatprep.mubr.f32.mxu0 0.0
    %1659 = vmatmul.mubr.f32.gmra.mrb[0].mxu0 %v1592
    %v1660 = vpop.f32.mrb[0].mxu0
    %v1661 = vadd.f32 0.0, %v1660
    %v1662 = vpop.f32.mrb[0].mxu0
    %1663 = vdwg.mxu0
    %v1664 = vadd.f32 %v1590, %v1661
    %v1665 = vxor.u32 %v1664, 2147483648
    %v1666 = vmul.f32 %v1665, 1.442695
    %v1667 = vpow.pop %v1666
    %v1668 = vadd.f32 %v1667, 1.0
    %v1669 = vrcp.pop %v1668
    %v1670 = vmul.f32 1.0, %v1669
    %v1671 = vadd.f32 %v1661, %v1533
    %1673 = vrot.lane.b32.xlu0 %v1671, 64
    %v1674 = vpop.permute.xlu0 %1673
    %v1676 = vmul.f32 %v1670, %v1674
    %1678 = vrot.lane.b32.xlu0 %v1676, 64
    %v1679 = vpop.permute.xlu0 %1678
    %v1681 = vadd.f32 %v1590, %v1679
    %v1682 = vtanh.pop %v1681
    %v1683 = vsub.f32 1.0, %v1670
    %1685 = vrot.lane.b32.xlu0 %v1682, 96
    %v1686 = vpop.permute.xlu0 %1685
    %v1688 = vmul.f32 %v1683, %v1686
    %v1689 = vmul.f32 %v1670, %v1554
    %v1690 = vadd.f32 %v1688, %v1689
    %1692 = vrot.lane.b32.xlu0 %v1690, 96
    %v1693 = vpop.permute.xlu0 %1692
    %v1695 = vsel %vm225, %v1693, %v1690
    %v1696 = vmul.f32 %v1695, %v73
    %v1697 = vsel %vm1418, %v1690, -inf
    %v1698 = vrot.slane %v1697, 4
    %v1699 = vmax.f32 %v1697, %v1698
    %v1700 = vrot.slane %v1699, 2
    %v1701 = vmax.f32 %v1699, %v1700
    %v1702 = vrot.slane %v1701, 1
    %v1703 = vmax.f32 %v1701, %v1702
    %1705 = vrot.lane.b32.xlu0 %v1703, 96
    %v1706 = vpop.permute.xlu0 %1705
    %1708 = vst.msk [vmem:[#allocation6 + $0x2] sm:$0x1] %vm1430, %v1706
    %v1709 = vsel %vm1432, %v1690, -inf
    %v1710 = vrot.slane %v1709, 4
    %v1711 = vmax.f32 %v1709, %v1710
    %v1712 = vrot.slane %v1711, 2
    %v1713 = vmax.f32 %v1711, %v1712
    %v1714 = vrot.slane %v1713, 1
    %v1715 = vmax.f32 %v1713, %v1714
    %1717 = vrot.lane.b32.xlu0 %v1715, 96
    %v1718 = vpop.permute.xlu0 %1717
    %1720 = vst.msk [vmem:[#allocation7 + $0x5] sm:$0x1] %vm1430, %v1718
    %v1721 = vld [vmem:[#allocation2 + $0xc] sm:$0xf]
    %v1722 = vld [vmem:[#allocation3 + $0x10] sm:$0xf]
    %v1724 = vrot.slane %v1722, 4
    %v1726 = vsel %vm252, %v1721, %v1724
    %v1728 = vsel %vm291, %v1696, 0
    %1730 = vmatprep.subr.mxu0 0.0
    %1731 = vmatpush1.msra.mxu0 %v1375
    %1732 = vmatprep.subr.mxu0 0.0
    %1733 = vmatpush1.msra.mxu0 %v1376
    %1734 = vmatprep.subr.mxu0 0.0
    %1735 = vmatpush1.msra.mxu0 %v1377
    %1736 = vmatprep.subr.mxu0 0.0
    %1737 = vmatpush1.msra.mxu0 %v1378
    %1738 = vmatprep.subr.mxu0 0.0
    %1739 = vmatpush1.msra.mxu0 %v1379
    %1740 = vmatprep.subr.mxu0 0.0
    %1741 = vmatpush1.msra.mxu0 %v1380
    %1742 = vmatprep.subr.mxu0 0.0
    %1743 = vmatpush1.msra.mxu0 %v1381
    %1744 = vmatprep.subr.mxu0 0.0
    %1745 = vmatpush1.msra.mxu0 %v1382
    %1746 = vmatprep.subr.mxu0 0.0
    %1747 = vmatpush1.msra.mxu0 0.0
    %1748 = vmatprep.subr.mxu0 0.0
    %1749 = vmatpush1.msra.mxu0 0.0
    %1750 = vmatprep.subr.mxu0 0.0
    %1751 = vmatpush1.msra.mxu0 0.0
    %1752 = vmatprep.subr.mxu0 0.0
    %1753 = vmatpush1.msra.mxu0 0.0
    %1754 = vmatprep.subr.mxu0 0.0
    %1755 = vmatpush1.msra.mxu0 0.0
    %1756 = vmatprep.subr.mxu0 0.0
    %1757 = vmatpush1.msra.mxu0 0.0
    %1758 = vmatprep.subr.mxu0 0.0
    %1759 = vmatpush1.msra.mxu0 0.0
    %1760 = vmatprep.subr.mxu0 0.0
    %1761 = vmatpush1.msra.mxu0 0.0
    %1762 = vmatprep.subr.mxu0 0.0
    %1763 = vmatpush1.msra.mxu0 0.0
    %1764 = vmatprep.subr.mxu0 0.0
    %1765 = vmatpush1.msra.mxu0 0.0
    %1766 = vmatprep.subr.mxu0 0.0
    %1767 = vmatpush1.msra.mxu0 0.0
    %1768 = vmatprep.subr.mxu0 0.0
    %1769 = vmatpush1.msra.mxu0 0.0
    %1770 = vmatprep.subr.mxu0 0.0
    %1771 = vmatpush1.msra.mxu0 0.0
    %1772 = vmatprep.subr.mxu0 0.0
    %1773 = vmatpush1.msra.mxu0 0.0
    %1774 = vmatprep.subr.mxu0 0.0
    %1775 = vmatpush1.msra.mxu0 0.0
    %1776 = vmatprep.subr.mxu0 0.0
    %1777 = vmatpush1.msra.mxu0 0.0
    %1778 = vmatprep.subr.mxu0 0.0
    %1779 = vmatpush1.msra.mxu0 0.0
    %1780 = vmatprep.subr.mxu0 0.0
    %1781 = vmatpush1.msra.mxu0 0.0
    %1782 = vmatprep.subr.mxu0 0.0
    %1783 = vmatpush1.msra.mxu0 0.0
    %1784 = vmatprep.subr.mxu0 0.0
    %1785 = vmatpush1.msra.mxu0 0.0
    %1786 = vmatprep.subr.mxu0 0.0
    %1787 = vmatpush1.msra.mxu0 0.0
    %1788 = vmatprep.subr.mxu0 0.0
    %1789 = vmatpush1.msra.mxu0 0.0
    %1790 = vmatprep.subr.mxu0 0.0
    %1791 = vmatpush1.msra.mxu0 0.0
    %1792 = vmatprep.subr.mxu0 0.0
    %1793 = vmatpush1.msra.mxu0 0.0
    %1794 = vmatprep.mubr.f32.mxu0 0.0
    %1795 = vmatmul.mubr.f32.gmra.mrb[0].mxu0 %v1728
    %v1796 = vpop.f32.mrb[0].mxu0
    %v1797 = vadd.f32 0.0, %v1796
    %v1798 = vpop.f32.mrb[0].mxu0
    %1799 = vdwg.mxu0
    %v1800 = vadd.f32 %v1726, %v1797
    %v1801 = vxor.u32 %v1800, 2147483648
    %v1802 = vmul.f32 %v1801, 1.442695
    %v1803 = vpow.pop %v1802
    %v1804 = vadd.f32 %v1803, 1.0
    %v1805 = vrcp.pop %v1804
    %v1806 = vmul.f32 1.0, %v1805
    %v1807 = vadd.f32 %v1797, %v1533
    %1809 = vrot.lane.b32.xlu0 %v1807, 64
    %v1810 = vpop.permute.xlu0 %1809
    %v1812 = vmul.f32 %v1806, %v1810
    %1814 = vrot.lane.b32.xlu0 %v1812, 64
    %v1815 = vpop.permute.xlu0 %1814
    %v1817 = vadd.f32 %v1726, %v1815
    %v1818 = vtanh.pop %v1817
    %v1819 = vsub.f32 1.0, %v1806
    %1821 = vrot.lane.b32.xlu0 %v1818, 96
    %v1822 = vpop.permute.xlu0 %1821
    %v1824 = vmul.f32 %v1819, %v1822
    %v1825 = vmul.f32 %v1806, %v1690
    %v1826 = vadd.f32 %v1824, %v1825
    %1828 = vrot.lane.b32.xlu0 %v1826, 96
    %v1829 = vpop.permute.xlu0 %1828
    %v1831 = vsel %vm225, %v1829, %v1826
    %v1832 = vmul.f32 %v1831, %v73
    %v1833 = vsel %vm1418, %v1826, -inf
    %v1834 = vrot.slane %v1833, 4
    %v1835 = vmax.f32 %v1833, %v1834
    %v1836 = vrot.slane %v1835, 2
    %v1837 = vmax.f32 %v1835, %v1836
    %v1838 = vrot.slane %v1837, 1
    %v1839 = vmax.f32 %v1837, %v1838
    %1841 = vrot.lane.b32.xlu0 %v1839, 96
    %v1842 = vpop.permute.xlu0 %1841
    %1844 = vst.msk [vmem:[#allocation6 + $0x3] sm:$0x1] %vm1430, %v1842
    %v1845 = vsel %vm1432, %v1826, -inf
    %v1846 = vrot.slane %v1845, 4
    %v1847 = vmax.f32 %v1845, %v1846
    %v1848 = vrot.slane %v1847, 2
    %v1849 = vmax.f32 %v1847, %v1848
    %v1850 = vrot.slane %v1849, 1
    %v1851 = vmax.f32 %v1849, %v1850
    %1853 = vrot.lane.b32.xlu0 %v1851, 96
    %v1854 = vpop.permute.xlu0 %1853
    %1856 = vst.msk [vmem:[#allocation7 + $0x4] sm:$0x1] %vm1430, %v1854
    %v1857 = vld [vmem:[#allocation2 + $0x10] sm:$0xf]
    %v1858 = vld [vmem:[#allocation3 + $0xc] sm:$0xf]
    %v1860 = vrot.slane %v1858, 4
    %v1862 = vsel %vm252, %v1857, %v1860
    %v1864 = vsel %vm291, %v1832, 0
    %1866 = vmatprep.subr.mxu0 0.0
    %1867 = vmatpush1.msra.mxu0 %v1375
    %1868 = vmatprep.subr.mxu0 0.0
    %1869 = vmatpush1.msra.mxu0 %v1376
    %1870 = vmatprep.subr.mxu0 0.0
    %1871 = vmatpush1.msra.mxu0 %v1377
    %1872 = vmatprep.subr.mxu0 0.0
    %1873 = vmatpush1.msra.mxu0 %v1378
    %1874 = vmatprep.subr.mxu0 0.0
    %1875 = vmatpush1.msra.mxu0 %v1379
    %1876 = vmatprep.subr.mxu0 0.0
    %1877 = vmatpush1.msra.mxu0 %v1380
    %1878 = vmatprep.subr.mxu0 0.0
    %1879 = vmatpush1.msra.mxu0 %v1381
    %1880 = vmatprep.subr.mxu0 0.0
    %1881 = vmatpush1.msra.mxu0 %v1382
    %1882 = vmatprep.subr.mxu0 0.0
    %1883 = vmatpush1.msra.mxu0 0.0
    %1884 = vmatprep.subr.mxu0 0.0
    %1885 = vmatpush1.msra.mxu0 0.0
    %1886 = vmatprep.subr.mxu0 0.0
    %1887 = vmatpush1.msra.mxu0 0.0
    %1888 = vmatprep.subr.mxu0 0.0
    %1889 = vmatpush1.msra.mxu0 0.0
    %1890 = vmatprep.subr.mxu0 0.0
    %1891 = vmatpush1.msra.mxu0 0.0
    %1892 = vmatprep.subr.mxu0 0.0
    %1893 = vmatpush1.msra.mxu0 0.0
    %1894 = vmatprep.subr.mxu0 0.0
    %1895 = vmatpush1.msra.mxu0 0.0
    %1896 = vmatprep.subr.mxu0 0.0
    %1897 = vmatpush1.msra.mxu0 0.0
    %1898 = vmatprep.subr.mxu0 0.0
    %1899 = vmatpush1.msra.mxu0 0.0
    %1900 = vmatprep.subr.mxu0 0.0
    %1901 = vmatpush1.msra.mxu0 0.0
    %1902 = vmatprep.subr.mxu0 0.0
    %1903 = vmatpush1.msra.mxu0 0.0
    %1904 = vmatprep.subr.mxu0 0.0
    %1905 = vmatpush1.msra.mxu0 0.0
    %1906 = vmatprep.subr.mxu0 0.0
    %1907 = vmatpush1.msra.mxu0 0.0
    %1908 = vmatprep.subr.mxu0 0.0
    %1909 = vmatpush1.msra.mxu0 0.0
    %1910 = vmatprep.subr.mxu0 0.0
    %1911 = vmatpush1.msra.mxu0 0.0
    %1912 = vmatprep.subr.mxu0 0.0
    %1913 = vmatpush1.msra.mxu0 0.0
    %1914 = vmatprep.subr.mxu0 0.0
    %1915 = vmatpush1.msra.mxu0 0.0
    %1916 = vmatprep.subr.mxu0 0.0
    %1917 = vmatpush1.msra.mxu0 0.0
    %1918 = vmatprep.subr.mxu0 0.0
    %1919 = vmatpush1.msra.mxu0 0.0
    %1920 = vmatprep.subr.mxu0 0.0
    %1921 = vmatpush1.msra.mxu0 0.0
    %1922 = vmatprep.subr.mxu0 0.0
    %1923 = vmatpush1.msra.mxu0 0.0
    %1924 = vmatprep.subr.mxu0 0.0
    %1925 = vmatpush1.msra.mxu0 0.0
    %1926 = vmatprep.subr.mxu0 0.0
    %1927 = vmatpush1.msra.mxu0 0.0
    %1928 = vmatprep.subr.mxu0 0.0
    %1929 = vmatpush1.msra.mxu0 0.0
    %1930 = vmatprep.mubr.f32.mxu0 0.0
    %1931 = vmatmul.mubr.f32.gmra.mrb[0].mxu0 %v1864
    %v1932 = vpop.f32.mrb[0].mxu0
    %v1933 = vadd.f32 0.0, %v1932
    %v1934 = vpop.f32.mrb[0].mxu0
    %1935 = vdwg.mxu0
    %v1936 = vadd.f32 %v1862, %v1933
    %v1937 = vxor.u32 %v1936, 2147483648
    %v1938 = vmul.f32 %v1937, 1.442695
    %v1939 = vpow.pop %v1938
    %v1940 = vadd.f32 %v1939, 1.0
    %v1941 = vrcp.pop %v1940
    %v1942 = vmul.f32 1.0, %v1941
    %v1943 = vadd.f32 %v1933, %v1533
    %1945 = vrot.lane.b32.xlu0 %v1943, 64
    %v1946 = vpop.permute.xlu0 %1945
    %v1948 = vmul.f32 %v1942, %v1946
    %1950 = vrot.lane.b32.xlu0 %v1948, 64
    %v1951 = vpop.permute.xlu0 %1950
    %v1953 = vadd.f32 %v1862, %v1951
    %v1954 = vtanh.pop %v1953
    %v1955 = vsub.f32 1.0, %v1942
    %1957 = vrot.lane.b32.xlu0 %v1954, 96
    %v1958 = vpop.permute.xlu0 %1957
    %v1960 = vmul.f32 %v1955, %v1958
    %v1961 = vmul.f32 %v1942, %v1826
    %v1962 = vadd.f32 %v1960, %v1961
    %1964 = vrot.lane.b32.xlu0 %v1962, 96
    %v1965 = vpop.permute.xlu0 %1964
    %v1967 = vsel %vm225, %v1965, %v1962
    %v1968 = vmul.f32 %v1967, %v73
    %v1969 = vsel %vm1418, %v1962, -inf
    %v1970 = vrot.slane %v1969, 4
    %v1971 = vmax.f32 %v1969, %v1970
    %v1972 = vrot.slane %v1971, 2
    %v1973 = vmax.f32 %v1971, %v1972
    %v1974 = vrot.slane %v1973, 1
    %v1975 = vmax.f32 %v1973, %v1974
    %1977 = vrot.lane.b32.xlu0 %v1975, 96
    %v1978 = vpop.permute.xlu0 %1977
    %1980 = vst.msk [vmem:[#allocation6 + $0x4] sm:$0x1] %vm1430, %v1978
    %v1981 = vsel %vm1432, %v1962, -inf
    %v1982 = vrot.slane %v1981, 4
    %v1983 = vmax.f32 %v1981, %v1982
    %v1984 = vrot.slane %v1983, 2
    %v1985 = vmax.f32 %v1983, %v1984
    %v1986 = vrot.slane %v1985, 1
    %v1987 = vmax.f32 %v1985, %v1986
    %1989 = vrot.lane.b32.xlu0 %v1987, 96
    %v1990 = vpop.permute.xlu0 %1989
    %1992 = vst.msk [vmem:[#allocation7 + $0x3] sm:$0x1] %vm1430, %v1990
    %v1993 = vld [vmem:[#allocation2 + $0x14] sm:$0xf]
    %v1994 = vld [vmem:[#allocation3 + $0x8] sm:$0xf]
    %v1996 = vrot.slane %v1994, 4
    %v1998 = vsel %vm252, %v1993, %v1996
    %v2000 = vsel %vm291, %v1968, 0
    %2002 = vmatprep.subr.mxu0 0.0
    %2003 = vmatpush1.msra.mxu0 %v1375
    %2004 = vmatprep.subr.mxu0 0.0
    %2005 = vmatpush1.msra.mxu0 %v1376
    %2006 = vmatprep.subr.mxu0 0.0
    %2007 = vmatpush1.msra.mxu0 %v1377
    %2008 = vmatprep.subr.mxu0 0.0
    %2009 = vmatpush1.msra.mxu0 %v1378
    %2010 = vmatprep.subr.mxu0 0.0
    %2011 = vmatpush1.msra.mxu0 %v1379
    %2012 = vmatprep.subr.mxu0 0.0
    %2013 = vmatpush1.msra.mxu0 %v1380
    %2014 = vmatprep.subr.mxu0 0.0
    %2015 = vmatpush1.msra.mxu0 %v1381
    %2016 = vmatprep.subr.mxu0 0.0
    %2017 = vmatpush1.msra.mxu0 %v1382
    %2018 = vmatprep.subr.mxu0 0.0
    %2019 = vmatpush1.msra.mxu0 0.0
    %2020 = vmatprep.subr.mxu0 0.0
    %2021 = vmatpush1.msra.mxu0 0.0
    %2022 = vmatprep.subr.mxu0 0.0
    %2023 = vmatpush1.msra.mxu0 0.0
    %2024 = vmatprep.subr.mxu0 0.0
    %2025 = vmatpush1.msra.mxu0 0.0
    %2026 = vmatprep.subr.mxu0 0.0
    %2027 = vmatpush1.msra.mxu0 0.0
    %2028 = vmatprep.subr.mxu0 0.0
    %2029 = vmatpush1.msra.mxu0 0.0
    %2030 = vmatprep.subr.mxu0 0.0
    %2031 = vmatpush1.msra.mxu0 0.0
    %2032 = vmatprep.subr.mxu0 0.0
    %2033 = vmatpush1.msra.mxu0 0.0
    %2034 = vmatprep.subr.mxu0 0.0
    %2035 = vmatpush1.msra.mxu0 0.0
    %2036 = vmatprep.subr.mxu0 0.0
    %2037 = vmatpush1.msra.mxu0 0.0
    %2038 = vmatprep.subr.mxu0 0.0
    %2039 = vmatpush1.msra.mxu0 0.0
    %2040 = vmatprep.subr.mxu0 0.0
    %2041 = vmatpush1.msra.mxu0 0.0
    %2042 = vmatprep.subr.mxu0 0.0
    %2043 = vmatpush1.msra.mxu0 0.0
    %2044 = vmatprep.subr.mxu0 0.0
    %2045 = vmatpush1.msra.mxu0 0.0
    %2046 = vmatprep.subr.mxu0 0.0
    %2047 = vmatpush1.msra.mxu0 0.0
    %2048 = vmatprep.subr.mxu0 0.0
    %2049 = vmatpush1.msra.mxu0 0.0
    %2050 = vmatprep.subr.mxu0 0.0
    %2051 = vmatpush1.msra.mxu0 0.0
    %2052 = vmatprep.subr.mxu0 0.0
    %2053 = vmatpush1.msra.mxu0 0.0
    %2054 = vmatprep.subr.mxu0 0.0
    %2055 = vmatpush1.msra.mxu0 0.0
    %2056 = vmatprep.subr.mxu0 0.0
    %2057 = vmatpush1.msra.mxu0 0.0
    %2058 = vmatprep.subr.mxu0 0.0
    %2059 = vmatpush1.msra.mxu0 0.0
    %2060 = vmatprep.subr.mxu0 0.0
    %2061 = vmatpush1.msra.mxu0 0.0
    %2062 = vmatprep.subr.mxu0 0.0
    %2063 = vmatpush1.msra.mxu0 0.0
    %2064 = vmatprep.subr.mxu0 0.0
    %2065 = vmatpush1.msra.mxu0 0.0
    %2066 = vmatprep.mubr.f32.mxu0 0.0
    %2067 = vmatmul.mubr.f32.gmra.mrb[0].mxu0 %v2000
    %v2068 = vpop.f32.mrb[0].mxu0
    %v2069 = vadd.f32 0.0, %v2068
    %v2070 = vpop.f32.mrb[0].mxu0
    %2071 = vdwg.mxu0
    %v2072 = vadd.f32 %v1998, %v2069
    %v2073 = vxor.u32 %v2072, 2147483648
    %v2074 = vmul.f32 %v2073, 1.442695
    %v2075 = vpow.pop %v2074
    %v2076 = vadd.f32 %v2075, 1.0
    %v2077 = vrcp.pop %v2076
    %v2078 = vmul.f32 1.0, %v2077
    %v2079 = vadd.f32 %v2069, %v1533
    %2081 = vrot.lane.b32.xlu0 %v2079, 64
    %v2082 = vpop.permute.xlu0 %2081
    %v2084 = vmul.f32 %v2078, %v2082
    %2086 = vrot.lane.b32.xlu0 %v2084, 64
    %v2087 = vpop.permute.xlu0 %2086
    %v2089 = vadd.f32 %v1998, %v2087
    %v2090 = vtanh.pop %v2089
    %v2091 = vsub.f32 1.0, %v2078
    %2093 = vrot.lane.b32.xlu0 %v2090, 96
    %v2094 = vpop.permute.xlu0 %2093
    %v2096 = vmul.f32 %v2091, %v2094
    %v2097 = vmul.f32 %v2078, %v1962
    %v2098 = vadd.f32 %v2096, %v2097
    %2100 = vrot.lane.b32.xlu0 %v2098, 96
    %v2101 = vpop.permute.xlu0 %2100
    %v2103 = vsel %vm225, %v2101, %v2098
    %v2104 = vmul.f32 %v2103, %v73
    %v2105 = vsel %vm1418, %v2098, -inf
    %v2106 = vrot.slane %v2105, 4
    %v2107 = vmax.f32 %v2105, %v2106
    %v2108 = vrot.slane %v2107, 2
    %v2109 = vmax.f32 %v2107, %v2108
    %v2110 = vrot.slane %v2109, 1
    %v2111 = vmax.f32 %v2109, %v2110
    %2113 = vrot.lane.b32.xlu0 %v2111, 96
    %v2114 = vpop.permute.xlu0 %2113
    %2116 = vst.msk [vmem:[#allocation6 + $0x5] sm:$0x1] %vm1430, %v2114
    %v2117 = vsel %vm1432, %v2098, -inf
    %v2118 = vrot.slane %v2117, 4
    %v2119 = vmax.f32 %v2117, %v2118
    %v2120 = vrot.slane %v2119, 2
    %v2121 = vmax.f32 %v2119, %v2120
    %v2122 = vrot.slane %v2121, 1
    %v2123 = vmax.f32 %v2121, %v2122
    %2125 = vrot.lane.b32.xlu0 %v2123, 96
    %v2126 = vpop.permute.xlu0 %2125
    %2128 = vst.msk [vmem:[#allocation7 + $0x2] sm:$0x1] %vm1430, %v2126
    %v2129 = vld [vmem:[#allocation2 + $0x18] sm:$0xf]
    %v2130 = vld [vmem:[#allocation3 + $0x4] sm:$0xf]
    %v2132 = vrot.slane %v2130, 4
    %v2134 = vsel %vm252, %v2129, %v2132
    %v2136 = vsel %vm291, %v2104, 0
    %2138 = vmatprep.subr.mxu0 0.0
    %2139 = vmatpush1.msra.mxu0 %v1375
    %2140 = vmatprep.subr.mxu0 0.0
    %2141 = vmatpush1.msra.mxu0 %v1376
    %2142 = vmatprep.subr.mxu0 0.0
    %2143 = vmatpush1.msra.mxu0 %v1377
    %2144 = vmatprep.subr.mxu0 0.0
    %2145 = vmatpush1.msra.mxu0 %v1378
    %2146 = vmatprep.subr.mxu0 0.0
    %2147 = vmatpush1.msra.mxu0 %v1379
    %2148 = vmatprep.subr.mxu0 0.0
    %2149 = vmatpush1.msra.mxu0 %v1380
    %2150 = vmatprep.subr.mxu0 0.0
    %2151 = vmatpush1.msra.mxu0 %v1381
    %2152 = vmatprep.subr.mxu0 0.0
    %2153 = vmatpush1.msra.mxu0 %v1382
    %2154 = vmatprep.subr.mxu0 0.0
    %2155 = vmatpush1.msra.mxu0 0.0
    %2156 = vmatprep.subr.mxu0 0.0
    %2157 = vmatpush1.msra.mxu0 0.0
    %2158 = vmatprep.subr.mxu0 0.0
    %2159 = vmatpush1.msra.mxu0 0.0
    %2160 = vmatprep.subr.mxu0 0.0
    %2161 = vmatpush1.msra.mxu0 0.0
    %2162 = vmatprep.subr.mxu0 0.0
    %2163 = vmatpush1.msra.mxu0 0.0
    %2164 = vmatprep.subr.mxu0 0.0
    %2165 = vmatpush1.msra.mxu0 0.0
    %2166 = vmatprep.subr.mxu0 0.0
    %2167 = vmatpush1.msra.mxu0 0.0
    %2168 = vmatprep.subr.mxu0 0.0
    %2169 = vmatpush1.msra.mxu0 0.0
    %2170 = vmatprep.subr.mxu0 0.0
    %2171 = vmatpush1.msra.mxu0 0.0
    %2172 = vmatprep.subr.mxu0 0.0
    %2173 = vmatpush1.msra.mxu0 0.0
    %2174 = vmatprep.subr.mxu0 0.0
    %2175 = vmatpush1.msra.mxu0 0.0
    %2176 = vmatprep.subr.mxu0 0.0
    %2177 = vmatpush1.msra.mxu0 0.0
    %2178 = vmatprep.subr.mxu0 0.0
    %2179 = vmatpush1.msra.mxu0 0.0
    %2180 = vmatprep.subr.mxu0 0.0
    %2181 = vmatpush1.msra.mxu0 0.0
    %2182 = vmatprep.subr.mxu0 0.0
    %2183 = vmatpush1.msra.mxu0 0.0
    %2184 = vmatprep.subr.mxu0 0.0
    %2185 = vmatpush1.msra.mxu0 0.0
    %2186 = vmatprep.subr.mxu0 0.0
    %2187 = vmatpush1.msra.mxu0 0.0
    %2188 = vmatprep.subr.mxu0 0.0
    %2189 = vmatpush1.msra.mxu0 0.0
    %2190 = vmatprep.subr.mxu0 0.0
    %2191 = vmatpush1.msra.mxu0 0.0
    %2192 = vmatprep.subr.mxu0 0.0
    %2193 = vmatpush1.msra.mxu0 0.0
    %2194 = vmatprep.subr.mxu0 0.0
    %2195 = vmatpush1.msra.mxu0 0.0
    %2196 = vmatprep.subr.mxu0 0.0
    %2197 = vmatpush1.msra.mxu0 0.0
    %2198 = vmatprep.subr.mxu0 0.0
    %2199 = vmatpush1.msra.mxu0 0.0
    %2200 = vmatprep.subr.mxu0 0.0
    %2201 = vmatpush1.msra.mxu0 0.0
    %2202 = vmatprep.mubr.f32.mxu0 0.0
    %2203 = vmatmul.mubr.f32.gmra.mrb[0].mxu0 %v2136
    %v2204 = vpop.f32.mrb[0].mxu0
    %v2205 = vadd.f32 0.0, %v2204
    %v2206 = vpop.f32.mrb[0].mxu0
    %2207 = vdwg.mxu0
    %v2208 = vadd.f32 %v2134, %v2205
    %v2209 = vxor.u32 %v2208, 2147483648
    %v2210 = vmul.f32 %v2209, 1.442695
    %v2211 = vpow.pop %v2210
    %v2212 = vadd.f32 %v2211, 1.0
    %v2213 = vrcp.pop %v2212
    %v2214 = vmul.f32 1.0, %v2213
    %v2215 = vadd.f32 %v2205, %v1533
    %2217 = vrot.lane.b32.xlu0 %v2215, 64
    %v2218 = vpop.permute.xlu0 %2217
    %v2220 = vmul.f32 %v2214, %v2218
    %2222 = vrot.lane.b32.xlu0 %v2220, 64
    %v2223 = vpop.permute.xlu0 %2222
    %v2225 = vadd.f32 %v2134, %v2223
    %v2226 = vtanh.pop %v2225
    %v2227 = vsub.f32 1.0, %v2214
    %2229 = vrot.lane.b32.xlu0 %v2226, 96
    %v2230 = vpop.permute.xlu0 %2229
    %v2232 = vmul.f32 %v2227, %v2230
    %v2233 = vmul.f32 %v2214, %v2098
    %v2234 = vadd.f32 %v2232, %v2233
    %2236 = vrot.lane.b32.xlu0 %v2234, 96
    %v2237 = vpop.permute.xlu0 %2236
    %v2239 = vsel %vm225, %v2237, %v2234
    %v2240 = vmul.f32 %v2239, %v73
    %v2241 = vsel %vm1418, %v2234, -inf
    %v2242 = vrot.slane %v2241, 4
    %v2243 = vmax.f32 %v2241, %v2242
    %v2244 = vrot.slane %v2243, 2
    %v2245 = vmax.f32 %v2243, %v2244
    %v2246 = vrot.slane %v2245, 1
    %v2247 = vmax.f32 %v2245, %v2246
    %2249 = vrot.lane.b32.xlu0 %v2247, 96
    %v2250 = vpop.permute.xlu0 %2249
    %2252 = vst.msk [vmem:[#allocation6 + $0x6] sm:$0x1] %vm1430, %v2250
    %v2253 = vsel %vm1432, %v2234, -inf
    %v2254 = vrot.slane %v2253, 4
    %v2255 = vmax.f32 %v2253, %v2254
    %v2256 = vrot.slane %v2255, 2
    %v2257 = vmax.f32 %v2255, %v2256
    %v2258 = vrot.slane %v2257, 1
    %v2259 = vmax.f32 %v2257, %v2258
    %2261 = vrot.lane.b32.xlu0 %v2259, 96
    %v2262 = vpop.permute.xlu0 %2261
    %2264 = vst.msk [vmem:[#allocation7 + $0x1] sm:$0x1] %vm1430, %v2262
    %v2265 = vld [vmem:[#allocation2 + $0x1c] sm:$0xf]
    %v2266 = vld [vmem:[#allocation3] sm:$0xf]
    %v2268 = vrot.slane %v2266, 4
    %v2270 = vsel %vm252, %v2265, %v2268
    %v2272 = vsel %vm291, %v2240, 0
    %2274 = vmatprep.subr.mxu0 0.0
    %2275 = vmatpush1.msra.mxu0 %v1375
    %2276 = vmatprep.subr.mxu0 0.0
    %2277 = vmatpush1.msra.mxu0 %v1376
    %2278 = vmatprep.subr.mxu0 0.0
    %2279 = vmatpush1.msra.mxu0 %v1377
    %2280 = vmatprep.subr.mxu0 0.0
    %2281 = vmatpush1.msra.mxu0 %v1378
    %2282 = vmatprep.subr.mxu0 0.0
    %2283 = vmatpush1.msra.mxu0 %v1379
    %2284 = vmatprep.subr.mxu0 0.0
    %2285 = vmatpush1.msra.mxu0 %v1380
    %2286 = vmatprep.subr.mxu0 0.0
    %2287 = vmatpush1.msra.mxu0 %v1381
    %2288 = vmatprep.subr.mxu0 0.0
    %2289 = vmatpush1.msra.mxu0 %v1382
    %2290 = vmatprep.subr.mxu0 0.0
    %2291 = vmatpush1.msra.mxu0 0.0
    %2292 = vmatprep.subr.mxu0 0.0
    %2293 = vmatpush1.msra.mxu0 0.0
    %2294 = vmatprep.subr.mxu0 0.0
    %2295 = vmatpush1.msra.mxu0 0.0
    %2296 = vmatprep.subr.mxu0 0.0
    %2297 = vmatpush1.msra.mxu0 0.0
    %2298 = vmatprep.subr.mxu0 0.0
    %2299 = vmatpush1.msra.mxu0 0.0
    %2300 = vmatprep.subr.mxu0 0.0
    %2301 = vmatpush1.msra.mxu0 0.0
    %2302 = vmatprep.subr.mxu0 0.0
    %2303 = vmatpush1.msra.mxu0 0.0
    %2304 = vmatprep.subr.mxu0 0.0
    %2305 = vmatpush1.msra.mxu0 0.0
    %2306 = vmatprep.subr.mxu0 0.0
    %2307 = vmatpush1.msra.mxu0 0.0
    %2308 = vmatprep.subr.mxu0 0.0
    %2309 = vmatpush1.msra.mxu0 0.0
    %2310 = vmatprep.subr.mxu0 0.0
    %2311 = vmatpush1.msra.mxu0 0.0
    %2312 = vmatprep.subr.mxu0 0.0
    %2313 = vmatpush1.msra.mxu0 0.0
    %2314 = vmatprep.subr.mxu0 0.0
    %2315 = vmatpush1.msra.mxu0 0.0
    %2316 = vmatprep.subr.mxu0 0.0
    %2317 = vmatpush1.msra.mxu0 0.0
    %2318 = vmatprep.subr.mxu0 0.0
    %2319 = vmatpush1.msra.mxu0 0.0
    %2320 = vmatprep.subr.mxu0 0.0
    %2321 = vmatpush1.msra.mxu0 0.0
    %2322 = vmatprep.subr.mxu0 0.0
    %2323 = vmatpush1.msra.mxu0 0.0
    %2324 = vmatprep.subr.mxu0 0.0
    %2325 = vmatpush1.msra.mxu0 0.0
    %2326 = vmatprep.subr.mxu0 0.0
    %2327 = vmatpush1.msra.mxu0 0.0
    %2328 = vmatprep.subr.mxu0 0.0
    %2329 = vmatpush1.msra.mxu0 0.0
    %2330 = vmatprep.subr.mxu0 0.0
    %2331 = vmatpush1.msra.mxu0 0.0
    %2332 = vmatprep.subr.mxu0 0.0
    %2333 = vmatpush1.msra.mxu0 0.0
    %2334 = vmatprep.subr.mxu0 0.0
    %2335 = vmatpush1.msra.mxu0 0.0
    %2336 = vmatprep.subr.mxu0 0.0
    %2337 = vmatpush1.msra.mxu0 0.0
    %2338 = vmatprep.mubr.f32.mxu0 0.0
    %2339 = vmatmul.mubr.f32.gmra.mrb[0].mxu0 %v2272
    %v2340 = vpop.f32.mrb[0].mxu0
    %v2341 = vadd.f32 0.0, %v2340
    %v2342 = vpop.f32.mrb[0].mxu0
    %2343 = vdwg.mxu0
    %v2344 = vadd.f32 %v2270, %v2341
    %v2345 = vxor.u32 %v2344, 2147483648
    %v2346 = vmul.f32 %v2345, 1.442695
    %v2347 = vpow.pop %v2346
    %v2348 = vadd.f32 %v2347, 1.0
    %v2349 = vrcp.pop %v2348
    %v2350 = vmul.f32 1.0, %v2349
    %v2351 = vadd.f32 %v2341, %v1533
    %2353 = vrot.lane.b32.xlu0 %v2351, 64
    %v2354 = vpop.permute.xlu0 %2353
    %v2356 = vmul.f32 %v2350, %v2354
    %2358 = vrot.lane.b32.xlu0 %v2356, 64
    %v2359 = vpop.permute.xlu0 %2358
    %v2361 = vadd.f32 %v2270, %v2359
    %v2362 = vtanh.pop %v2361
    %v2363 = vsub.f32 1.0, %v2350
    %2365 = vrot.lane.b32.xlu0 %v2362, 96
    %v2366 = vpop.permute.xlu0 %2365
    %v2368 = vmul.f32 %v2363, %v2366
    %v2369 = vmul.f32 %v2350, %v2234
    %v2370 = vadd.f32 %v2368, %v2369
    %v2371 = vsel %vm1418, %v2370, -inf
    %v2372 = vrot.slane %v2371, 4
    %v2373 = vmax.f32 %v2371, %v2372
    %v2374 = vrot.slane %v2373, 2
    %v2375 = vmax.f32 %v2373, %v2374
    %v2376 = vrot.slane %v2375, 1
    %v2377 = vmax.f32 %v2375, %v2376
    %2379 = vrot.lane.b32.xlu0 %v2377, 96
    %v2380 = vpop.permute.xlu0 %2379
    %2382 = vst.msk [vmem:[#allocation6 + $0x7] sm:$0x1] %vm1430, %v2380
    %v2383 = vsel %vm1432, %v2370, -inf
    %v2384 = vrot.slane %v2383, 4
    %v2385 = vmax.f32 %v2383, %v2384
    %v2386 = vrot.slane %v2385, 2
    %v2387 = vmax.f32 %v2385, %v2386
    %v2388 = vrot.slane %v2387, 1
    %v2389 = vmax.f32 %v2387, %v2388
    %2391 = vrot.lane.b32.xlu0 %v2389, 96
    %v2392 = vpop.permute.xlu0 %2391
    %2394 = vst.msk [vmem:[#allocation7] sm:$0x1] %vm1430, %v2392
    %v2395 = vld [vmem:[#allocation6] sm:$0xff]
    %v2396 = vtanh.pop %v2395
    %v2397 = vld [vmem:[%s7] sm:$0xff]
    %v2398 = vld [vmem:[%s7 + $0x8] sm:$0xff]
    %v2399 = vld [vmem:[%s7 + $0x10] sm:$0xff]
    %v2400 = vld [vmem:[%s7 + $0x18] sm:$0xff]
    %v2401 = vld [vmem:[#allocation7] sm:$0xff]
    %v2402 = vtanh.pop %v2401
    %s2403 = scalar_lea.vmem %s7, 32
    %v2404 = vld [vmem:[%s2403] sm:$0xff]
    %v2405 = vld [vmem:[%s2403 + $0x8] sm:$0xff]
    %v2406 = vld [vmem:[%s2403 + $0x10] sm:$0xff]
    %v2407 = vld [vmem:[%s2403 + $0x18] sm:$0xff]
    %v2409 = vsel %vm225, %v2402, 0
    %2411 = vmatprep.subr.mxu0 0.0
    %2412 = vmatpush1.msra.mxu0 %v2404
    %2413 = vmatprep.subr.mxu0 0.0
    %2414 = vmatpush1.msra.mxu0 %v2405
    %2415 = vmatprep.subr.mxu0 0.0
    %2416 = vmatpush1.msra.mxu0 %v2406
    %2417 = vmatprep.subr.mxu0 0.0
    %2418 = vmatpush1.msra.mxu0 %v2407
    %2419 = vmatprep.subr.mxu0 0.0
    %2420 = vmatpush1.msra.mxu0 0.0
    %2421 = vmatprep.subr.mxu0 0.0
    %2422 = vmatpush1.msra.mxu0 0.0
    %2423 = vmatprep.subr.mxu0 0.0
    %2424 = vmatpush1.msra.mxu0 0.0
    %2425 = vmatprep.subr.mxu0 0.0
    %2426 = vmatpush1.msra.mxu0 0.0
    %2427 = vmatprep.subr.mxu0 0.0
    %2428 = vmatpush1.msra.mxu0 0.0
    %2429 = vmatprep.subr.mxu0 0.0
    %2430 = vmatpush1.msra.mxu0 0.0
    %2431 = vmatprep.subr.mxu0 0.0
    %2432 = vmatpush1.msra.mxu0 0.0
    %2433 = vmatprep.subr.mxu0 0.0
    %2434 = vmatpush1.msra.mxu0 0.0
    %2435 = vmatprep.subr.mxu0 0.0
    %2436 = vmatpush1.msra.mxu0 0.0
    %2437 = vmatprep.subr.mxu0 0.0
    %2438 = vmatpush1.msra.mxu0 0.0
    %2439 = vmatprep.subr.mxu0 0.0
    %2440 = vmatpush1.msra.mxu0 0.0
    %2441 = vmatprep.subr.mxu0 0.0
    %2442 = vmatpush1.msra.mxu0 0.0
    %2443 = vmatprep.subr.mxu0 0.0
    %2444 = vmatpush1.msra.mxu0 0.0
    %2445 = vmatprep.subr.mxu0 0.0
    %2446 = vmatpush1.msra.mxu0 0.0
    %2447 = vmatprep.subr.mxu0 0.0
    %2448 = vmatpush1.msra.mxu0 0.0
    %2449 = vmatprep.subr.mxu0 0.0
    %2450 = vmatpush1.msra.mxu0 0.0
    %2451 = vmatprep.subr.mxu0 0.0
    %2452 = vmatpush1.msra.mxu0 0.0
    %2453 = vmatprep.subr.mxu0 0.0
    %2454 = vmatpush1.msra.mxu0 0.0
    %2455 = vmatprep.subr.mxu0 0.0
    %2456 = vmatpush1.msra.mxu0 0.0
    %2457 = vmatprep.subr.mxu0 0.0
    %2458 = vmatpush1.msra.mxu0 0.0
    %2459 = vmatprep.subr.mxu0 0.0
    %2460 = vmatpush1.msra.mxu0 0.0
    %2461 = vmatprep.subr.mxu0 0.0
    %2462 = vmatpush1.msra.mxu0 0.0
    %2463 = vmatprep.subr.mxu0 0.0
    %2464 = vmatpush1.msra.mxu0 0.0
    %2465 = vmatprep.subr.mxu0 0.0
    %2466 = vmatpush1.msra.mxu0 0.0
    %2467 = vmatprep.subr.mxu0 0.0
    %2468 = vmatpush1.msra.mxu0 0.0
    %2469 = vmatprep.subr.mxu0 0.0
    %2470 = vmatpush1.msra.mxu0 0.0
    %2471 = vmatprep.subr.mxu0 0.0
    %2472 = vmatpush1.msra.mxu0 0.0
    %2473 = vmatprep.subr.mxu0 0.0
    %2474 = vmatpush1.msra.mxu0 0.0
    %2475 = vmatprep.mubr.f32.mxu0 0.0
    %2476 = vmatmul.mubr.f32.gmra.mrb[0].mxu0 %v2409
    %v2477 = vpop.f32.mrb[0].mxu0
    %v2478 = vadd.f32 0.0, %v2477
    %v2479 = vpop.f32.mrb[0].mxu0
    %2480 = vdwg.mxu0
    %v2482 = vsel %vm225, %v2396, 0
    %2484 = vmatprep.subr.mxu0 0.0
    %2485 = vmatpush1.msra.mxu0 %v2397
    %2486 = vmatprep.subr.mxu0 0.0
    %2487 = vmatpush1.msra.mxu0 %v2398
    %2488 = vmatprep.subr.mxu0 0.0
    %2489 = vmatpush1.msra.mxu0 %v2399
    %2490 = vmatprep.subr.mxu0 0.0
    %2491 = vmatpush1.msra.mxu0 %v2400
    %2492 = vmatprep.subr.mxu0 0.0
    %2493 = vmatpush1.msra.mxu0 0.0
    %2494 = vmatprep.subr.mxu0 0.0
    %2495 = vmatpush1.msra.mxu0 0.0
    %2496 = vmatprep.subr.mxu0 0.0
    %2497 = vmatpush1.msra.mxu0 0.0
    %2498 = vmatprep.subr.mxu0 0.0
    %2499 = vmatpush1.msra.mxu0 0.0
    %2500 = vmatprep.subr.mxu0 0.0
    %2501 = vmatpush1.msra.mxu0 0.0
    %2502 = vmatprep.subr.mxu0 0.0
    %2503 = vmatpush1.msra.mxu0 0.0
    %2504 = vmatprep.subr.mxu0 0.0
    %2505 = vmatpush1.msra.mxu0 0.0
    %2506 = vmatprep.subr.mxu0 0.0
    %2507 = vmatpush1.msra.mxu0 0.0
    %2508 = vmatprep.subr.mxu0 0.0
    %2509 = vmatpush1.msra.mxu0 0.0
    %2510 = vmatprep.subr.mxu0 0.0
    %2511 = vmatpush1.msra.mxu0 0.0
    %2512 = vmatprep.subr.mxu0 0.0
    %2513 = vmatpush1.msra.mxu0 0.0
    %2514 = vmatprep.subr.mxu0 0.0
    %2515 = vmatpush1.msra.mxu0 0.0
    %2516 = vmatprep.subr.mxu0 0.0
    %2517 = vmatpush1.msra.mxu0 0.0
    %2518 = vmatprep.subr.mxu0 0.0
    %2519 = vmatpush1.msra.mxu0 0.0
    %2520 = vmatprep.subr.mxu0 0.0
    %2521 = vmatpush1.msra.mxu0 0.0
    %2522 = vmatprep.subr.mxu0 0.0
    %2523 = vmatpush1.msra.mxu0 0.0
    %2524 = vmatprep.subr.mxu0 0.0
    %2525 = vmatpush1.msra.mxu0 0.0
    %2526 = vmatprep.subr.mxu0 0.0
    %2527 = vmatpush1.msra.mxu0 0.0
    %2528 = vmatprep.subr.mxu0 0.0
    %2529 = vmatpush1.msra.mxu0 0.0
    %2530 = vmatprep.subr.mxu0 0.0
    %2531 = vmatpush1.msra.mxu0 0.0
    %2532 = vmatprep.subr.mxu0 0.0
    %2533 = vmatpush1.msra.mxu0 0.0
    %2534 = vmatprep.subr.mxu0 0.0
    %2535 = vmatpush1.msra.mxu0 0.0
    %2536 = vmatprep.subr.mxu0 0.0
    %2537 = vmatpush1.msra.mxu0 0.0
    %2538 = vmatprep.subr.mxu0 0.0
    %2539 = vmatpush1.msra.mxu0 0.0
    %2540 = vmatprep.subr.mxu0 0.0
    %2541 = vmatpush1.msra.mxu0 0.0
    %2542 = vmatprep.subr.mxu0 0.0
    %2543 = vmatpush1.msra.mxu0 0.0
    %2544 = vmatprep.subr.mxu0 0.0
    %2545 = vmatpush1.msra.mxu0 0.0
    %2546 = vmatprep.subr.mxu0 0.0
    %2547 = vmatpush1.msra.mxu0 0.0
    %2548 = vmatprep.mubr.f32.mxu0 0.0
    %2549 = vmatmul.mubr.f32.gmra.mrb[0].mxu0 %v2482
    %v2550 = vpop.f32.mrb[0].mxu0
    %v2551 = vadd.f32 %v2478, %v2550
    %v2552 = vpop.f32.mrb[0].mxu0
    %2553 = vdwg.mxu0
    %v2554 = vld [vmem:[%s8] sm:$0x1]
    %v2556 = vlaneseq
    %v2557 = vshrl.u32 %v2556, 7
    %v2558 = vsub.s32 0, %v2557
    %v2559 = vrot.slane %v2554, %v2558
    %v2561 = vadd.f32 %v2551, %v2559
    %vm2562 = vcmask 23552
    %2563 = vst.msk [vmem:[%s9] sm:$0xff] %vm2562, %v2561
    // Predicated region
    $region50: #{bidirectional_gru_forward.1} parent=1 // pred_check
      _
    $region51: #{bidirectional_gru_forward.1} parent=1 // pred_check_branch
      %2565 = sbr.rel (0) target = $region53
    $region52: #{bidirectional_gru_forward.1} parent=1 // pred_region
      _
    $region53: #{bidirectional_gru_forward.1} parent=1 // pred_fallthru
      _
    // Predicated region
    $region54: #{bidirectional_gru_forward.1} parent=1 // pred_check
      _
    $region55: #{bidirectional_gru_forward.1} parent=1 // pred_check_branch
      %2567 = sbr.rel (0) target = $region57
    $region56: #{bidirectional_gru_forward.1} parent=1 // pred_region
      _
    $region57: #{bidirectional_gru_forward.1} parent=1 // pred_fallthru
      _
    %2568 = vsyncpa [#allocation9], 1
    %2569 = vsyncpa [#allocation11], 1

</llo_original>
